<compile_context>
chip_gen: v7x
topology: tpu7x:2x2x1
jax: 0.10.0
libtpu: 0.0.40
codegen_flags: <defaults>
</compile_context>

<pallas_src>
import math
from functools import partial

import jax
import jax.numpy as jnp
import numpy as np
from jax.experimental import pallas as pl
from jax.experimental.pallas import tpu as pltpu


# ----------------------------- fused Pallas kernel ---------------------------

def _make_fused_kernel(H, W, kv_size, channel_num):
    N = H * W
    KV = kv_size
    channel_num = tuple(int(c) for c in channel_num)
    CQ = int(sum(channel_num))
    offs = np.concatenate([[0], np.cumsum(channel_num)]).astype(int)
    scale = 1.0 / math.sqrt(KV)
    CENTER = 4                                    # tap (dh, dw) == (0, 0)

    def tap_shift(t):
        dh, dw = t // 3 - 1, t % 3 - 1
        return dh * W + dw

    def kernel(e1_ref, e2_ref, e3_ref, e4_ref, eall_ref, mask_ref,
               wq_ref, wkv1_ref, coeff_ref, aseg_ref, wproj_ref,
               o1_ref, o2_ref, o3_ref, o4_ref,
               imcol_ref, qn_ref, kv_ref):
        # ---------------- Phase A: query path -------------------------------
        # Assemble the concatenated (CQ, N) query tile in-kernel (no wrapper
        # concat), then build the 9-tap im2col in VMEM scratch and run one
        # dense MXU matmul with the pre-folded (mhead o pair-grouped 3x3)
        # block-diagonal weights.
        x_cat = jnp.concatenate(
            [e1_ref[0], e2_ref[0], e3_ref[0], e4_ref[0]], axis=0)   # (CQ, N)
        imcol_ref[pl.ds(CENTER * CQ, CQ), :] = x_cat                # center tap
        for t in range(9):
            if t == CENTER:
                continue
            d = tap_shift(t)
            shifted = pltpu.roll(x_cat, (-d) % N, axis=1) * mask_ref[t]
            imcol_ref[pl.ds(t * CQ, CQ), :] = shifted

        q = jnp.dot(wq_ref[...], imcol_ref[...],
                    preferred_element_type=jnp.float32)             # (CQ, N)
        # torch F.normalize(dim=-1), eps folded as 1e-24 on the squared norm;
        # the 1/sqrt(KV) attention scale is folded in here as well.
        qn = q * (jax.lax.rsqrt(
            jnp.maximum(jnp.sum(q * q, axis=-1, keepdims=True), 1e-24)) * scale)
        qn_ref[...] = qn            # park in VMEM; not live during Phase B

        # ---------------- Phase B: key / value path --------------------------
        x_all = eall_ref[0]                                         # (KV, N)
        kvm = jnp.dot(wkv1_ref[...], x_all,
                      preferred_element_type=jnp.float32)           # (2KV, N)

        # Depthwise 3x3 for k and v together: one roll per tap; the border
        # mask is already folded into coeff.  Accumulate in VMEM scratch to
        # keep the live register set small.
        kv_ref[...] = kvm * coeff_ref[CENTER]
        for t in range(9):
            if t == CENTER:
                continue
            d = tap_shift(t)
            kv_ref[...] += coeff_ref[t] * pltpu.roll(kvm, (-d) % N, axis=1)

        k = kv_ref[pl.ds(0, KV), :]
        kn = k * jax.lax.rsqrt(
            jnp.maximum(jnp.sum(k * k, axis=-1, keepdims=True), 1e-24))

        # attn = qn @ kn^T (contract over the pixel/lane axis) -> (CQ, KV)
        attn = jax.lax.dot_general(qn_ref[...], kn, (((1,), (1,)), ((), ())),
                                   preferred_element_type=jnp.float32)

        # InstanceNorm2d(num_heads=1) per branch, fully vectorized via the
        # precomputed segment-averaging matrix (rows of one branch share stats).
        aseg = aseg_ref[...]
        mu = jnp.sum(jnp.dot(aseg, attn, preferred_element_type=jnp.float32),
                     axis=-1, keepdims=True)
        cen = attn - mu
        var = jnp.sum(jnp.dot(aseg, cen * cen,
                              preferred_element_type=jnp.float32),
                      axis=-1, keepdims=True)
        attn_n = cen * jax.lax.rsqrt(var + 1e-5)

        # softmax over the KV axis
        mx = jnp.max(attn_n, axis=-1, keepdims=True)
        e = jnp.exp(attn_n - mx)
        p = e * pl.reciprocal(jnp.sum(e, axis=-1, keepdims=True), approx=True)

        # out = probs @ v, block-diagonal 1x1 projections, branch-separated
        # lane-dense stores.
        v = kv_ref[pl.ds(KV, KV), :]
        out = jnp.dot(p, v, preferred_element_type=jnp.float32)     # (CQ, N)
        proj = jnp.dot(wproj_ref[...], out,
                       preferred_element_type=jnp.float32)          # (CQ, N)

        o1_ref[0] = proj[int(offs[0]):int(offs[1])].astype(o1_ref.dtype)
        o2_ref[0] = proj[int(offs[1]):int(offs[2])].astype(o2_ref.dtype)
        o3_ref[0] = proj[int(offs[2]):int(offs[3])].astype(o3_ref.dtype)
        o4_ref[0] = proj[int(offs[3]):int(offs[4])].astype(o4_ref.dtype)

    return kernel


# ----------------------------- forward wrapper --------------------------------

def attention_org_forward(params, emb1, emb2, emb3, emb4, emb_all,
                          channel_num, kv_size):
    """Attention_org.forward. Returns (O1, O2, O3, O4, None)."""
    channel_num = tuple(int(c) for c in channel_num)
    B, KV, H, W = emb_all.shape
    assert KV == kv_size
    N = H * W
    CQ = int(sum(channel_num))
    offs = np.concatenate([[0], np.cumsum(channel_num)]).astype(int)
    f32 = jnp.float32

    # ---- weight preprocessing (tiny, fused under jit) ------------------------
    # 3x3 tap validity masks (zero padding of the HxW image), shape (9, 1, N).
    hh, ww = np.divmod(np.arange(N), W)
    masks_np = np.zeros((9, 1, N), np.float32)
    for t in range(9):
        dh, dw = t // 3 - 1, t % 3 - 1
        masks_np[t, 0] = ((hh + dh >= 0) & (hh + dh < H) &
                          (ww + dw >= 0) & (ww + dw < W))
    masks = jnp.asarray(masks_np)

    # q path: fold each branch's dense 1x1 mhead with its pair-grouped 3x3 conv
    # (groups=C/2) into per-tap block-diagonal matrices, then lay them out
    # tap-major as ONE dense (CQ, 9*CQ) matmul weight.
    wq_fold = jnp.zeros((9, CQ, CQ), f32)
    for i, ci in enumerate(channel_num):
        s = int(offs[i])
        wm = params[f"mhead{i + 1}"][:, :, 0, 0].astype(f32)          # (ci, ci)
        g = params[f"q{i + 1}"].reshape(ci, 2, 9).astype(f32)         # (ci, 2, 9)
        base = (np.arange(ci) // 2) * 2
        wp = jnp.stack([wm[base], wm[base + 1]], axis=1)              # (ci, 2, ci)
        mi = jnp.einsum("ojt,ojc->toc", g, wp)                        # (9, ci, ci)
        wq_fold = wq_fold.at[:, s:s + ci, s:s + ci].set(mi)
    wq_big = jnp.transpose(wq_fold, (1, 0, 2)).reshape(CQ, 9 * CQ)

    # stacked mheadk/mheadv 1x1 weights -> one (2KV, KV) matmul for km & vm.
    wkv1 = jnp.concatenate([params["mheadk"][:, :, 0, 0],
                            params["mheadv"][:, :, 0, 0]], axis=0).astype(f32)

    # depthwise 3x3 tap coefficients for k & v with the border masks folded in:
    # coeff[t] = [wk_tap_t ; wv_tap_t] * mask[t]  -> (9, 2*KV, N)
    taps = jnp.concatenate([params["k"].reshape(KV, 9),
                            params["v"].reshape(KV, 9)], axis=0).astype(f32)
    coeff = taps.T[:, :, None] * masks                                # (9, 2KV, N)

    # block-diagonal 1x1 projections
    wproj = jnp.zeros((CQ, CQ), f32)
    for i, ci in enumerate(channel_num):
        s = int(offs[i])
        wproj = wproj.at[s:s + ci, s:s + ci].set(
            params[f"proj{i + 1}"][:, :, 0, 0].astype(f32))

    # per-branch segment-averaging matrix for InstanceNorm2d(1)
    aseg_np = np.zeros((CQ, CQ), np.float32)
    for i, ci in enumerate(channel_num):
        s = int(offs[i])
        aseg_np[s:s + ci, s:s + ci] = 1.0 / (ci * KV)
    aseg = jnp.asarray(aseg_np)

    # activations: channels-major (C, N) per batch, pixels on the lane axis.
    e1 = emb1.reshape(B, channel_num[0], N).astype(f32)
    e2 = emb2.reshape(B, channel_num[1], N).astype(f32)
    e3 = emb3.reshape(B, channel_num[2], N).astype(f32)
    e4 = emb4.reshape(B, channel_num[3], N).astype(f32)
    ea = emb_all.reshape(B, KV, N).astype(f32)

    flops = 2 * B * N * (CQ * 9 * CQ + 2 * KV * KV + 9 * 2 * KV
                         + 2 * CQ * KV + CQ * CQ)
    bytes_accessed = 4 * (B * (2 * CQ + KV) * N + 9 * 2 * KV * N + 9 * N
                          + CQ * 9 * CQ + 2 * KV * KV + 2 * CQ * CQ)
    cost = pl.CostEstimate(flops=int(flops),
                           transcendentals=int(B * (CQ * KV + 2 * CQ + KV)),
                           bytes_accessed=int(bytes_accessed))

    const2 = lambda b: (0, 0)
    const3 = lambda b: (0, 0, 0)
    batch3 = lambda b: (b, 0, 0)

    outs = pl.pallas_call(
        _make_fused_kernel(H, W, KV, channel_num),
        out_shape=tuple(jax.ShapeDtypeStruct((B, ci, N), f32)
                        for ci in channel_num),
        grid=(B,),
        in_specs=[
            pl.BlockSpec((1, channel_num[0], N), batch3),   # emb1
            pl.BlockSpec((1, channel_num[1], N), batch3),   # emb2
            pl.BlockSpec((1, channel_num[2], N), batch3),   # emb3
            pl.BlockSpec((1, channel_num[3], N), batch3),   # emb4
            pl.BlockSpec((1, KV, N), batch3),               # emb_all
            pl.BlockSpec((9, 1, N), const3),                # tap masks (q path)
            pl.BlockSpec((CQ, 9 * CQ), const2),             # dense folded q weights
            pl.BlockSpec((2 * KV, KV), const2),             # stacked mheadk/mheadv
            pl.BlockSpec((9, 2 * KV, N), const3),           # depthwise taps * mask
            pl.BlockSpec((CQ, CQ), const2),                 # segment averaging
            pl.BlockSpec((CQ, CQ), const2),                 # block-diag projections
        ],
        out_specs=tuple(pl.BlockSpec((1, ci, N), batch3) for ci in channel_num),
        scratch_shapes=[
            pltpu.VMEM((9 * CQ, N), f32),   # im2col of shifted+masked queries
            pltpu.VMEM((CQ, N), f32),       # normalized q parked across phases
            pltpu.VMEM((2 * KV, N), f32),   # stacked k/v depthwise accumulator
        ],
        compiler_params=pltpu.CompilerParams(
            dimension_semantics=("parallel",),
            vmem_limit_bytes=32 * 1024 * 1024),
        cost_estimate=cost,
    )(e1, e2, e3, e4, ea, masks, wq_big, wkv1, coeff, aseg, wproj)

    shaped = tuple(o.reshape(B, ci, H, W) for o, ci in zip(outs, channel_num))
    # vis=False in the reference module -> weights is always None.
    return shaped + (None,)


# ----------------------------- pure-XLA reference -----------------------------

def _reference_forward(params, emb1, emb2, emb3, emb4, emb_all,
                       channel_num, kv_size):
    """Faithful (torch-semantics) reference, used only to verify the kernel."""
    def conv(x, w, groups=1, pad=0):
        return jax.lax.conv_general_dilated(
            x, w, window_strides=(1, 1), padding=[(pad, pad), (pad, pad)],
            dimension_numbers=("NCHW", "OIHW", "NCHW"),
            feature_group_count=groups)

    B, _, H, W = emb_all.shape
    N = H * W
    embs = (emb1, emb2, emb3, emb4)
    k = conv(conv(emb_all, params["mheadk"]), params["k"], groups=kv_size, pad=1)
    v = conv(conv(emb_all, params["mheadv"]), params["v"], groups=kv_size, pad=1)
    k = k.reshape(B, kv_size, N)
    v = v.reshape(B, kv_size, N)
    kn = k / jnp.maximum(jnp.linalg.norm(k, axis=-1, keepdims=True), 1e-12)
    outs = []
    for i, ci in enumerate(channel_num):
        q = conv(conv(embs[i], params[f"mhead{i + 1}"]), params[f"q{i + 1}"],
                 groups=ci // 2, pad=1).reshape(B, ci, N)
        qn = q / jnp.maximum(jnp.linalg.norm(q, axis=-1, keepdims=True), 1e-12)
        attn = jnp.einsum("bcn,bkn->bck", qn, kn) / math.sqrt(kv_size)
        mu = attn.mean(axis=(1, 2), keepdims=True)
        var = attn.var(axis=(1, 2), keepdims=True)
        attn = (attn - mu) / jnp.sqrt(var + 1e-5)
        p = jax.nn.softmax(attn, axis=-1)
        o = jnp.einsum("bck,bkn->bcn", p, v).reshape(B, ci, H, W)
        outs.append(conv(o, params[f"proj{i + 1}"]))
    return outs


# ----------------------------- demo / check -----------------------------------

if __name__ == "__main__":
    channel_num = (4, 8, 12, 16)
    kv_size = int(sum(channel_num))          # config.KV_size = 40
    B, H, W = 2, 16, 16                      # N = H*W = 256 (lane-dense)

    key = jax.random.PRNGKey(0)
    keys = iter(jax.random.split(key, 32))

    def rnd(shape, scale=0.1):
        return scale * jax.random.normal(next(keys), shape, jnp.float32)

    params = {}
    for i, c in enumerate(channel_num, start=1):
        params[f"mhead{i}"] = rnd((c, c, 1, 1))            # 1x1, bias=False
        params[f"q{i}"] = rnd((c, 2, 3, 3))                # 3x3, groups=c//2
        params[f"proj{i}"] = rnd((c, c, 1, 1))             # 1x1, bias=False
    params["mheadk"] = rnd((kv_size, kv_size, 1, 1))
    params["mheadv"] = rnd((kv_size, kv_size, 1, 1))
    params["k"] = rnd((kv_size, 1, 3, 3))                  # depthwise 3x3
    params["v"] = rnd((kv_size, 1, 3, 3))                  # depthwise 3x3
    # NOTE: the q{i}_attn{j} scalar nn.Parameters exist in __init__ but are
    # never used in forward(), so they are intentionally omitted.

    emb1 = jax.random.normal(next(keys), (B, channel_num[0], H, W), jnp.float32)
    emb2 = jax.random.normal(next(keys), (B, channel_num[1], H, W), jnp.float32)
    emb3 = jax.random.normal(next(keys), (B, channel_num[2], H, W), jnp.float32)
    emb4 = jax.random.normal(next(keys), (B, channel_num[3], H, W), jnp.float32)
    emb_all = jax.random.normal(next(keys), (B, kv_size, H, W), jnp.float32)

    fwd = jax.jit(partial(attention_org_forward,
                          channel_num=channel_num, kv_size=kv_size))
    outs = fwd(params, emb1, emb2, emb3, emb4, emb_all)
    outs = jax.block_until_ready(outs[:4])

    refs = _reference_forward(params, emb1, emb2, emb3, emb4, emb_all,
                              channel_num, kv_size)
    for o, r, c in zip(outs, refs, channel_num):
        assert o.shape == (B, c, H, W)
        np.testing.assert_allclose(np.asarray(o), np.asarray(r),
                                   rtol=2e-3, atol=2e-3)

    print("KERNEL_OK")
</pallas_src>

<mosaic_0001>
module attributes {stable_mosaic.version = 11 : i64} {
  func.func @kernel(%arg0: i32, %arg1: memref<1x4x256xf32, #tpu.memory_space<vmem>>, %arg2: memref<1x8x256xf32, #tpu.memory_space<vmem>>, %arg3: memref<1x12x256xf32, #tpu.memory_space<vmem>>, %arg4: memref<1x16x256xf32, #tpu.memory_space<vmem>>, %arg5: memref<1x40x256xf32, #tpu.memory_space<vmem>>, %arg6: memref<9x1x256xf32, #tpu.memory_space<vmem>>, %arg7: memref<40x360xf32, #tpu.memory_space<vmem>>, %arg8: memref<80x40xf32, #tpu.memory_space<vmem>>, %arg9: memref<9x80x256xf32, #tpu.memory_space<vmem>>, %arg10: memref<40x40xf32, #tpu.memory_space<vmem>>, %arg11: memref<40x40xf32, #tpu.memory_space<vmem>>, %arg12: memref<1x4x256xf32, #tpu.memory_space<vmem>>, %arg13: memref<1x8x256xf32, #tpu.memory_space<vmem>>, %arg14: memref<1x12x256xf32, #tpu.memory_space<vmem>>, %arg15: memref<1x16x256xf32, #tpu.memory_space<vmem>>, %arg16: memref<360x256xf32, #tpu.memory_space<vmem>>, %arg17: memref<40x256xf32, #tpu.memory_space<vmem>>, %arg18: memref<80x256xf32, #tpu.memory_space<vmem>>) attributes {dimension_semantics = [#tpu.dimension_semantics<parallel>], iteration_bounds = array<i64: 2>, scalar_prefetch = 0 : i64, scratch_operands = 3 : i64, tpu.core_type = #tpu.core_type<tc>, window_params = [{transform_indices = @transform_0, window_bounds = array<i64: 1, 4, 256>}, {transform_indices = @transform_1, window_bounds = array<i64: 1, 8, 256>}, {transform_indices = @transform_2, window_bounds = array<i64: 1, 12, 256>}, {transform_indices = @transform_3, window_bounds = array<i64: 1, 16, 256>}, {transform_indices = @transform_4, window_bounds = array<i64: 1, 40, 256>}, {pipeline_mode = #tpu.pipeline_mode<synchronous>, transform_indices = @transform_5, window_bounds = array<i64: 9, 1, 256>}, {pipeline_mode = #tpu.pipeline_mode<synchronous>, transform_indices = @transform_6, window_bounds = array<i64: 40, 360>}, {pipeline_mode = #tpu.pipeline_mode<synchronous>, transform_indices = @transform_7, window_bounds = array<i64: 80, 40>}, {pipeline_mode = #tpu.pipeline_mode<synchronous>, transform_indices = @transform_8, window_bounds = array<i64: 9, 80, 256>}, {pipeline_mode = #tpu.pipeline_mode<synchronous>, transform_indices = @transform_9, window_bounds = array<i64: 40, 40>}, {pipeline_mode = #tpu.pipeline_mode<synchronous>, transform_indices = @transform_10, window_bounds = array<i64: 40, 40>}, {transform_indices = @transform_11, window_bounds = array<i64: 1, 4, 256>}, {transform_indices = @transform_12, window_bounds = array<i64: 1, 8, 256>}, {transform_indices = @transform_13, window_bounds = array<i64: 1, 12, 256>}, {transform_indices = @transform_14, window_bounds = array<i64: 1, 16, 256>}]} {
    %c0 = arith.constant 0 : index
    %c0_0 = arith.constant 0 : index
    %c0_1 = arith.constant 0 : index
    %0 = vector.load %arg1[%c0, %c0_0, %c0_1] : memref<1x4x256xf32, #tpu.memory_space<vmem>>, vector<1x4x256xf32>
    %1 = vector.shape_cast %0 : vector<1x4x256xf32> to vector<4x256xf32>
    %c0_2 = arith.constant 0 : index
    %c0_3 = arith.constant 0 : index
    %c0_4 = arith.constant 0 : index
    %2 = vector.load %arg2[%c0_2, %c0_3, %c0_4] : memref<1x8x256xf32, #tpu.memory_space<vmem>>, vector<1x8x256xf32>
    %3 = vector.shape_cast %2 : vector<1x8x256xf32> to vector<8x256xf32>
    %c0_5 = arith.constant 0 : index
    %c0_6 = arith.constant 0 : index
    %c0_7 = arith.constant 0 : index
    %4 = vector.load %arg3[%c0_5, %c0_6, %c0_7] : memref<1x12x256xf32, #tpu.memory_space<vmem>>, vector<1x12x256xf32>
    %5 = vector.shape_cast %4 : vector<1x12x256xf32> to vector<12x256xf32>
    %c0_8 = arith.constant 0 : index
    %c0_9 = arith.constant 0 : index
    %c0_10 = arith.constant 0 : index
    %6 = vector.load %arg4[%c0_8, %c0_9, %c0_10] : memref<1x16x256xf32, #tpu.memory_space<vmem>>, vector<1x16x256xf32>
    %7 = vector.shape_cast %6 : vector<1x16x256xf32> to vector<16x256xf32>
    %8 = tpu.concatenate %1, %3, %5, %7 in 0 : vector<4x256xf32>, vector<8x256xf32>, vector<12x256xf32>, vector<16x256xf32> -> vector<40x256xf32>
    %c160 = arith.constant 160 : index
    %c0_11 = arith.constant 0 : index
    %9 = vector.load %arg16[%c160, %c0_11] : memref<360x256xf32, #tpu.memory_space<vmem>>, vector<40x256xf32>
    tpu.vector_store %arg16[%c160, %c0_11], %8 {strides = array<i32>} : memref<360x256xf32, #tpu.memory_space<vmem>>, vector<40x256xf32>,
    %c17_i32 = arith.constant 17 : i32
    %10 = tpu.dynamic_rotate %8 by %c17_i32 dim 1 : vector<40x256xf32>, i32 -> vector<40x256xf32>
    %c0_12 = arith.constant 0 : index
    %c0_13 = arith.constant 0 : index
    %c0_14 = arith.constant 0 : index
    %11 = vector.load %arg6[%c0_12, %c0_13, %c0_14] : memref<9x1x256xf32, #tpu.memory_space<vmem>>, vector<1x1x256xf32>
    %12 = vector.shape_cast %11 : vector<1x1x256xf32> to vector<1x256xf32>
    %13 = vector.broadcast %12 : vector<1x256xf32> to vector<40x256xf32>
    %14 = arith.mulf %10, %13 : vector<40x256xf32>
    %c0_15 = arith.constant 0 : index
    %c0_16 = arith.constant 0 : index
    %15 = vector.load %arg16[%c0_15, %c0_16] : memref<360x256xf32, #tpu.memory_space<vmem>>, vector<40x256xf32>
    tpu.vector_store %arg16[%c0_15, %c0_16], %14 {strides = array<i32>} : memref<360x256xf32, #tpu.memory_space<vmem>>, vector<40x256xf32>,
    %c16_i32 = arith.constant 16 : i32
    %16 = tpu.dynamic_rotate %8 by %c16_i32 dim 1 : vector<40x256xf32>, i32 -> vector<40x256xf32>
    %c1 = arith.constant 1 : index
    %c0_17 = arith.constant 0 : index
    %c0_18 = arith.constant 0 : index
    %17 = vector.load %arg6[%c1, %c0_17, %c0_18] : memref<9x1x256xf32, #tpu.memory_space<vmem>>, vector<1x1x256xf32>
    %18 = vector.shape_cast %17 : vector<1x1x256xf32> to vector<1x256xf32>
    %19 = vector.broadcast %18 : vector<1x256xf32> to vector<40x256xf32>
    %20 = arith.mulf %16, %19 : vector<40x256xf32>
    %c40 = arith.constant 40 : index
    %c0_19 = arith.constant 0 : index
    %21 = vector.load %arg16[%c40, %c0_19] : memref<360x256xf32, #tpu.memory_space<vmem>>, vector<40x256xf32>
    tpu.vector_store %arg16[%c40, %c0_19], %20 {strides = array<i32>} : memref<360x256xf32, #tpu.memory_space<vmem>>, vector<40x256xf32>,
    %c15_i32 = arith.constant 15 : i32
    %22 = tpu.dynamic_rotate %8 by %c15_i32 dim 1 : vector<40x256xf32>, i32 -> vector<40x256xf32>
    %c2 = arith.constant 2 : index
    %c0_20 = arith.constant 0 : index
    %c0_21 = arith.constant 0 : index
    %23 = vector.load %arg6[%c2, %c0_20, %c0_21] : memref<9x1x256xf32, #tpu.memory_space<vmem>>, vector<1x1x256xf32>
    %24 = vector.shape_cast %23 : vector<1x1x256xf32> to vector<1x256xf32>
    %25 = vector.broadcast %24 : vector<1x256xf32> to vector<40x256xf32>
    %26 = arith.mulf %22, %25 : vector<40x256xf32>
    %c80 = arith.constant 80 : index
    %c0_22 = arith.constant 0 : index
    %27 = vector.load %arg16[%c80, %c0_22] : memref<360x256xf32, #tpu.memory_space<vmem>>, vector<40x256xf32>
    tpu.vector_store %arg16[%c80, %c0_22], %26 {strides = array<i32>} : memref<360x256xf32, #tpu.memory_space<vmem>>, vector<40x256xf32>,
    %c1_i32 = arith.constant 1 : i32
    %28 = tpu.dynamic_rotate %8 by %c1_i32 dim 1 : vector<40x256xf32>, i32 -> vector<40x256xf32>
    %c3 = arith.constant 3 : index
    %c0_23 = arith.constant 0 : index
    %c0_24 = arith.constant 0 : index
    %29 = vector.load %arg6[%c3, %c0_23, %c0_24] : memref<9x1x256xf32, #tpu.memory_space<vmem>>, vector<1x1x256xf32>
    %30 = vector.shape_cast %29 : vector<1x1x256xf32> to vector<1x256xf32>
    %31 = vector.broadcast %30 : vector<1x256xf32> to vector<40x256xf32>
    %32 = arith.mulf %28, %31 : vector<40x256xf32>
    %c120 = arith.constant 120 : index
    %c0_25 = arith.constant 0 : index
    %33 = vector.load %arg16[%c120, %c0_25] : memref<360x256xf32, #tpu.memory_space<vmem>>, vector<40x256xf32>
    tpu.vector_store %arg16[%c120, %c0_25], %32 {strides = array<i32>} : memref<360x256xf32, #tpu.memory_space<vmem>>, vector<40x256xf32>,
    %c255_i32 = arith.constant 255 : i32
    %34 = tpu.dynamic_rotate %8 by %c255_i32 dim 1 : vector<40x256xf32>, i32 -> vector<40x256xf32>
    %c5 = arith.constant 5 : index
    %c0_26 = arith.constant 0 : index
    %c0_27 = arith.constant 0 : index
    %35 = vector.load %arg6[%c5, %c0_26, %c0_27] : memref<9x1x256xf32, #tpu.memory_space<vmem>>, vector<1x1x256xf32>
    %36 = vector.shape_cast %35 : vector<1x1x256xf32> to vector<1x256xf32>
    %37 = vector.broadcast %36 : vector<1x256xf32> to vector<40x256xf32>
    %38 = arith.mulf %34, %37 : vector<40x256xf32>
    %c200 = arith.constant 200 : index
    %c0_28 = arith.constant 0 : index
    %39 = vector.load %arg16[%c200, %c0_28] : memref<360x256xf32, #tpu.memory_space<vmem>>, vector<40x256xf32>
    tpu.vector_store %arg16[%c200, %c0_28], %38 {strides = array<i32>} : memref<360x256xf32, #tpu.memory_space<vmem>>, vector<40x256xf32>,
    %c241_i32 = arith.constant 241 : i32
    %40 = tpu.dynamic_rotate %8 by %c241_i32 dim 1 : vector<40x256xf32>, i32 -> vector<40x256xf32>
    %c6 = arith.constant 6 : index
    %c0_29 = arith.constant 0 : index
    %c0_30 = arith.constant 0 : index
    %41 = vector.load %arg6[%c6, %c0_29, %c0_30] : memref<9x1x256xf32, #tpu.memory_space<vmem>>, vector<1x1x256xf32>
    %42 = vector.shape_cast %41 : vector<1x1x256xf32> to vector<1x256xf32>
    %43 = vector.broadcast %42 : vector<1x256xf32> to vector<40x256xf32>
    %44 = arith.mulf %40, %43 : vector<40x256xf32>
    %c240 = arith.constant 240 : index
    %c0_31 = arith.constant 0 : index
    %45 = vector.load %arg16[%c240, %c0_31] : memref<360x256xf32, #tpu.memory_space<vmem>>, vector<40x256xf32>
    tpu.vector_store %arg16[%c240, %c0_31], %44 {strides = array<i32>} : memref<360x256xf32, #tpu.memory_space<vmem>>, vector<40x256xf32>,
    %c240_i32 = arith.constant 240 : i32
    %46 = tpu.dynamic_rotate %8 by %c240_i32 dim 1 : vector<40x256xf32>, i32 -> vector<40x256xf32>
    %c7 = arith.constant 7 : index
    %c0_32 = arith.constant 0 : index
    %c0_33 = arith.constant 0 : index
    %47 = vector.load %arg6[%c7, %c0_32, %c0_33] : memref<9x1x256xf32, #tpu.memory_space<vmem>>, vector<1x1x256xf32>
    %48 = vector.shape_cast %47 : vector<1x1x256xf32> to vector<1x256xf32>
    %49 = vector.broadcast %48 : vector<1x256xf32> to vector<40x256xf32>
    %50 = arith.mulf %46, %49 : vector<40x256xf32>
    %c280 = arith.constant 280 : index
    %c0_34 = arith.constant 0 : index
    %51 = vector.load %arg16[%c280, %c0_34] : memref<360x256xf32, #tpu.memory_space<vmem>>, vector<40x256xf32>
    tpu.vector_store %arg16[%c280, %c0_34], %50 {strides = array<i32>} : memref<360x256xf32, #tpu.memory_space<vmem>>, vector<40x256xf32>,
    %c239_i32 = arith.constant 239 : i32
    %52 = tpu.dynamic_rotate %8 by %c239_i32 dim 1 : vector<40x256xf32>, i32 -> vector<40x256xf32>
    %c8 = arith.constant 8 : index
    %c0_35 = arith.constant 0 : index
    %c0_36 = arith.constant 0 : index
    %53 = vector.load %arg6[%c8, %c0_35, %c0_36] : memref<9x1x256xf32, #tpu.memory_space<vmem>>, vector<1x1x256xf32>
    %54 = vector.shape_cast %53 : vector<1x1x256xf32> to vector<1x256xf32>
    %55 = vector.broadcast %54 : vector<1x256xf32> to vector<40x256xf32>
    %56 = arith.mulf %52, %55 : vector<40x256xf32>
    %c320 = arith.constant 320 : index
    %c0_37 = arith.constant 0 : index
    %57 = vector.load %arg16[%c320, %c0_37] : memref<360x256xf32, #tpu.memory_space<vmem>>, vector<40x256xf32>
    tpu.vector_store %arg16[%c320, %c0_37], %56 {strides = array<i32>} : memref<360x256xf32, #tpu.memory_space<vmem>>, vector<40x256xf32>,
    %c0_38 = arith.constant 0 : index
    %c0_39 = arith.constant 0 : index
    %58 = vector.load %arg7[%c0_38, %c0_39] : memref<40x360xf32, #tpu.memory_space<vmem>>, vector<40x360xf32>
    %c0_40 = arith.constant 0 : index
    %c0_41 = arith.constant 0 : index
    %59 = vector.load %arg16[%c0_40, %c0_41] : memref<360x256xf32, #tpu.memory_space<vmem>>, vector<360x256xf32>
    %cst = arith.constant dense<0.000000e+00> : vector<40x256xf32>
    %60 = tpu.matmul %58, %59, %cst {dimension_numbers = #tpu.dot_dimension_numbers<[1], [0], [0], [1], [0, 0, 1, 1], [], []>} : vector<40x360xf32>, vector<360x256xf32>, vector<40x256xf32> -> vector<40x256xf32>
    %61 = arith.mulf %60, %60 : vector<40x256xf32>
    %cst_42 = arith.constant dense<0.000000e+00> : vector<40xf32>
    %62 = vector.multi_reduction <add>, %61, %cst_42 [1] : vector<40x256xf32> to vector<40xf32>
    %63 = vector.shape_cast %62 : vector<40xf32> to vector<40x1xf32>
    %cst_43 = arith.constant 1.000000e-24 : f32
    %64 = vector.broadcast %cst_43 : f32 to vector<40x1xf32>
    %65 = arith.maximumf %63, %64 : vector<40x1xf32>
    %66 = math.rsqrt %65 : vector<40x1xf32>
    %cst_44 = arith.constant 0.158113882 : f32
    %67 = vector.broadcast %cst_44 : f32 to vector<40x1xf32>
    %68 = arith.mulf %66, %67 : vector<40x1xf32>
    %69 = vector.broadcast %68 : vector<40x1xf32> to vector<40x256xf32>
    %70 = arith.mulf %60, %69 : vector<40x256xf32>
    %c0_45 = arith.constant 0 : index
    %c0_46 = arith.constant 0 : index
    %71 = vector.load %arg17[%c0_45, %c0_46] : memref<40x256xf32, #tpu.memory_space<vmem>>, vector<40x256xf32>
    tpu.vector_store %arg17[%c0_45, %c0_46], %70 {strides = array<i32>} : memref<40x256xf32, #tpu.memory_space<vmem>>, vector<40x256xf32>,
    %c0_47 = arith.constant 0 : index
    %c0_48 = arith.constant 0 : index
    %c0_49 = arith.constant 0 : index
    %72 = vector.load %arg5[%c0_47, %c0_48, %c0_49] : memref<1x40x256xf32, #tpu.memory_space<vmem>>, vector<1x40x256xf32>
    %73 = vector.shape_cast %72 : vector<1x40x256xf32> to vector<40x256xf32>
    %c0_50 = arith.constant 0 : index
    %c0_51 = arith.constant 0 : index
    %74 = vector.load %arg8[%c0_50, %c0_51] : memref<80x40xf32, #tpu.memory_space<vmem>>, vector<80x40xf32>
    %cst_52 = arith.constant dense<0.000000e+00> : vector<80x256xf32>
    %75 = tpu.matmul %74, %73, %cst_52 {dimension_numbers = #tpu.dot_dimension_numbers<[1], [0], [0], [1], [0, 0, 1, 1], [], []>} : vector<80x40xf32>, vector<40x256xf32>, vector<80x256xf32> -> vector<80x256xf32>
    %c4 = arith.constant 4 : index
    %c0_53 = arith.constant 0 : index
    %c0_54 = arith.constant 0 : index
    %76 = vector.load %arg9[%c4, %c0_53, %c0_54] : memref<9x80x256xf32, #tpu.memory_space<vmem>>, vector<1x80x256xf32>
    %77 = vector.shape_cast %76 : vector<1x80x256xf32> to vector<80x256xf32>
    %78 = arith.mulf %75, %77 : vector<80x256xf32>
    %c0_55 = arith.constant 0 : index
    %c0_56 = arith.constant 0 : index
    %79 = vector.load %arg18[%c0_55, %c0_56] : memref<80x256xf32, #tpu.memory_space<vmem>>, vector<80x256xf32>
    tpu.vector_store %arg18[%c0_55, %c0_56], %78 {strides = array<i32>} : memref<80x256xf32, #tpu.memory_space<vmem>>, vector<80x256xf32>,
    %c0_57 = arith.constant 0 : index
    %c0_58 = arith.constant 0 : index
    %80 = vector.load %arg18[%c0_57, %c0_58] : memref<80x256xf32, #tpu.memory_space<vmem>>, vector<80x256xf32>
    %c0_59 = arith.constant 0 : index
    %c0_60 = arith.constant 0 : index
    %c0_61 = arith.constant 0 : index
    %81 = vector.load %arg9[%c0_59, %c0_60, %c0_61] : memref<9x80x256xf32, #tpu.memory_space<vmem>>, vector<1x80x256xf32>
    %82 = vector.shape_cast %81 : vector<1x80x256xf32> to vector<80x256xf32>
    %c17_i32_62 = arith.constant 17 : i32
    %83 = tpu.dynamic_rotate %75 by %c17_i32_62 dim 1 : vector<80x256xf32>, i32 -> vector<80x256xf32>
    %84 = arith.mulf %82, %83 : vector<80x256xf32>
    %85 = arith.addf %80, %84 : vector<80x256xf32>
    %c0_63 = arith.constant 0 : index
    %c0_64 = arith.constant 0 : index
    %86 = vector.load %arg18[%c0_63, %c0_64] : memref<80x256xf32, #tpu.memory_space<vmem>>, vector<80x256xf32>
    tpu.vector_store %arg18[%c0_63, %c0_64], %85 {strides = array<i32>} : memref<80x256xf32, #tpu.memory_space<vmem>>, vector<80x256xf32>,
    %c0_65 = arith.constant 0 : index
    %c0_66 = arith.constant 0 : index
    %87 = vector.load %arg18[%c0_65, %c0_66] : memref<80x256xf32, #tpu.memory_space<vmem>>, vector<80x256xf32>
    %c1_67 = arith.constant 1 : index
    %c0_68 = arith.constant 0 : index
    %c0_69 = arith.constant 0 : index
    %88 = vector.load %arg9[%c1_67, %c0_68, %c0_69] : memref<9x80x256xf32, #tpu.memory_space<vmem>>, vector<1x80x256xf32>
    %89 = vector.shape_cast %88 : vector<1x80x256xf32> to vector<80x256xf32>
    %c16_i32_70 = arith.constant 16 : i32
    %90 = tpu.dynamic_rotate %75 by %c16_i32_70 dim 1 : vector<80x256xf32>, i32 -> vector<80x256xf32>
    %91 = arith.mulf %89, %90 : vector<80x256xf32>
    %92 = arith.addf %87, %91 : vector<80x256xf32>
    %c0_71 = arith.constant 0 : index
    %c0_72 = arith.constant 0 : index
    %93 = vector.load %arg18[%c0_71, %c0_72] : memref<80x256xf32, #tpu.memory_space<vmem>>, vector<80x256xf32>
    tpu.vector_store %arg18[%c0_71, %c0_72], %92 {strides = array<i32>} : memref<80x256xf32, #tpu.memory_space<vmem>>, vector<80x256xf32>,
    %c0_73 = arith.constant 0 : index
    %c0_74 = arith.constant 0 : index
    %94 = vector.load %arg18[%c0_73, %c0_74] : memref<80x256xf32, #tpu.memory_space<vmem>>, vector<80x256xf32>
    %c2_75 = arith.constant 2 : index
    %c0_76 = arith.constant 0 : index
    %c0_77 = arith.constant 0 : index
    %95 = vector.load %arg9[%c2_75, %c0_76, %c0_77] : memref<9x80x256xf32, #tpu.memory_space<vmem>>, vector<1x80x256xf32>
    %96 = vector.shape_cast %95 : vector<1x80x256xf32> to vector<80x256xf32>
    %c15_i32_78 = arith.constant 15 : i32
    %97 = tpu.dynamic_rotate %75 by %c15_i32_78 dim 1 : vector<80x256xf32>, i32 -> vector<80x256xf32>
    %98 = arith.mulf %96, %97 : vector<80x256xf32>
    %99 = arith.addf %94, %98 : vector<80x256xf32>
    %c0_79 = arith.constant 0 : index
    %c0_80 = arith.constant 0 : index
    %100 = vector.load %arg18[%c0_79, %c0_80] : memref<80x256xf32, #tpu.memory_space<vmem>>, vector<80x256xf32>
    tpu.vector_store %arg18[%c0_79, %c0_80], %99 {strides = array<i32>} : memref<80x256xf32, #tpu.memory_space<vmem>>, vector<80x256xf32>,
    %c0_81 = arith.constant 0 : index
    %c0_82 = arith.constant 0 : index
    %101 = vector.load %arg18[%c0_81, %c0_82] : memref<80x256xf32, #tpu.memory_space<vmem>>, vector<80x256xf32>
    %c3_83 = arith.constant 3 : index
    %c0_84 = arith.constant 0 : index
    %c0_85 = arith.constant 0 : index
    %102 = vector.load %arg9[%c3_83, %c0_84, %c0_85] : memref<9x80x256xf32, #tpu.memory_space<vmem>>, vector<1x80x256xf32>
    %103 = vector.shape_cast %102 : vector<1x80x256xf32> to vector<80x256xf32>
    %c1_i32_86 = arith.constant 1 : i32
    %104 = tpu.dynamic_rotate %75 by %c1_i32_86 dim 1 : vector<80x256xf32>, i32 -> vector<80x256xf32>
    %105 = arith.mulf %103, %104 : vector<80x256xf32>
    %106 = arith.addf %101, %105 : vector<80x256xf32>
    %c0_87 = arith.constant 0 : index
    %c0_88 = arith.constant 0 : index
    %107 = vector.load %arg18[%c0_87, %c0_88] : memref<80x256xf32, #tpu.memory_space<vmem>>, vector<80x256xf32>
    tpu.vector_store %arg18[%c0_87, %c0_88], %106 {strides = array<i32>} : memref<80x256xf32, #tpu.memory_space<vmem>>, vector<80x256xf32>,
    %c0_89 = arith.constant 0 : index
    %c0_90 = arith.constant 0 : index
    %108 = vector.load %arg18[%c0_89, %c0_90] : memref<80x256xf32, #tpu.memory_space<vmem>>, vector<80x256xf32>
    %c5_91 = arith.constant 5 : index
    %c0_92 = arith.constant 0 : index
    %c0_93 = arith.constant 0 : index
    %109 = vector.load %arg9[%c5_91, %c0_92, %c0_93] : memref<9x80x256xf32, #tpu.memory_space<vmem>>, vector<1x80x256xf32>
    %110 = vector.shape_cast %109 : vector<1x80x256xf32> to vector<80x256xf32>
    %c255_i32_94 = arith.constant 255 : i32
    %111 = tpu.dynamic_rotate %75 by %c255_i32_94 dim 1 : vector<80x256xf32>, i32 -> vector<80x256xf32>
    %112 = arith.mulf %110, %111 : vector<80x256xf32>
    %113 = arith.addf %108, %112 : vector<80x256xf32>
    %c0_95 = arith.constant 0 : index
    %c0_96 = arith.constant 0 : index
    %114 = vector.load %arg18[%c0_95, %c0_96] : memref<80x256xf32, #tpu.memory_space<vmem>>, vector<80x256xf32>
    tpu.vector_store %arg18[%c0_95, %c0_96], %113 {strides = array<i32>} : memref<80x256xf32, #tpu.memory_space<vmem>>, vector<80x256xf32>,
    %c0_97 = arith.constant 0 : index
    %c0_98 = arith.constant 0 : index
    %115 = vector.load %arg18[%c0_97, %c0_98] : memref<80x256xf32, #tpu.memory_space<vmem>>, vector<80x256xf32>
    %c6_99 = arith.constant 6 : index
    %c0_100 = arith.constant 0 : index
    %c0_101 = arith.constant 0 : index
    %116 = vector.load %arg9[%c6_99, %c0_100, %c0_101] : memref<9x80x256xf32, #tpu.memory_space<vmem>>, vector<1x80x256xf32>
    %117 = vector.shape_cast %116 : vector<1x80x256xf32> to vector<80x256xf32>
    %c241_i32_102 = arith.constant 241 : i32
    %118 = tpu.dynamic_rotate %75 by %c241_i32_102 dim 1 : vector<80x256xf32>, i32 -> vector<80x256xf32>
    %119 = arith.mulf %117, %118 : vector<80x256xf32>
    %120 = arith.addf %115, %119 : vector<80x256xf32>
    %c0_103 = arith.constant 0 : index
    %c0_104 = arith.constant 0 : index
    %121 = vector.load %arg18[%c0_103, %c0_104] : memref<80x256xf32, #tpu.memory_space<vmem>>, vector<80x256xf32>
    tpu.vector_store %arg18[%c0_103, %c0_104], %120 {strides = array<i32>} : memref<80x256xf32, #tpu.memory_space<vmem>>, vector<80x256xf32>,
    %c0_105 = arith.constant 0 : index
    %c0_106 = arith.constant 0 : index
    %122 = vector.load %arg18[%c0_105, %c0_106] : memref<80x256xf32, #tpu.memory_space<vmem>>, vector<80x256xf32>
    %c7_107 = arith.constant 7 : index
    %c0_108 = arith.constant 0 : index
    %c0_109 = arith.constant 0 : index
    %123 = vector.load %arg9[%c7_107, %c0_108, %c0_109] : memref<9x80x256xf32, #tpu.memory_space<vmem>>, vector<1x80x256xf32>
    %124 = vector.shape_cast %123 : vector<1x80x256xf32> to vector<80x256xf32>
    %c240_i32_110 = arith.constant 240 : i32
    %125 = tpu.dynamic_rotate %75 by %c240_i32_110 dim 1 : vector<80x256xf32>, i32 -> vector<80x256xf32>
    %126 = arith.mulf %124, %125 : vector<80x256xf32>
    %127 = arith.addf %122, %126 : vector<80x256xf32>
    %c0_111 = arith.constant 0 : index
    %c0_112 = arith.constant 0 : index
    %128 = vector.load %arg18[%c0_111, %c0_112] : memref<80x256xf32, #tpu.memory_space<vmem>>, vector<80x256xf32>
    tpu.vector_store %arg18[%c0_111, %c0_112], %127 {strides = array<i32>} : memref<80x256xf32, #tpu.memory_space<vmem>>, vector<80x256xf32>,
    %c0_113 = arith.constant 0 : index
    %c0_114 = arith.constant 0 : index
    %129 = vector.load %arg18[%c0_113, %c0_114] : memref<80x256xf32, #tpu.memory_space<vmem>>, vector<80x256xf32>
    %c8_115 = arith.constant 8 : index
    %c0_116 = arith.constant 0 : index
    %c0_117 = arith.constant 0 : index
    %130 = vector.load %arg9[%c8_115, %c0_116, %c0_117] : memref<9x80x256xf32, #tpu.memory_space<vmem>>, vector<1x80x256xf32>
    %131 = vector.shape_cast %130 : vector<1x80x256xf32> to vector<80x256xf32>
    %c239_i32_118 = arith.constant 239 : i32
    %132 = tpu.dynamic_rotate %75 by %c239_i32_118 dim 1 : vector<80x256xf32>, i32 -> vector<80x256xf32>
    %133 = arith.mulf %131, %132 : vector<80x256xf32>
    %134 = arith.addf %129, %133 : vector<80x256xf32>
    %c0_119 = arith.constant 0 : index
    %c0_120 = arith.constant 0 : index
    %135 = vector.load %arg18[%c0_119, %c0_120] : memref<80x256xf32, #tpu.memory_space<vmem>>, vector<80x256xf32>
    tpu.vector_store %arg18[%c0_119, %c0_120], %134 {strides = array<i32>} : memref<80x256xf32, #tpu.memory_space<vmem>>, vector<80x256xf32>,
    %c0_121 = arith.constant 0 : index
    %c0_122 = arith.constant 0 : index
    %136 = vector.load %arg18[%c0_121, %c0_122] : memref<80x256xf32, #tpu.memory_space<vmem>>, vector<40x256xf32>
    %137 = arith.mulf %136, %136 : vector<40x256xf32>
    %cst_123 = arith.constant dense<0.000000e+00> : vector<40xf32>
    %138 = vector.multi_reduction <add>, %137, %cst_123 [1] : vector<40x256xf32> to vector<40xf32>
    %139 = vector.shape_cast %138 : vector<40xf32> to vector<40x1xf32>
    %cst_124 = arith.constant 1.000000e-24 : f32
    %140 = vector.broadcast %cst_124 : f32 to vector<40x1xf32>
    %141 = arith.maximumf %139, %140 : vector<40x1xf32>
    %142 = math.rsqrt %141 : vector<40x1xf32>
    %143 = vector.broadcast %142 : vector<40x1xf32> to vector<40x256xf32>
    %144 = arith.mulf %136, %143 : vector<40x256xf32>
    %c0_125 = arith.constant 0 : index
    %c0_126 = arith.constant 0 : index
    %145 = vector.load %arg17[%c0_125, %c0_126] : memref<40x256xf32, #tpu.memory_space<vmem>>, vector<40x256xf32>
    %cst_127 = arith.constant dense<0.000000e+00> : vector<40x40xf32>
    %146 = tpu.matmul %145, %144, %cst_127 {dimension_numbers = #tpu.dot_dimension_numbers<[1], [1], [0], [0], [0, 0, 1, 0], [], []>} : vector<40x256xf32>, vector<40x256xf32>, vector<40x40xf32> -> vector<40x40xf32>
    %c0_128 = arith.constant 0 : index
    %c0_129 = arith.constant 0 : index
    %147 = vector.load %arg10[%c0_128, %c0_129] : memref<40x40xf32, #tpu.memory_space<vmem>>, vector<40x40xf32>
    %cst_130 = arith.constant dense<0.000000e+00> : vector<40x40xf32>
    %148 = tpu.matmul %147, %146, %cst_130 {dimension_numbers = #tpu.dot_dimension_numbers<[1], [0], [0], [1], [0, 0, 1, 1], [], []>} : vector<40x40xf32>, vector<40x40xf32>, vector<40x40xf32> -> vector<40x40xf32>
    %cst_131 = arith.constant dense<0.000000e+00> : vector<40xf32>
    %149 = vector.multi_reduction <add>, %148, %cst_131 [1] : vector<40x40xf32> to vector<40xf32>
    %150 = vector.shape_cast %149 : vector<40xf32> to vector<40x1xf32>
    %151 = vector.broadcast %150 : vector<40x1xf32> to vector<40x40xf32>
    %152 = arith.subf %146, %151 : vector<40x40xf32>
    %153 = arith.mulf %152, %152 : vector<40x40xf32>
    %cst_132 = arith.constant dense<0.000000e+00> : vector<40x40xf32>
    %154 = tpu.matmul %147, %153, %cst_132 {dimension_numbers = #tpu.dot_dimension_numbers<[1], [0], [0], [1], [0, 0, 1, 1], [], []>} : vector<40x40xf32>, vector<40x40xf32>, vector<40x40xf32> -> vector<40x40xf32>
    %cst_133 = arith.constant dense<0.000000e+00> : vector<40xf32>
    %155 = vector.multi_reduction <add>, %154, %cst_133 [1] : vector<40x40xf32> to vector<40xf32>
    %156 = vector.shape_cast %155 : vector<40xf32> to vector<40x1xf32>
    %cst_134 = arith.constant 9.99999974E-6 : f32
    %157 = vector.broadcast %cst_134 : f32 to vector<40x1xf32>
    %158 = arith.addf %156, %157 : vector<40x1xf32>
    %159 = math.rsqrt %158 : vector<40x1xf32>
    %160 = vector.broadcast %159 : vector<40x1xf32> to vector<40x40xf32>
    %161 = arith.mulf %152, %160 : vector<40x40xf32>
    %cst_135 = arith.constant dense<0xFF800000> : vector<40xf32>
    %162 = vector.multi_reduction <maximumf>, %161, %cst_135 [1] : vector<40x40xf32> to vector<40xf32>
    %163 = vector.shape_cast %162 : vector<40xf32> to vector<40x1xf32>
    %164 = vector.broadcast %163 : vector<40x1xf32> to vector<40x40xf32>
    %165 = arith.subf %161, %164 : vector<40x40xf32>
    %166 = math.exp %165 : vector<40x40xf32>
    %cst_136 = arith.constant dense<0.000000e+00> : vector<40xf32>
    %167 = vector.multi_reduction <add>, %166, %cst_136 [1] : vector<40x40xf32> to vector<40xf32>
    %168 = vector.shape_cast %167 : vector<40xf32> to vector<40x1xf32>
    %169 = tpu.reciprocal %168 {approx = true} : vector<40x1xf32> -> vector<40x1xf32>
    %170 = vector.broadcast %169 : vector<40x1xf32> to vector<40x40xf32>
    %171 = arith.mulf %166, %170 : vector<40x40xf32>
    %c40_137 = arith.constant 40 : index
    %c0_138 = arith.constant 0 : index
    %172 = vector.load %arg18[%c40_137, %c0_138] : memref<80x256xf32, #tpu.memory_space<vmem>>, vector<40x256xf32>
    %cst_139 = arith.constant dense<0.000000e+00> : vector<40x256xf32>
    %173 = tpu.matmul %171, %172, %cst_139 {dimension_numbers = #tpu.dot_dimension_numbers<[1], [0], [0], [1], [0, 0, 1, 1], [], []>} : vector<40x40xf32>, vector<40x256xf32>, vector<40x256xf32> -> vector<40x256xf32>
    %c0_140 = arith.constant 0 : index
    %c0_141 = arith.constant 0 : index
    %174 = vector.load %arg11[%c0_140, %c0_141] : memref<40x40xf32, #tpu.memory_space<vmem>>, vector<40x40xf32>
    %cst_142 = arith.constant dense<0.000000e+00> : vector<40x256xf32>
    %175 = tpu.matmul %174, %173, %cst_142 {dimension_numbers = #tpu.dot_dimension_numbers<[1], [0], [0], [1], [0, 0, 1, 1], [], []>} : vector<40x40xf32>, vector<40x256xf32>, vector<40x256xf32> -> vector<40x256xf32>
    %176 = vector.extract_strided_slice %175 {offsets = [0, 0], sizes = [4, 256], strides = [1, 1]} : vector<40x256xf32> to vector<4x256xf32>
    %c0_143 = arith.constant 0 : index
    %c0_144 = arith.constant 0 : index
    %c0_145 = arith.constant 0 : index
    %177 = vector.load %arg12[%c0_143, %c0_144, %c0_145] : memref<1x4x256xf32, #tpu.memory_space<vmem>>, vector<1x4x256xf32>
    %178 = vector.shape_cast %177 : vector<1x4x256xf32> to vector<4x256xf32>
    %179 = vector.shape_cast %176 : vector<4x256xf32> to vector<1x4x256xf32>
    tpu.vector_store %arg12[%c0_143, %c0_144, %c0_145], %179 {strides = array<i32>} : memref<1x4x256xf32, #tpu.memory_space<vmem>>, vector<1x4x256xf32>,
    %180 = vector.extract_strided_slice %175 {offsets = [4, 0], sizes = [8, 256], strides = [1, 1]} : vector<40x256xf32> to vector<8x256xf32>
    %c0_146 = arith.constant 0 : index
    %c0_147 = arith.constant 0 : index
    %c0_148 = arith.constant 0 : index
    %181 = vector.load %arg13[%c0_146, %c0_147, %c0_148] : memref<1x8x256xf32, #tpu.memory_space<vmem>>, vector<1x8x256xf32>
    %182 = vector.shape_cast %181 : vector<1x8x256xf32> to vector<8x256xf32>
    %183 = vector.shape_cast %180 : vector<8x256xf32> to vector<1x8x256xf32>
    tpu.vector_store %arg13[%c0_146, %c0_147, %c0_148], %183 {strides = array<i32>} : memref<1x8x256xf32, #tpu.memory_space<vmem>>, vector<1x8x256xf32>,
    %184 = vector.extract_strided_slice %175 {offsets = [12, 0], sizes = [12, 256], strides = [1, 1]} : vector<40x256xf32> to vector<12x256xf32>
    %c0_149 = arith.constant 0 : index
    %c0_150 = arith.constant 0 : index
    %c0_151 = arith.constant 0 : index
    %185 = vector.load %arg14[%c0_149, %c0_150, %c0_151] : memref<1x12x256xf32, #tpu.memory_space<vmem>>, vector<1x12x256xf32>
    %186 = vector.shape_cast %185 : vector<1x12x256xf32> to vector<12x256xf32>
    %187 = vector.shape_cast %184 : vector<12x256xf32> to vector<1x12x256xf32>
    tpu.vector_store %arg14[%c0_149, %c0_150, %c0_151], %187 {strides = array<i32>} : memref<1x12x256xf32, #tpu.memory_space<vmem>>, vector<1x12x256xf32>,
    %188 = vector.extract_strided_slice %175 {offsets = [24, 0], sizes = [16, 256], strides = [1, 1]} : vector<40x256xf32> to vector<16x256xf32>
    %c0_152 = arith.constant 0 : index
    %c0_153 = arith.constant 0 : index
    %c0_154 = arith.constant 0 : index
    %189 = vector.load %arg15[%c0_152, %c0_153, %c0_154] : memref<1x16x256xf32, #tpu.memory_space<vmem>>, vector<1x16x256xf32>
    %190 = vector.shape_cast %189 : vector<1x16x256xf32> to vector<16x256xf32>
    %191 = vector.shape_cast %188 : vector<16x256xf32> to vector<1x16x256xf32>
    tpu.vector_store %arg15[%c0_152, %c0_153, %c0_154], %191 {strides = array<i32>} : memref<1x16x256xf32, #tpu.memory_space<vmem>>, vector<1x16x256xf32>,
    return
  }
  func.func @transform_0(%arg0: i32) -> (i32, i32, i32) {
    %c0_i32 = arith.constant 0 : i32
    %c0_i32_0 = arith.constant 0 : i32
    %c0_i32_1 = arith.constant 0 : i32
    return %arg0, %c0_i32, %c0_i32_0 : i32, i32, i32
  }
  func.func @transform_1(%arg0: i32) -> (i32, i32, i32) {
    %c0_i32 = arith.constant 0 : i32
    %c0_i32_0 = arith.constant 0 : i32
    %c0_i32_1 = arith.constant 0 : i32
    return %arg0, %c0_i32, %c0_i32_0 : i32, i32, i32
  }
  func.func @transform_2(%arg0: i32) -> (i32, i32, i32) {
    %c0_i32 = arith.constant 0 : i32
    %c0_i32_0 = arith.constant 0 : i32
    %c0_i32_1 = arith.constant 0 : i32
    return %arg0, %c0_i32, %c0_i32_0 : i32, i32, i32
  }
  func.func @transform_3(%arg0: i32) -> (i32, i32, i32) {
    %c0_i32 = arith.constant 0 : i32
    %c0_i32_0 = arith.constant 0 : i32
    %c0_i32_1 = arith.constant 0 : i32
    return %arg0, %c0_i32, %c0_i32_0 : i32, i32, i32
  }
  func.func @transform_4(%arg0: i32) -> (i32, i32, i32) {
    %c0_i32 = arith.constant 0 : i32
    %c0_i32_0 = arith.constant 0 : i32
    %c0_i32_1 = arith.constant 0 : i32
    return %arg0, %c0_i32, %c0_i32_0 : i32, i32, i32
  }
  func.func @transform_5(%arg0: i32) -> (i32, i32, i32) {
    %c0_i32 = arith.constant 0 : i32
    %c0_i32_0 = arith.constant 0 : i32
    %c0_i32_1 = arith.constant 0 : i32
    %c0_i32_2 = arith.constant 0 : i32
    return %c0_i32, %c0_i32_0, %c0_i32_1 : i32, i32, i32
  }
  func.func @transform_6(%arg0: i32) -> (i32, i32) {
    %c0_i32 = arith.constant 0 : i32
    %c0_i32_0 = arith.constant 0 : i32
    %c0_i32_1 = arith.constant 0 : i32
    return %c0_i32, %c0_i32_0 : i32, i32
  }
  func.func @transform_7(%arg0: i32) -> (i32, i32) {
    %c0_i32 = arith.constant 0 : i32
    %c0_i32_0 = arith.constant 0 : i32
    %c0_i32_1 = arith.constant 0 : i32
    return %c0_i32, %c0_i32_0 : i32, i32
  }
  func.func @transform_8(%arg0: i32) -> (i32, i32, i32) {
    %c0_i32 = arith.constant 0 : i32
    %c0_i32_0 = arith.constant 0 : i32
    %c0_i32_1 = arith.constant 0 : i32
    %c0_i32_2 = arith.constant 0 : i32
    return %c0_i32, %c0_i32_0, %c0_i32_1 : i32, i32, i32
  }
  func.func @transform_9(%arg0: i32) -> (i32, i32) {
    %c0_i32 = arith.constant 0 : i32
    %c0_i32_0 = arith.constant 0 : i32
    %c0_i32_1 = arith.constant 0 : i32
    return %c0_i32, %c0_i32_0 : i32, i32
  }
  func.func @transform_10(%arg0: i32) -> (i32, i32) {
    %c0_i32 = arith.constant 0 : i32
    %c0_i32_0 = arith.constant 0 : i32
    %c0_i32_1 = arith.constant 0 : i32
    return %c0_i32, %c0_i32_0 : i32, i32
  }
  func.func @transform_11(%arg0: i32) -> (i32, i32, i32) {
    %c0_i32 = arith.constant 0 : i32
    %c0_i32_0 = arith.constant 0 : i32
    %c0_i32_1 = arith.constant 0 : i32
    return %arg0, %c0_i32, %c0_i32_0 : i32, i32, i32
  }
  func.func @transform_12(%arg0: i32) -> (i32, i32, i32) {
    %c0_i32 = arith.constant 0 : i32
    %c0_i32_0 = arith.constant 0 : i32
    %c0_i32_1 = arith.constant 0 : i32
    return %arg0, %c0_i32, %c0_i32_0 : i32, i32, i32
  }
  func.func @transform_13(%arg0: i32) -> (i32, i32, i32) {
    %c0_i32 = arith.constant 0 : i32
    %c0_i32_0 = arith.constant 0 : i32
    %c0_i32_1 = arith.constant 0 : i32
    return %arg0, %c0_i32, %c0_i32_0 : i32, i32, i32
  }
  func.func @transform_14(%arg0: i32) -> (i32, i32, i32) {
    %c0_i32 = arith.constant 0 : i32
    %c0_i32_0 = arith.constant 0 : i32
    %c0_i32_1 = arith.constant 0 : i32
    return %arg0, %c0_i32, %c0_i32_0 : i32, i32, i32
  }
}

</mosaic_0001>

<llo_original>
// kernel: attention_org_forward.1
$region0: #{attention_org_forward.1}
  #allocation0 [shape = 'u32[]', space=smem, size = 0x4, offset = 0x4, fixed_abs, tag = 'smem constant byte address 0x4 - core index']
  #allocation1 [shape = 'u32[144,128]{1,0:T(1,128)}', space=vmem, size = 0x12000, scoped, tag = 'internal scratch']
  #allocation2 [shape = 'f32[360,256]{1,0:T(8,128)}', space=vmem, size = 0x5a000, scoped, tag = 'scratch operand']
  #allocation3 [shape = 'f32[40,256]{1,0:T(8,128)}', space=vmem, size = 0xa000, scoped, tag = 'scratch operand']
  #allocation4 [shape = 'f32[80,256]{1,0:T(8,128)}', space=vmem, size = 0x14000, scoped, tag = 'scratch operand']
  %s0 = inlined_call_operand.vmem [shape: f32[2,4,256], index: 0, kind: input, shape index: {}]
  %s1 = inlined_call_operand.vmem [shape: f32[2,8,256], index: 1, kind: input, shape index: {}]
  %s2 = inlined_call_operand.vmem [shape: f32[2,12,256], index: 2, kind: input, shape index: {}]
  %s3 = inlined_call_operand.vmem [shape: f32[2,16,256], index: 3, kind: input, shape index: {}]
  %s4 = inlined_call_operand.vmem [shape: f32[2,40,256], index: 4, kind: input, shape index: {}]
  %s5 = inlined_call_operand.vmem [shape: f32[9,1,256], index: 5, kind: input, shape index: {}]
  %s6 = inlined_call_operand.vmem [shape: f32[40,360], index: 6, kind: input, shape index: {}]
  %s7 = inlined_call_operand.vmem [shape: f32[80,40], index: 7, kind: input, shape index: {}]
  %s8 = inlined_call_operand.vmem [shape: f32[9,80,256], index: 8, kind: input, shape index: {}]
  %s9 = inlined_call_operand.vmem [shape: f32[40,40], index: 9, kind: input, shape index: {}]
  %s10 = inlined_call_operand.vmem [shape: f32[40,40], index: 10, kind: input, shape index: {}]
  %s11 = inlined_call_operand.vmem [shape: f32[2,4,256], index: 11, kind: output, shape index: {0}]
  %s12 = inlined_call_operand.vmem [shape: f32[2,8,256], index: 12, kind: output, shape index: {1}]
  %s13 = inlined_call_operand.vmem [shape: f32[2,12,256], index: 13, kind: output, shape index: {2}]
  %s14 = inlined_call_operand.vmem [shape: f32[2,16,256], index: 14, kind: output, shape index: {3}]
  %15 = xla_tuple %s11, %s12, %s13, %s14
  %s16 = sld [smem:[#allocation0]]
  $region101: #{attention_org_forward.1} parent=0
    _
  %s18 = ssub.s32 1, %s16
  %s19 = scalar_select 0, %s18, %s16
  loop: start=0, step=1, limit=4
  $region2: #{attention_org_forward.1} parent=0 // loop_pre_header
    _
  $region3: #{attention_org_forward.1} parent=0 // loop_header
    %s21 = sphi 0, %s25
    %p22 = scmp.ge.s32.totalorder %s21, 4
    %s31 = sphi 0, %s33
    %s34 = sphi 0, %s31
    %s35 = sphi 0, %s34
    %s51 = sphi 0, %s35
    %s57 = sphi 0, %s59
    %s60 = sphi 0, %s57
    %s61 = sphi 0, %s60
    %s77 = sphi 0, %s61
    %s83 = sphi 0, %s85
    %s86 = sphi 0, %s83
    %s87 = sphi 0, %s86
    %s103 = sphi 0, %s87
    %s109 = sphi 0, %s111
    %s112 = sphi 0, %s109
    %s113 = sphi 0, %s112
    %s129 = sphi 0, %s113
    %s135 = sphi 0, %s137
    %s138 = sphi 0, %s135
    %s139 = sphi 0, %s138
    %s155 = sphi 0, %s139
    %s159 = sphi 0, %s159
    %s161 = sphi 0, %s159
    %s162 = sphi 0, %s161
    %s176 = sphi 0, %s162
    %s180 = sphi 0, %s180
    %s182 = sphi 0, %s180
    %s183 = sphi 0, %s182
    %s197 = sphi 0, %s183
    %s201 = sphi 0, %s201
    %s203 = sphi 0, %s201
    %s204 = sphi 0, %s203
    %s218 = sphi 0, %s204
    %s222 = sphi 0, %s222
    %s224 = sphi 0, %s222
    %s225 = sphi 0, %s224
    %s239 = sphi 0, %s225
    %s243 = sphi 0, %s243
    %s245 = sphi 0, %s243
    %s246 = sphi 0, %s245
    %s260 = sphi 0, %s246
    %s264 = sphi 0, %s264
    %s266 = sphi 0, %s264
    %s267 = sphi 0, %s266
    %s281 = sphi 0, %s267
    %s287 = sphi 0, %s289
    %s290 = sphi 0, %s287
    %s291 = sphi 0, %s290
    %s307 = sphi 0, %s291
    %s313 = sphi 0, %s315
    %s316 = sphi 0, %s313
    %s317 = sphi 0, %s316
    %s333 = sphi 0, %s317
    %s339 = sphi 0, %s341
    %s342 = sphi 0, %s339
    %s343 = sphi 0, %s342
    %s359 = sphi 0, %s343
    %s365 = sphi 0, %s367
    %s368 = sphi 0, %s365
    %s369 = sphi 0, %s368
    %s385 = sphi 0, %s369
  $region4: #{attention_org_forward.1} parent=0 // loop_header_branch
    %24 = sbr.rel (%p22) target = $region8
  $region5: #{attention_org_forward.1} parent=0 // loop_body
    %s26 = ssub.s32 %s21, 1
    %s27 = ssub.s32 %s21, 2
    %s28 = sadd.s32 %s21, 1
    %s29 = ssub.s32 %s21, %s28
    %p30 = scmp.eq.s32.totalorder %s29, 0
    %s32 = sadd.s32 %s31, 1
    %s33 = scalar_select %p30, %s31, %s32
    %p36 = pneg %p30
    %p37 = scmp.eq.s32.totalorder %s21, 1
    %p38 = por %p36, %p37
    %p39 = scmp.ne.s32.totalorder %s31, %s34
    %p40 = scmp.eq.s32.totalorder %s21, 0
    %p41 = por %p39, %p40
    %p42 = scmp.ne.s32.totalorder %s31, %s34
    %p43 = scmp.eq.s32.totalorder %s26, 1
    %p44 = por %p42, %p43
    %p45 = scmp.ne.s32.totalorder %s34, %s35
    %p46 = scmp.eq.s32.totalorder %s26, 0
    %p47 = por %p45, %p46
    %p48 = scmp.ne.s32.totalorder %s34, %s35
    %p49 = scmp.eq.s32.totalorder %s27, 1
    %p50 = por %p48, %p49
    %p52 = scmp.ne.s32.totalorder %s35, %s51
    %p53 = scmp.eq.s32.totalorder %s27, 0
    %p54 = por %p52, %p53
    %s55 = ssub.s32 %s21, %s28
    %p56 = scmp.eq.s32.totalorder %s55, 0
    %s58 = sadd.s32 %s57, 1
    %s59 = scalar_select %p56, %s57, %s58
    %p62 = pneg %p56
    %p63 = scmp.eq.s32.totalorder %s21, 1
    %p64 = por %p62, %p63
    %p65 = scmp.ne.s32.totalorder %s57, %s60
    %p66 = scmp.eq.s32.totalorder %s21, 0
    %p67 = por %p65, %p66
    %p68 = scmp.ne.s32.totalorder %s57, %s60
    %p69 = scmp.eq.s32.totalorder %s26, 1
    %p70 = por %p68, %p69
    %p71 = scmp.ne.s32.totalorder %s60, %s61
    %p72 = scmp.eq.s32.totalorder %s26, 0
    %p73 = por %p71, %p72
    %p74 = scmp.ne.s32.totalorder %s60, %s61
    %p75 = scmp.eq.s32.totalorder %s27, 1
    %p76 = por %p74, %p75
    %p78 = scmp.ne.s32.totalorder %s61, %s77
    %p79 = scmp.eq.s32.totalorder %s27, 0
    %p80 = por %p78, %p79
    %s81 = ssub.s32 %s21, %s28
    %p82 = scmp.eq.s32.totalorder %s81, 0
    %s84 = sadd.s32 %s83, 1
    %s85 = scalar_select %p82, %s83, %s84
    %p88 = pneg %p82
    %p89 = scmp.eq.s32.totalorder %s21, 1
    %p90 = por %p88, %p89
    %p91 = scmp.ne.s32.totalorder %s83, %s86
    %p92 = scmp.eq.s32.totalorder %s21, 0
    %p93 = por %p91, %p92
    %p94 = scmp.ne.s32.totalorder %s83, %s86
    %p95 = scmp.eq.s32.totalorder %s26, 1
    %p96 = por %p94, %p95
    %p97 = scmp.ne.s32.totalorder %s86, %s87
    %p98 = scmp.eq.s32.totalorder %s26, 0
    %p99 = por %p97, %p98
    %p100 = scmp.ne.s32.totalorder %s86, %s87
    %p101 = scmp.eq.s32.totalorder %s27, 1
    %p102 = por %p100, %p101
    %p104 = scmp.ne.s32.totalorder %s87, %s103
    %p105 = scmp.eq.s32.totalorder %s27, 0
    %p106 = por %p104, %p105
    %s107 = ssub.s32 %s21, %s28
    %p108 = scmp.eq.s32.totalorder %s107, 0
    %s110 = sadd.s32 %s109, 1
    %s111 = scalar_select %p108, %s109, %s110
    %p114 = pneg %p108
    %p115 = scmp.eq.s32.totalorder %s21, 1
    %p116 = por %p114, %p115
    %p117 = scmp.ne.s32.totalorder %s109, %s112
    %p118 = scmp.eq.s32.totalorder %s21, 0
    %p119 = por %p117, %p118
    %p120 = scmp.ne.s32.totalorder %s109, %s112
    %p121 = scmp.eq.s32.totalorder %s26, 1
    %p122 = por %p120, %p121
    %p123 = scmp.ne.s32.totalorder %s112, %s113
    %p124 = scmp.eq.s32.totalorder %s26, 0
    %p125 = por %p123, %p124
    %p126 = scmp.ne.s32.totalorder %s112, %s113
    %p127 = scmp.eq.s32.totalorder %s27, 1
    %p128 = por %p126, %p127
    %p130 = scmp.ne.s32.totalorder %s113, %s129
    %p131 = scmp.eq.s32.totalorder %s27, 0
    %p132 = por %p130, %p131
    %s133 = ssub.s32 %s21, %s28
    %p134 = scmp.eq.s32.totalorder %s133, 0
    %s136 = sadd.s32 %s135, 1
    %s137 = scalar_select %p134, %s135, %s136
    %p140 = pneg %p134
    %p141 = scmp.eq.s32.totalorder %s21, 1
    %p142 = por %p140, %p141
    %p143 = scmp.ne.s32.totalorder %s135, %s138
    %p144 = scmp.eq.s32.totalorder %s21, 0
    %p145 = por %p143, %p144
    %p146 = scmp.ne.s32.totalorder %s135, %s138
    %p147 = scmp.eq.s32.totalorder %s26, 1
    %p148 = por %p146, %p147
    %p149 = scmp.ne.s32.totalorder %s138, %s139
    %p150 = scmp.eq.s32.totalorder %s26, 0
    %p151 = por %p149, %p150
    %p152 = scmp.ne.s32.totalorder %s138, %s139
    %p153 = scmp.eq.s32.totalorder %s27, 1
    %p154 = por %p152, %p153
    %p156 = scmp.ne.s32.totalorder %s139, %s155
    %p157 = scmp.eq.s32.totalorder %s27, 0
    %p158 = por %p156, %p157
    %s160 = sadd.s32 %s159, 1
    %p163 = scmp.eq.s32.totalorder %s21, 1
    %p164 = scmp.ne.s32.totalorder %s159, %s161
    %p165 = scmp.eq.s32.totalorder %s21, 0
    %p166 = por %p164, %p165
    %p167 = scmp.ne.s32.totalorder %s159, %s161
    %p168 = scmp.eq.s32.totalorder %s26, 1
    %p169 = por %p167, %p168
    %p170 = scmp.ne.s32.totalorder %s161, %s162
    %p171 = scmp.eq.s32.totalorder %s26, 0
    %p172 = por %p170, %p171
    %p173 = scmp.ne.s32.totalorder %s161, %s162
    %p174 = scmp.eq.s32.totalorder %s27, 1
    %p175 = por %p173, %p174
    %p177 = scmp.ne.s32.totalorder %s162, %s176
    %p178 = scmp.eq.s32.totalorder %s27, 0
    %p179 = por %p177, %p178
    %s181 = sadd.s32 %s180, 1
    %p184 = scmp.eq.s32.totalorder %s21, 1
    %p185 = scmp.ne.s32.totalorder %s180, %s182
    %p186 = scmp.eq.s32.totalorder %s21, 0
    %p187 = por %p185, %p186
    %p188 = scmp.ne.s32.totalorder %s180, %s182
    %p189 = scmp.eq.s32.totalorder %s26, 1
    %p190 = por %p188, %p189
    %p191 = scmp.ne.s32.totalorder %s182, %s183
    %p192 = scmp.eq.s32.totalorder %s26, 0
    %p193 = por %p191, %p192
    %p194 = scmp.ne.s32.totalorder %s182, %s183
    %p195 = scmp.eq.s32.totalorder %s27, 1
    %p196 = por %p194, %p195
    %p198 = scmp.ne.s32.totalorder %s183, %s197
    %p199 = scmp.eq.s32.totalorder %s27, 0
    %p200 = por %p198, %p199
    %s202 = sadd.s32 %s201, 1
    %p205 = scmp.eq.s32.totalorder %s21, 1
    %p206 = scmp.ne.s32.totalorder %s201, %s203
    %p207 = scmp.eq.s32.totalorder %s21, 0
    %p208 = por %p206, %p207
    %p209 = scmp.ne.s32.totalorder %s201, %s203
    %p210 = scmp.eq.s32.totalorder %s26, 1
    %p211 = por %p209, %p210
    %p212 = scmp.ne.s32.totalorder %s203, %s204
    %p213 = scmp.eq.s32.totalorder %s26, 0
    %p214 = por %p212, %p213
    %p215 = scmp.ne.s32.totalorder %s203, %s204
    %p216 = scmp.eq.s32.totalorder %s27, 1
    %p217 = por %p215, %p216
    %p219 = scmp.ne.s32.totalorder %s204, %s218
    %p220 = scmp.eq.s32.totalorder %s27, 0
    %p221 = por %p219, %p220
    %s223 = sadd.s32 %s222, 1
    %p226 = scmp.eq.s32.totalorder %s21, 1
    %p227 = scmp.ne.s32.totalorder %s222, %s224
    %p228 = scmp.eq.s32.totalorder %s21, 0
    %p229 = por %p227, %p228
    %p230 = scmp.ne.s32.totalorder %s222, %s224
    %p231 = scmp.eq.s32.totalorder %s26, 1
    %p232 = por %p230, %p231
    %p233 = scmp.ne.s32.totalorder %s224, %s225
    %p234 = scmp.eq.s32.totalorder %s26, 0
    %p235 = por %p233, %p234
    %p236 = scmp.ne.s32.totalorder %s224, %s225
    %p237 = scmp.eq.s32.totalorder %s27, 1
    %p238 = por %p236, %p237
    %p240 = scmp.ne.s32.totalorder %s225, %s239
    %p241 = scmp.eq.s32.totalorder %s27, 0
    %p242 = por %p240, %p241
    %s244 = sadd.s32 %s243, 1
    %p247 = scmp.eq.s32.totalorder %s21, 1
    %p248 = scmp.ne.s32.totalorder %s243, %s245
    %p249 = scmp.eq.s32.totalorder %s21, 0
    %p250 = por %p248, %p249
    %p251 = scmp.ne.s32.totalorder %s243, %s245
    %p252 = scmp.eq.s32.totalorder %s26, 1
    %p253 = por %p251, %p252
    %p254 = scmp.ne.s32.totalorder %s245, %s246
    %p255 = scmp.eq.s32.totalorder %s26, 0
    %p256 = por %p254, %p255
    %p257 = scmp.ne.s32.totalorder %s245, %s246
    %p258 = scmp.eq.s32.totalorder %s27, 1
    %p259 = por %p257, %p258
    %p261 = scmp.ne.s32.totalorder %s246, %s260
    %p262 = scmp.eq.s32.totalorder %s27, 0
    %p263 = por %p261, %p262
    %s265 = sadd.s32 %s264, 1
    %p268 = scmp.eq.s32.totalorder %s21, 1
    %p269 = scmp.ne.s32.totalorder %s264, %s266
    %p270 = scmp.eq.s32.totalorder %s21, 0
    %p271 = por %p269, %p270
    %p272 = scmp.ne.s32.totalorder %s264, %s266
    %p273 = scmp.eq.s32.totalorder %s26, 1
    %p274 = por %p272, %p273
    %p275 = scmp.ne.s32.totalorder %s266, %s267
    %p276 = scmp.eq.s32.totalorder %s26, 0
    %p277 = por %p275, %p276
    %p278 = scmp.ne.s32.totalorder %s266, %s267
    %p279 = scmp.eq.s32.totalorder %s27, 1
    %p280 = por %p278, %p279
    %p282 = scmp.ne.s32.totalorder %s267, %s281
    %p283 = scmp.eq.s32.totalorder %s27, 0
    %p284 = por %p282, %p283
    %s285 = ssub.s32 %s21, %s28
    %p286 = scmp.eq.s32.totalorder %s285, 0
    %s288 = sadd.s32 %s287, 1
    %s289 = scalar_select %p286, %s287, %s288
    %p292 = pneg %p286
    %p293 = scmp.eq.s32.totalorder %s21, 1
    %p294 = por %p292, %p293
    %p295 = scmp.ne.s32.totalorder %s287, %s290
    %p296 = scmp.eq.s32.totalorder %s21, 0
    %p297 = por %p295, %p296
    %p298 = scmp.ne.s32.totalorder %s287, %s290
    %p299 = scmp.eq.s32.totalorder %s26, 1
    %p300 = por %p298, %p299
    %p301 = scmp.ne.s32.totalorder %s290, %s291
    %p302 = scmp.eq.s32.totalorder %s26, 0
    %p303 = por %p301, %p302
    %p304 = scmp.ne.s32.totalorder %s290, %s291
    %p305 = scmp.eq.s32.totalorder %s27, 1
    %p306 = por %p304, %p305
    %p308 = scmp.ne.s32.totalorder %s291, %s307
    %p309 = scmp.eq.s32.totalorder %s27, 0
    %p310 = por %p308, %p309
    %s311 = ssub.s32 %s21, %s28
    %p312 = scmp.eq.s32.totalorder %s311, 0
    %s314 = sadd.s32 %s313, 1
    %s315 = scalar_select %p312, %s313, %s314
    %p318 = pneg %p312
    %p319 = scmp.eq.s32.totalorder %s21, 1
    %p320 = por %p318, %p319
    %p321 = scmp.ne.s32.totalorder %s313, %s316
    %p322 = scmp.eq.s32.totalorder %s21, 0
    %p323 = por %p321, %p322
    %p324 = scmp.ne.s32.totalorder %s313, %s316
    %p325 = scmp.eq.s32.totalorder %s26, 1
    %p326 = por %p324, %p325
    %p327 = scmp.ne.s32.totalorder %s316, %s317
    %p328 = scmp.eq.s32.totalorder %s26, 0
    %p329 = por %p327, %p328
    %p330 = scmp.ne.s32.totalorder %s316, %s317
    %p331 = scmp.eq.s32.totalorder %s27, 1
    %p332 = por %p330, %p331
    %p334 = scmp.ne.s32.totalorder %s317, %s333
    %p335 = scmp.eq.s32.totalorder %s27, 0
    %p336 = por %p334, %p335
    %s337 = ssub.s32 %s21, %s28
    %p338 = scmp.eq.s32.totalorder %s337, 0
    %s340 = sadd.s32 %s339, 1
    %s341 = scalar_select %p338, %s339, %s340
    %p344 = pneg %p338
    %p345 = scmp.eq.s32.totalorder %s21, 1
    %p346 = por %p344, %p345
    %p347 = scmp.ne.s32.totalorder %s339, %s342
    %p348 = scmp.eq.s32.totalorder %s21, 0
    %p349 = por %p347, %p348
    %p350 = scmp.ne.s32.totalorder %s339, %s342
    %p351 = scmp.eq.s32.totalorder %s26, 1
    %p352 = por %p350, %p351
    %p353 = scmp.ne.s32.totalorder %s342, %s343
    %p354 = scmp.eq.s32.totalorder %s26, 0
    %p355 = por %p353, %p354
    %p356 = scmp.ne.s32.totalorder %s342, %s343
    %p357 = scmp.eq.s32.totalorder %s27, 1
    %p358 = por %p356, %p357
    %p360 = scmp.ne.s32.totalorder %s343, %s359
    %p361 = scmp.eq.s32.totalorder %s27, 0
    %p362 = por %p360, %p361
    %s363 = ssub.s32 %s21, %s28
    %p364 = scmp.eq.s32.totalorder %s363, 0
    %s366 = sadd.s32 %s365, 1
    %s367 = scalar_select %p364, %s365, %s366
    %p370 = pneg %p364
    %p371 = scmp.eq.s32.totalorder %s21, 1
    %p372 = por %p370, %p371
    %p373 = scmp.ne.s32.totalorder %s365, %s368
    %p374 = scmp.eq.s32.totalorder %s21, 0
    %p375 = por %p373, %p374
    %p376 = scmp.ne.s32.totalorder %s365, %s368
    %p377 = scmp.eq.s32.totalorder %s26, 1
    %p378 = por %p376, %p377
    %p379 = scmp.ne.s32.totalorder %s368, %s369
    %p380 = scmp.eq.s32.totalorder %s26, 0
    %p381 = por %p379, %p380
    %p382 = scmp.ne.s32.totalorder %s368, %s369
    %p383 = scmp.eq.s32.totalorder %s27, 1
    %p384 = por %p382, %p383
    %p386 = scmp.ne.s32.totalorder %s369, %s385
    %p387 = scmp.eq.s32.totalorder %s27, 0
    %p388 = por %p386, %p387
    %p389 = scmp.le.s32.totalorder 1, %s21
    %p390 = scmp.lt.s32.totalorder %s21, 3
    %p391 = pnand %p389, %p390
    %p392 = pneg %p391
    // Predicated region
    $region9: #{attention_org_forward.1} parent=5 // pred_check
      _
    $region10: #{attention_org_forward.1} parent=5 // pred_check_branch
      %394 = sbr.rel (%p391) target = $region12
    $region11: #{attention_org_forward.1} parent=5 // pred_region
      %s395 = ssub.s32 %s21, 1
      // Predicated region
      $region13: #{attention_org_forward.1} parent=11 // pred_check
        %p396 = pneg %p172
      $region14: #{attention_org_forward.1} parent=11 // pred_check_branch
        %398 = sbr.rel (%p396) target = $region16
      $region15: #{attention_org_forward.1} parent=11 // pred_region
        _
      $region16: #{attention_org_forward.1} parent=11 // pred_fallthru
        _
      // Predicated region
      $region17: #{attention_org_forward.1} parent=11 // pred_check
        %p399 = pneg %p193
      $region18: #{attention_org_forward.1} parent=11 // pred_check_branch
        %401 = sbr.rel (%p399) target = $region20
      $region19: #{attention_org_forward.1} parent=11 // pred_region
        _
      $region20: #{attention_org_forward.1} parent=11 // pred_fallthru
        _
      // Predicated region
      $region21: #{attention_org_forward.1} parent=11 // pred_check
        %p402 = pneg %p214
      $region22: #{attention_org_forward.1} parent=11 // pred_check_branch
        %404 = sbr.rel (%p402) target = $region24
      $region23: #{attention_org_forward.1} parent=11 // pred_region
        _
      $region24: #{attention_org_forward.1} parent=11 // pred_fallthru
        _
      // Predicated region
      $region25: #{attention_org_forward.1} parent=11 // pred_check
        %p405 = pneg %p235
      $region26: #{attention_org_forward.1} parent=11 // pred_check_branch
        %407 = sbr.rel (%p405) target = $region28
      $region27: #{attention_org_forward.1} parent=11 // pred_region
        _
      $region28: #{attention_org_forward.1} parent=11 // pred_fallthru
        _
      // Predicated region
      $region29: #{attention_org_forward.1} parent=11 // pred_check
        %p408 = pneg %p256
      $region30: #{attention_org_forward.1} parent=11 // pred_check_branch
        %410 = sbr.rel (%p408) target = $region32
      $region31: #{attention_org_forward.1} parent=11 // pred_region
        _
      $region32: #{attention_org_forward.1} parent=11 // pred_fallthru
        _
      // Predicated region
      $region33: #{attention_org_forward.1} parent=11 // pred_check
        %p411 = pneg %p277
      $region34: #{attention_org_forward.1} parent=11 // pred_check_branch
        %413 = sbr.rel (%p411) target = $region36
      $region35: #{attention_org_forward.1} parent=11 // pred_region
        _
      $region36: #{attention_org_forward.1} parent=11 // pred_fallthru
        _
    $region12: #{attention_org_forward.1} parent=5 // pred_fallthru
      _
    %p414 = scmp.lt.s32.totalorder %s21, 2
    // Predicated region
    $region37: #{attention_org_forward.1} parent=5 // pred_check
      %p415 = pneg %p414
    $region38: #{attention_org_forward.1} parent=5 // pred_check_branch
      %417 = sbr.rel (%p415) target = $region40
    $region39: #{attention_org_forward.1} parent=5 // pred_region
      // Predicated region
      $region41: #{attention_org_forward.1} parent=39 // pred_check
        %p418 = pneg %p41
      $region42: #{attention_org_forward.1} parent=39 // pred_check_branch
        %420 = sbr.rel (%p418) target = $region44
      $region43: #{attention_org_forward.1} parent=39 // pred_region
        %p421 = scmp.lt.s32.totalorder %s21, 1
        %s422 = scalar_select %p421, %s21, 1
        %s423 = smul.addr %s422, 2
        %s424 = smul.addr %s423, 4
        %s425 = scalar_lea.vmem %s0, %s424
      $region44: #{attention_org_forward.1} parent=39 // pred_fallthru
        _
      // Predicated region
      $region45: #{attention_org_forward.1} parent=39 // pred_check
        %p426 = pneg %p67
      $region46: #{attention_org_forward.1} parent=39 // pred_check_branch
        %428 = sbr.rel (%p426) target = $region48
      $region47: #{attention_org_forward.1} parent=39 // pred_region
        %p429 = scmp.lt.s32.totalorder %s21, 1
        %s430 = scalar_select %p429, %s21, 1
        %s431 = smul.addr %s430, 2
        %s432 = smul.addr %s431, 8
        %s433 = scalar_lea.vmem %s1, %s432
      $region48: #{attention_org_forward.1} parent=39 // pred_fallthru
        _
      // Predicated region
      $region49: #{attention_org_forward.1} parent=39 // pred_check
        %p434 = pneg %p93
      $region50: #{attention_org_forward.1} parent=39 // pred_check_branch
        %436 = sbr.rel (%p434) target = $region52
      $region51: #{attention_org_forward.1} parent=39 // pred_region
        %p437 = scmp.lt.s32.totalorder %s21, 1
        %s438 = scalar_select %p437, %s21, 1
        %s439 = smul.addr %s438, 4
        %s440 = smul.addr %s439, 8
        %s441 = scalar_lea.vmem %s2, %s440
      $region52: #{attention_org_forward.1} parent=39 // pred_fallthru
        _
      // Predicated region
      $region53: #{attention_org_forward.1} parent=39 // pred_check
        %p442 = pneg %p119
      $region54: #{attention_org_forward.1} parent=39 // pred_check_branch
        %444 = sbr.rel (%p442) target = $region56
      $region55: #{attention_org_forward.1} parent=39 // pred_region
        %p445 = scmp.lt.s32.totalorder %s21, 1
        %s446 = scalar_select %p445, %s21, 1
        %s447 = smul.addr %s446, 4
        %s448 = smul.addr %s447, 8
        %s449 = scalar_lea.vmem %s3, %s448
      $region56: #{attention_org_forward.1} parent=39 // pred_fallthru
        _
      // Predicated region
      $region57: #{attention_org_forward.1} parent=39 // pred_check
        %p450 = pneg %p145
      $region58: #{attention_org_forward.1} parent=39 // pred_check_branch
        %452 = sbr.rel (%p450) target = $region60
      $region59: #{attention_org_forward.1} parent=39 // pred_region
        %p453 = scmp.lt.s32.totalorder %s21, 1
        %s454 = scalar_select %p453, %s21, 1
        %s455 = smul.addr %s454, 10
        %s456 = smul.addr %s455, 8
        %s457 = scalar_lea.vmem %s4, %s456
      $region60: #{attention_org_forward.1} parent=39 // pred_fallthru
        _
    $region40: #{attention_org_forward.1} parent=5 // pred_fallthru
      _
    %p458 = scmp.le.s32.totalorder 1, %s21
    %p459 = scmp.lt.s32.totalorder %s21, 3
    %p460 = pnand %p458, %p459
    %p461 = pneg %p460
    // Predicated region
    $region61: #{attention_org_forward.1} parent=5 // pred_check
      _
    $region62: #{attention_org_forward.1} parent=5 // pred_check_branch
      %463 = sbr.rel (%p460) target = $region64
    $region63: #{attention_org_forward.1} parent=5 // pred_region
      %s464 = ssub.s32 %s21, 1
      %p465 = scmp.lt.s32.totalorder %s26, 1
      %s466 = scalar_select %p465, %s26, 1
      %s467 = smul.addr %s466, 2
      %s468 = smul.addr %s467, 4
      %s469 = scalar_lea.vmem %s0, %s468
      %p470 = pneg %p47
      %p471 = pneg %p44
      %p472 = scmp.lt.s32.totalorder %s26, 1
      %s473 = scalar_select %p472, %s26, 1
      %s474 = smul.addr %s473, 2
      %s475 = smul.addr %s474, 8
      %s476 = scalar_lea.vmem %s1, %s475
      %p477 = pneg %p73
      %p478 = pneg %p70
      %p479 = scmp.lt.s32.totalorder %s26, 1
      %s480 = scalar_select %p479, %s26, 1
      %s481 = smul.addr %s480, 4
      %s482 = smul.addr %s481, 8
      %s483 = scalar_lea.vmem %s2, %s482
      %p484 = pneg %p99
      %p485 = pneg %p96
      %p486 = scmp.lt.s32.totalorder %s26, 1
      %s487 = scalar_select %p486, %s26, 1
      %s488 = smul.addr %s487, 4
      %s489 = smul.addr %s488, 8
      %s490 = scalar_lea.vmem %s3, %s489
      %p491 = pneg %p125
      %p492 = pneg %p122
      %p493 = scmp.lt.s32.totalorder %s26, 1
      %s494 = scalar_select %p493, %s26, 1
      %s495 = smul.addr %s494, 10
      %s496 = smul.addr %s495, 8
      %s497 = scalar_lea.vmem %s4, %s496
      %p498 = pneg %p151
      %p499 = pneg %p148
      %p500 = pneg %p172
      %p501 = pneg %p169
      %p502 = pneg %p193
      %p503 = pneg %p190
      %p504 = pneg %p214
      %p505 = pneg %p211
      %p506 = pneg %p235
      %p507 = pneg %p232
      %p508 = pneg %p256
      %p509 = pneg %p253
      %p510 = pneg %p277
      %p511 = pneg %p274
      %p512 = pneg %p303
      %p513 = pneg %p300
      %p514 = scmp.lt.s32.totalorder %s26, 1
      %s515 = scalar_select %p514, %s26, 1
      %s516 = smul.addr %s515, 2
      %s517 = smul.addr %s516, 4
      %s518 = scalar_lea.vmem %s11, %s517
      %p519 = pneg %p329
      %p520 = pneg %p326
      %p521 = scmp.lt.s32.totalorder %s26, 1
      %s522 = scalar_select %p521, %s26, 1
      %s523 = smul.addr %s522, 2
      %s524 = smul.addr %s523, 8
      %s525 = scalar_lea.vmem %s12, %s524
      %p526 = pneg %p355
      %p527 = pneg %p352
      %p528 = scmp.lt.s32.totalorder %s26, 1
      %s529 = scalar_select %p528, %s26, 1
      %s530 = smul.addr %s529, 4
      %s531 = smul.addr %s530, 8
      %s532 = scalar_lea.vmem %s13, %s531
      %p533 = pneg %p381
      %p534 = pneg %p378
      %p535 = scmp.lt.s32.totalorder %s26, 1
      %s536 = scalar_select %p535, %s26, 1
      %s537 = smul.addr %s536, 4
      %s538 = smul.addr %s537, 8
      %s539 = scalar_lea.vmem %s14, %s538
      %p540 = scmp.lt.s32.totalorder %s26, 1
      %s541 = scalar_select %p540, %s26, 1
      %s542 = smul.addr %s541, 2
      %s543 = smul.addr %s542, 4
      %s544 = scalar_lea.vmem %s0, %s543
      %p545 = scmp.lt.s32.totalorder %s26, 1
      %s546 = scalar_select %p545, %s26, 1
      %s547 = smul.addr %s546, 2
      %s548 = smul.addr %s547, 8
      %s549 = scalar_lea.vmem %s1, %s548
      %p550 = scmp.lt.s32.totalorder %s26, 1
      %s551 = scalar_select %p550, %s26, 1
      %s552 = smul.addr %s551, 4
      %s553 = smul.addr %s552, 8
      %s554 = scalar_lea.vmem %s2, %s553
      %p555 = scmp.lt.s32.totalorder %s26, 1
      %s556 = scalar_select %p555, %s26, 1
      %s557 = smul.addr %s556, 4
      %s558 = smul.addr %s557, 8
      %s559 = scalar_lea.vmem %s3, %s558
      %p560 = scmp.lt.s32.totalorder %s26, 1
      %s561 = scalar_select %p560, %s26, 1
      %s562 = smul.addr %s561, 10
      %s563 = smul.addr %s562, 8
      %s564 = scalar_lea.vmem %s4, %s563
      %p565 = scmp.lt.s32.totalorder %s26, 1
      %s566 = scalar_select %p565, %s26, 1
      %s567 = smul.addr %s566, 2
      %s568 = smul.addr %s567, 4
      %s569 = scalar_lea.vmem %s11, %s568
      %p570 = scmp.lt.s32.totalorder %s26, 1
      %s571 = scalar_select %p570, %s26, 1
      %s572 = smul.addr %s571, 2
      %s573 = smul.addr %s572, 8
      %s574 = scalar_lea.vmem %s12, %s573
      %p575 = scmp.lt.s32.totalorder %s26, 1
      %s576 = scalar_select %p575, %s26, 1
      %s577 = smul.addr %s576, 4
      %s578 = smul.addr %s577, 8
      %s579 = scalar_lea.vmem %s13, %s578
      %p580 = scmp.lt.s32.totalorder %s26, 1
      %s581 = scalar_select %p580, %s26, 1
      %s582 = smul.addr %s581, 4
      %s583 = smul.addr %s582, 8
      %s584 = scalar_lea.vmem %s14, %s583
      %v585 = vld [vmem:[%s544] sm:$0xff]
      %v586 = vld [vmem:[%s549] sm:$0xff]
      %v587 = vld [vmem:[%s549 + $0x8] sm:$0xff]
      %v588 = vld [vmem:[%s554] sm:$0xff]
      %v589 = vld [vmem:[%s554 + $0x8] sm:$0xff]
      %v590 = vld [vmem:[%s554 + $0x10] sm:$0xf]
      %v591 = vld [vmem:[%s554 + $0x18] sm:$0xf]
      %v592 = vld [vmem:[%s559] sm:$0xff]
      %v593 = vld [vmem:[%s559 + $0x8] sm:$0xff]
      %v594 = vld [vmem:[%s559 + $0x10] sm:$0xff]
      %v595 = vld [vmem:[%s559 + $0x18] sm:$0xff]
      %v597 = vcombine.high %v585, %v585
      %v601 = vrot.slane %v586, 4
      %v602 = vrot.slane %v587, 4
      %vm609 = vcmask 1043456
      %v610 = vrot.slane %v588, 4
      %v611 = vrot.slane %v589, 4
      %v612 = vrot.slane %v590, 4
      %v613 = vsel %vm609, %v610, %v612
      %v614 = vrot.slane %v591, 4
      %v615 = vsel %vm609, %v611, %v614
      %v620 = vsel %vm609, %v585, %v601
      %v621 = vsel %vm609, %v597, %v602
      %v622 = vsel %vm609, %v601, %v610
      %v623 = vsel %vm609, %v602, %v611
      %624 = vst [vmem:[#allocation2 + $0x140] sm:$0xff] %v620
      %625 = vst [vmem:[#allocation2 + $0x148] sm:$0xff] %v621
      %626 = vst [vmem:[#allocation2 + $0x150] sm:$0xff] %v622
      %627 = vst [vmem:[#allocation2 + $0x158] sm:$0xff] %v623
      %628 = vst [vmem:[#allocation2 + $0x160] sm:$0xff] %v613
      %629 = vst [vmem:[#allocation2 + $0x168] sm:$0xff] %v615
      %630 = vst [vmem:[#allocation2 + $0x170] sm:$0xff] %v592
      %631 = vst [vmem:[#allocation2 + $0x178] sm:$0xff] %v593
      %632 = vst [vmem:[#allocation2 + $0x180] sm:$0xff] %v594
      %633 = vst [vmem:[#allocation2 + $0x188] sm:$0xff] %v595
      %634 = vrot.lane.b32.xlu0 %v620, 17
      %v635 = vpop.permute.xlu0 %634
      %636 = vrot.lane.b32.xlu0 %v622, 17
      %v637 = vpop.permute.xlu0 %636
      %638 = vrot.lane.b32.xlu0 %v613, 17
      %v639 = vpop.permute.xlu0 %638
      %640 = vrot.lane.b32.xlu0 %v592, 17
      %v641 = vpop.permute.xlu0 %640
      %642 = vrot.lane.b32.xlu0 %v594, 17
      %v643 = vpop.permute.xlu0 %642
      %644 = vrot.lane.b32.xlu0 %v621, 17
      %v645 = vpop.permute.xlu0 %644
      %646 = vrot.lane.b32.xlu0 %v623, 17
      %v647 = vpop.permute.xlu0 %646
      %648 = vrot.lane.b32.xlu0 %v615, 17
      %v649 = vpop.permute.xlu0 %648
      %650 = vrot.lane.b32.xlu0 %v593, 17
      %v651 = vpop.permute.xlu0 %650
      %652 = vrot.lane.b32.xlu0 %v595, 17
      %v653 = vpop.permute.xlu0 %652
      %v654 = vlaneseq
      %v655 = vand.u32 %v654, 127
      %vm656 = vcmp.lt.s32.totalorder %v655, 17
      %v657 = vsel %vm656, %v635, %v645
      %v658 = vsel %vm656, %v637, %v647
      %v659 = vsel %vm656, %v639, %v649
      %v660 = vsel %vm656, %v641, %v651
      %v661 = vsel %vm656, %v643, %v653
      %v662 = vsel %vm656, %v645, %v635
      %v663 = vsel %vm656, %v647, %v637
      %v664 = vsel %vm656, %v649, %v639
      %v665 = vsel %vm656, %v651, %v641
      %v666 = vsel %vm656, %v653, %v643
      %v667 = vld [vmem:[%s5] sm:$0x3]
      %v669 = vlaneseq
      %v670 = vshrl.u32 %v669, 7
      %v671 = vsub.s32 0, %v670
      %v672 = vrot.slane %v667, %v671
      %v673 = vlaneseq
      %v674 = vshrl.u32 %v673, 7
      %v675 = vsub.s32 1, %v674
      %v676 = vrot.slane %v667, %v675
      %v679 = vmul.f32 %v662, %v672
      %v680 = vmul.f32 %v657, %v676
      %v681 = vmul.f32 %v663, %v672
      %v682 = vmul.f32 %v658, %v676
      %v683 = vmul.f32 %v664, %v672
      %v684 = vmul.f32 %v659, %v676
      %v685 = vmul.f32 %v665, %v672
      %v686 = vmul.f32 %v660, %v676
      %v687 = vmul.f32 %v666, %v672
      %v688 = vmul.f32 %v661, %v676
      %689 = vst [vmem:[#allocation2] sm:$0xff] %v679
      %690 = vst [vmem:[#allocation2 + $0x8] sm:$0xff] %v680
      %691 = vst [vmem:[#allocation2 + $0x10] sm:$0xff] %v681
      %692 = vst [vmem:[#allocation2 + $0x18] sm:$0xff] %v682
      %693 = vst [vmem:[#allocation2 + $0x20] sm:$0xff] %v683
      %694 = vst [vmem:[#allocation2 + $0x28] sm:$0xff] %v684
      %695 = vst [vmem:[#allocation2 + $0x30] sm:$0xff] %v685
      %696 = vst [vmem:[#allocation2 + $0x38] sm:$0xff] %v686
      %697 = vst [vmem:[#allocation2 + $0x40] sm:$0xff] %v687
      %698 = vst [vmem:[#allocation2 + $0x48] sm:$0xff] %v688
      %699 = vrot.lane.b32.xlu0 %v620, 16
      %v700 = vpop.permute.xlu0 %699
      %701 = vrot.lane.b32.xlu0 %v622, 16
      %v702 = vpop.permute.xlu0 %701
      %703 = vrot.lane.b32.xlu0 %v613, 16
      %v704 = vpop.permute.xlu0 %703
      %705 = vrot.lane.b32.xlu0 %v592, 16
      %v706 = vpop.permute.xlu0 %705
      %707 = vrot.lane.b32.xlu0 %v594, 16
      %v708 = vpop.permute.xlu0 %707
      %709 = vrot.lane.b32.xlu0 %v621, 16
      %v710 = vpop.permute.xlu0 %709
      %711 = vrot.lane.b32.xlu0 %v623, 16
      %v712 = vpop.permute.xlu0 %711
      %713 = vrot.lane.b32.xlu0 %v615, 16
      %v714 = vpop.permute.xlu0 %713
      %715 = vrot.lane.b32.xlu0 %v593, 16
      %v716 = vpop.permute.xlu0 %715
      %717 = vrot.lane.b32.xlu0 %v595, 16
      %v718 = vpop.permute.xlu0 %717
      %vm719 = vcmp.lt.s32.totalorder %v655, 16
      %v720 = vsel %vm719, %v700, %v710
      %v721 = vsel %vm719, %v702, %v712
      %v722 = vsel %vm719, %v704, %v714
      %v723 = vsel %vm719, %v706, %v716
      %v724 = vsel %vm719, %v708, %v718
      %v725 = vsel %vm719, %v710, %v700
      %v726 = vsel %vm719, %v712, %v702
      %v727 = vsel %vm719, %v714, %v704
      %v728 = vsel %vm719, %v716, %v706
      %v729 = vsel %vm719, %v718, %v708
      %s730 = scalar_lea.vmem %s5, 2
      %v731 = vld [vmem:[%s730] sm:$0x3]
      %v733 = vlaneseq
      %v734 = vshrl.u32 %v733, 7
      %v735 = vsub.s32 0, %v734
      %v736 = vrot.slane %v731, %v735
      %v737 = vlaneseq
      %v738 = vshrl.u32 %v737, 7
      %v739 = vsub.s32 1, %v738
      %v740 = vrot.slane %v731, %v739
      %v743 = vmul.f32 %v725, %v736
      %v744 = vmul.f32 %v720, %v740
      %v745 = vmul.f32 %v726, %v736
      %v746 = vmul.f32 %v721, %v740
      %v747 = vmul.f32 %v727, %v736
      %v748 = vmul.f32 %v722, %v740
      %v749 = vmul.f32 %v728, %v736
      %v750 = vmul.f32 %v723, %v740
      %v751 = vmul.f32 %v729, %v736
      %v752 = vmul.f32 %v724, %v740
      %753 = vst [vmem:[#allocation2 + $0x50] sm:$0xff] %v743
      %754 = vst [vmem:[#allocation2 + $0x58] sm:$0xff] %v744
      %755 = vst [vmem:[#allocation2 + $0x60] sm:$0xff] %v745
      %756 = vst [vmem:[#allocation2 + $0x68] sm:$0xff] %v746
      %757 = vst [vmem:[#allocation2 + $0x70] sm:$0xff] %v747
      %758 = vst [vmem:[#allocation2 + $0x78] sm:$0xff] %v748
      %759 = vst [vmem:[#allocation2 + $0x80] sm:$0xff] %v749
      %760 = vst [vmem:[#allocation2 + $0x88] sm:$0xff] %v750
      %761 = vst [vmem:[#allocation2 + $0x90] sm:$0xff] %v751
      %762 = vst [vmem:[#allocation2 + $0x98] sm:$0xff] %v752
      %763 = vrot.lane.b32.xlu0 %v620, 15
      %v764 = vpop.permute.xlu0 %763
      %765 = vrot.lane.b32.xlu0 %v622, 15
      %v766 = vpop.permute.xlu0 %765
      %767 = vrot.lane.b32.xlu0 %v613, 15
      %v768 = vpop.permute.xlu0 %767
      %769 = vrot.lane.b32.xlu0 %v592, 15
      %v770 = vpop.permute.xlu0 %769
      %771 = vrot.lane.b32.xlu0 %v594, 15
      %v772 = vpop.permute.xlu0 %771
      %773 = vrot.lane.b32.xlu0 %v621, 15
      %v774 = vpop.permute.xlu0 %773
      %775 = vrot.lane.b32.xlu0 %v623, 15
      %v776 = vpop.permute.xlu0 %775
      %777 = vrot.lane.b32.xlu0 %v615, 15
      %v778 = vpop.permute.xlu0 %777
      %779 = vrot.lane.b32.xlu0 %v593, 15
      %v780 = vpop.permute.xlu0 %779
      %781 = vrot.lane.b32.xlu0 %v595, 15
      %v782 = vpop.permute.xlu0 %781
      %vm783 = vcmp.lt.s32.totalorder %v655, 15
      %v784 = vsel %vm783, %v764, %v774
      %v785 = vsel %vm783, %v766, %v776
      %v786 = vsel %vm783, %v768, %v778
      %v787 = vsel %vm783, %v770, %v780
      %v788 = vsel %vm783, %v772, %v782
      %v789 = vsel %vm783, %v774, %v764
      %v790 = vsel %vm783, %v776, %v766
      %v791 = vsel %vm783, %v778, %v768
      %v792 = vsel %vm783, %v780, %v770
      %v793 = vsel %vm783, %v782, %v772
      %s794 = scalar_lea.vmem %s5, 4
      %v795 = vld [vmem:[%s794] sm:$0x3]
      %v797 = vlaneseq
      %v798 = vshrl.u32 %v797, 7
      %v799 = vsub.s32 0, %v798
      %v800 = vrot.slane %v795, %v799
      %v801 = vlaneseq
      %v802 = vshrl.u32 %v801, 7
      %v803 = vsub.s32 1, %v802
      %v804 = vrot.slane %v795, %v803
      %v807 = vmul.f32 %v789, %v800
      %v808 = vmul.f32 %v784, %v804
      %v809 = vmul.f32 %v790, %v800
      %v810 = vmul.f32 %v785, %v804
      %v811 = vmul.f32 %v791, %v800
      %v812 = vmul.f32 %v786, %v804
      %v813 = vmul.f32 %v792, %v800
      %v814 = vmul.f32 %v787, %v804
      %v815 = vmul.f32 %v793, %v800
      %v816 = vmul.f32 %v788, %v804
      %817 = vst [vmem:[#allocation2 + $0xa0] sm:$0xff] %v807
      %818 = vst [vmem:[#allocation2 + $0xa8] sm:$0xff] %v808
      %819 = vst [vmem:[#allocation2 + $0xb0] sm:$0xff] %v809
      %820 = vst [vmem:[#allocation2 + $0xb8] sm:$0xff] %v810
      %821 = vst [vmem:[#allocation2 + $0xc0] sm:$0xff] %v811
      %822 = vst [vmem:[#allocation2 + $0xc8] sm:$0xff] %v812
      %823 = vst [vmem:[#allocation2 + $0xd0] sm:$0xff] %v813
      %824 = vst [vmem:[#allocation2 + $0xd8] sm:$0xff] %v814
      %825 = vst [vmem:[#allocation2 + $0xe0] sm:$0xff] %v815
      %826 = vst [vmem:[#allocation2 + $0xe8] sm:$0xff] %v816
      %827 = vrot.lane.b32.xlu0 %v620, 1
      %v828 = vpop.permute.xlu0 %827
      %829 = vrot.lane.b32.xlu0 %v622, 1
      %v830 = vpop.permute.xlu0 %829
      %831 = vrot.lane.b32.xlu0 %v613, 1
      %v832 = vpop.permute.xlu0 %831
      %833 = vrot.lane.b32.xlu0 %v592, 1
      %v834 = vpop.permute.xlu0 %833
      %835 = vrot.lane.b32.xlu0 %v594, 1
      %v836 = vpop.permute.xlu0 %835
      %837 = vrot.lane.b32.xlu0 %v621, 1
      %v838 = vpop.permute.xlu0 %837
      %839 = vrot.lane.b32.xlu0 %v623, 1
      %v840 = vpop.permute.xlu0 %839
      %841 = vrot.lane.b32.xlu0 %v615, 1
      %v842 = vpop.permute.xlu0 %841
      %843 = vrot.lane.b32.xlu0 %v593, 1
      %v844 = vpop.permute.xlu0 %843
      %845 = vrot.lane.b32.xlu0 %v595, 1
      %v846 = vpop.permute.xlu0 %845
      %vm847 = vcmp.lt.s32.totalorder %v655, 1
      %v848 = vsel %vm847, %v828, %v838
      %v849 = vsel %vm847, %v830, %v840
      %v850 = vsel %vm847, %v832, %v842
      %v851 = vsel %vm847, %v834, %v844
      %v852 = vsel %vm847, %v836, %v846
      %v853 = vsel %vm847, %v838, %v828
      %v854 = vsel %vm847, %v840, %v830
      %v855 = vsel %vm847, %v842, %v832
      %v856 = vsel %vm847, %v844, %v834
      %v857 = vsel %vm847, %v846, %v836
      %s858 = scalar_lea.vmem %s5, 6
      %v859 = vld [vmem:[%s858] sm:$0x3]
      %v861 = vlaneseq
      %v862 = vshrl.u32 %v861, 7
      %v863 = vsub.s32 0, %v862
      %v864 = vrot.slane %v859, %v863
      %v865 = vlaneseq
      %v866 = vshrl.u32 %v865, 7
      %v867 = vsub.s32 1, %v866
      %v868 = vrot.slane %v859, %v867
      %v871 = vmul.f32 %v853, %v864
      %v872 = vmul.f32 %v848, %v868
      %v873 = vmul.f32 %v854, %v864
      %v874 = vmul.f32 %v849, %v868
      %v875 = vmul.f32 %v855, %v864
      %v876 = vmul.f32 %v850, %v868
      %v877 = vmul.f32 %v856, %v864
      %v878 = vmul.f32 %v851, %v868
      %v879 = vmul.f32 %v857, %v864
      %v880 = vmul.f32 %v852, %v868
      %881 = vst [vmem:[#allocation2 + $0xf0] sm:$0xff] %v871
      %882 = vst [vmem:[#allocation2 + $0xf8] sm:$0xff] %v872
      %883 = vst [vmem:[#allocation2 + $0x100] sm:$0xff] %v873
      %884 = vst [vmem:[#allocation2 + $0x108] sm:$0xff] %v874
      %885 = vst [vmem:[#allocation2 + $0x110] sm:$0xff] %v875
      %886 = vst [vmem:[#allocation2 + $0x118] sm:$0xff] %v876
      %887 = vst [vmem:[#allocation2 + $0x120] sm:$0xff] %v877
      %888 = vst [vmem:[#allocation2 + $0x128] sm:$0xff] %v878
      %889 = vst [vmem:[#allocation2 + $0x130] sm:$0xff] %v879
      %890 = vst [vmem:[#allocation2 + $0x138] sm:$0xff] %v880
      %891 = vrot.lane.b32.xlu0 %v620, 127
      %v892 = vpop.permute.xlu0 %891
      %893 = vrot.lane.b32.xlu0 %v622, 127
      %v894 = vpop.permute.xlu0 %893
      %895 = vrot.lane.b32.xlu0 %v613, 127
      %v896 = vpop.permute.xlu0 %895
      %897 = vrot.lane.b32.xlu0 %v592, 127
      %v898 = vpop.permute.xlu0 %897
      %899 = vrot.lane.b32.xlu0 %v594, 127
      %v900 = vpop.permute.xlu0 %899
      %901 = vrot.lane.b32.xlu0 %v621, 127
      %v902 = vpop.permute.xlu0 %901
      %903 = vrot.lane.b32.xlu0 %v623, 127
      %v904 = vpop.permute.xlu0 %903
      %905 = vrot.lane.b32.xlu0 %v615, 127
      %v906 = vpop.permute.xlu0 %905
      %907 = vrot.lane.b32.xlu0 %v593, 127
      %v908 = vpop.permute.xlu0 %907
      %909 = vrot.lane.b32.xlu0 %v595, 127
      %v910 = vpop.permute.xlu0 %909
      %vm911 = vcmp.lt.s32.totalorder %v655, 127
      %v912 = vsel %vm911, %v892, %v902
      %v913 = vsel %vm911, %v894, %v904
      %v914 = vsel %vm911, %v896, %v906
      %v915 = vsel %vm911, %v898, %v908
      %v916 = vsel %vm911, %v900, %v910
      %v917 = vsel %vm911, %v902, %v892
      %v918 = vsel %vm911, %v904, %v894
      %v919 = vsel %vm911, %v906, %v896
      %v920 = vsel %vm911, %v908, %v898
      %v921 = vsel %vm911, %v910, %v900
      %s922 = scalar_lea.vmem %s5, 10
      %v923 = vld [vmem:[%s922] sm:$0x3]
      %v925 = vlaneseq
      %v926 = vshrl.u32 %v925, 7
      %v927 = vsub.s32 0, %v926
      %v928 = vrot.slane %v923, %v927
      %v929 = vlaneseq
      %v930 = vshrl.u32 %v929, 7
      %v931 = vsub.s32 1, %v930
      %v932 = vrot.slane %v923, %v931
      %v935 = vmul.f32 %v912, %v928
      %v936 = vmul.f32 %v917, %v932
      %v937 = vmul.f32 %v913, %v928
      %v938 = vmul.f32 %v918, %v932
      %v939 = vmul.f32 %v914, %v928
      %v940 = vmul.f32 %v919, %v932
      %v941 = vmul.f32 %v915, %v928
      %v942 = vmul.f32 %v920, %v932
      %v943 = vmul.f32 %v916, %v928
      %v944 = vmul.f32 %v921, %v932
      %945 = vst [vmem:[#allocation2 + $0x190] sm:$0xff] %v935
      %946 = vst [vmem:[#allocation2 + $0x198] sm:$0xff] %v936
      %947 = vst [vmem:[#allocation2 + $0x1a0] sm:$0xff] %v937
      %948 = vst [vmem:[#allocation2 + $0x1a8] sm:$0xff] %v938
      %949 = vst [vmem:[#allocation2 + $0x1b0] sm:$0xff] %v939
      %950 = vst [vmem:[#allocation2 + $0x1b8] sm:$0xff] %v940
      %951 = vst [vmem:[#allocation2 + $0x1c0] sm:$0xff] %v941
      %952 = vst [vmem:[#allocation2 + $0x1c8] sm:$0xff] %v942
      %953 = vst [vmem:[#allocation2 + $0x1d0] sm:$0xff] %v943
      %954 = vst [vmem:[#allocation2 + $0x1d8] sm:$0xff] %v944
      %955 = vrot.lane.b32.xlu0 %v620, 113
      %v956 = vpop.permute.xlu0 %955
      %957 = vrot.lane.b32.xlu0 %v622, 113
      %v958 = vpop.permute.xlu0 %957
      %959 = vrot.lane.b32.xlu0 %v613, 113
      %v960 = vpop.permute.xlu0 %959
      %961 = vrot.lane.b32.xlu0 %v592, 113
      %v962 = vpop.permute.xlu0 %961
      %963 = vrot.lane.b32.xlu0 %v594, 113
      %v964 = vpop.permute.xlu0 %963
      %965 = vrot.lane.b32.xlu0 %v621, 113
      %v966 = vpop.permute.xlu0 %965
      %967 = vrot.lane.b32.xlu0 %v623, 113
      %v968 = vpop.permute.xlu0 %967
      %969 = vrot.lane.b32.xlu0 %v615, 113
      %v970 = vpop.permute.xlu0 %969
      %971 = vrot.lane.b32.xlu0 %v593, 113
      %v972 = vpop.permute.xlu0 %971
      %973 = vrot.lane.b32.xlu0 %v595, 113
      %v974 = vpop.permute.xlu0 %973
      %vm975 = vcmp.lt.s32.totalorder %v655, 113
      %v976 = vsel %vm975, %v956, %v966
      %v977 = vsel %vm975, %v958, %v968
      %v978 = vsel %vm975, %v960, %v970
      %v979 = vsel %vm975, %v962, %v972
      %v980 = vsel %vm975, %v964, %v974
      %v981 = vsel %vm975, %v966, %v956
      %v982 = vsel %vm975, %v968, %v958
      %v983 = vsel %vm975, %v970, %v960
      %v984 = vsel %vm975, %v972, %v962
      %v985 = vsel %vm975, %v974, %v964
      %s986 = scalar_lea.vmem %s5, 12
      %v987 = vld [vmem:[%s986] sm:$0x3]
      %v989 = vlaneseq
      %v990 = vshrl.u32 %v989, 7
      %v991 = vsub.s32 0, %v990
      %v992 = vrot.slane %v987, %v991
      %v993 = vlaneseq
      %v994 = vshrl.u32 %v993, 7
      %v995 = vsub.s32 1, %v994
      %v996 = vrot.slane %v987, %v995
      %v999 = vmul.f32 %v976, %v992
      %v1000 = vmul.f32 %v981, %v996
      %v1001 = vmul.f32 %v977, %v992
      %v1002 = vmul.f32 %v982, %v996
      %v1003 = vmul.f32 %v978, %v992
      %v1004 = vmul.f32 %v983, %v996
      %v1005 = vmul.f32 %v979, %v992
      %v1006 = vmul.f32 %v984, %v996
      %v1007 = vmul.f32 %v980, %v992
      %v1008 = vmul.f32 %v985, %v996
      %1009 = vst [vmem:[#allocation2 + $0x1e0] sm:$0xff] %v999
      %1010 = vst [vmem:[#allocation2 + $0x1e8] sm:$0xff] %v1000
      %1011 = vst [vmem:[#allocation2 + $0x1f0] sm:$0xff] %v1001
      %1012 = vst [vmem:[#allocation2 + $0x1f8] sm:$0xff] %v1002
      %1013 = vst [vmem:[#allocation2 + $0x200] sm:$0xff] %v1003
      %1014 = vst [vmem:[#allocation2 + $0x208] sm:$0xff] %v1004
      %1015 = vst [vmem:[#allocation2 + $0x210] sm:$0xff] %v1005
      %1016 = vst [vmem:[#allocation2 + $0x218] sm:$0xff] %v1006
      %1017 = vst [vmem:[#allocation2 + $0x220] sm:$0xff] %v1007
      %1018 = vst [vmem:[#allocation2 + $0x228] sm:$0xff] %v1008
      %1019 = vrot.lane.b32.xlu0 %v620, 112
      %v1020 = vpop.permute.xlu0 %1019
      %1021 = vrot.lane.b32.xlu0 %v622, 112
      %v1022 = vpop.permute.xlu0 %1021
      %1023 = vrot.lane.b32.xlu0 %v613, 112
      %v1024 = vpop.permute.xlu0 %1023
      %1025 = vrot.lane.b32.xlu0 %v592, 112
      %v1026 = vpop.permute.xlu0 %1025
      %1027 = vrot.lane.b32.xlu0 %v594, 112
      %v1028 = vpop.permute.xlu0 %1027
      %1029 = vrot.lane.b32.xlu0 %v621, 112
      %v1030 = vpop.permute.xlu0 %1029
      %1031 = vrot.lane.b32.xlu0 %v623, 112
      %v1032 = vpop.permute.xlu0 %1031
      %1033 = vrot.lane.b32.xlu0 %v615, 112
      %v1034 = vpop.permute.xlu0 %1033
      %1035 = vrot.lane.b32.xlu0 %v593, 112
      %v1036 = vpop.permute.xlu0 %1035
      %1037 = vrot.lane.b32.xlu0 %v595, 112
      %v1038 = vpop.permute.xlu0 %1037
      %vm1039 = vcmp.lt.s32.totalorder %v655, 112
      %v1040 = vsel %vm1039, %v1020, %v1030
      %v1041 = vsel %vm1039, %v1022, %v1032
      %v1042 = vsel %vm1039, %v1024, %v1034
      %v1043 = vsel %vm1039, %v1026, %v1036
      %v1044 = vsel %vm1039, %v1028, %v1038
      %v1045 = vsel %vm1039, %v1030, %v1020
      %v1046 = vsel %vm1039, %v1032, %v1022
      %v1047 = vsel %vm1039, %v1034, %v1024
      %v1048 = vsel %vm1039, %v1036, %v1026
      %v1049 = vsel %vm1039, %v1038, %v1028
      %s1050 = scalar_lea.vmem %s5, 14
      %v1051 = vld [vmem:[%s1050] sm:$0x3]
      %v1053 = vlaneseq
      %v1054 = vshrl.u32 %v1053, 7
      %v1055 = vsub.s32 0, %v1054
      %v1056 = vrot.slane %v1051, %v1055
      %v1057 = vlaneseq
      %v1058 = vshrl.u32 %v1057, 7
      %v1059 = vsub.s32 1, %v1058
      %v1060 = vrot.slane %v1051, %v1059
      %v1063 = vmul.f32 %v1040, %v1056
      %v1064 = vmul.f32 %v1045, %v1060
      %v1065 = vmul.f32 %v1041, %v1056
      %v1066 = vmul.f32 %v1046, %v1060
      %v1067 = vmul.f32 %v1042, %v1056
      %v1068 = vmul.f32 %v1047, %v1060
      %v1069 = vmul.f32 %v1043, %v1056
      %v1070 = vmul.f32 %v1048, %v1060
      %v1071 = vmul.f32 %v1044, %v1056
      %v1072 = vmul.f32 %v1049, %v1060
      %1073 = vst [vmem:[#allocation2 + $0x230] sm:$0xff] %v1063
      %1074 = vst [vmem:[#allocation2 + $0x238] sm:$0xff] %v1064
      %1075 = vst [vmem:[#allocation2 + $0x240] sm:$0xff] %v1065
      %1076 = vst [vmem:[#allocation2 + $0x248] sm:$0xff] %v1066
      %1077 = vst [vmem:[#allocation2 + $0x250] sm:$0xff] %v1067
      %1078 = vst [vmem:[#allocation2 + $0x258] sm:$0xff] %v1068
      %1079 = vst [vmem:[#allocation2 + $0x260] sm:$0xff] %v1069
      %1080 = vst [vmem:[#allocation2 + $0x268] sm:$0xff] %v1070
      %1081 = vst [vmem:[#allocation2 + $0x270] sm:$0xff] %v1071
      %1082 = vst [vmem:[#allocation2 + $0x278] sm:$0xff] %v1072
      %1083 = vrot.lane.b32.xlu0 %v620, 111
      %v1084 = vpop.permute.xlu0 %1083
      %1085 = vrot.lane.b32.xlu0 %v622, 111
      %v1086 = vpop.permute.xlu0 %1085
      %1087 = vrot.lane.b32.xlu0 %v613, 111
      %v1088 = vpop.permute.xlu0 %1087
      %1089 = vrot.lane.b32.xlu0 %v592, 111
      %v1090 = vpop.permute.xlu0 %1089
      %1091 = vrot.lane.b32.xlu0 %v594, 111
      %v1092 = vpop.permute.xlu0 %1091
      %1093 = vrot.lane.b32.xlu0 %v621, 111
      %v1094 = vpop.permute.xlu0 %1093
      %1095 = vrot.lane.b32.xlu0 %v623, 111
      %v1096 = vpop.permute.xlu0 %1095
      %1097 = vrot.lane.b32.xlu0 %v615, 111
      %v1098 = vpop.permute.xlu0 %1097
      %1099 = vrot.lane.b32.xlu0 %v593, 111
      %v1100 = vpop.permute.xlu0 %1099
      %1101 = vrot.lane.b32.xlu0 %v595, 111
      %v1102 = vpop.permute.xlu0 %1101
      %vm1103 = vcmp.lt.s32.totalorder %v655, 111
      %v1104 = vsel %vm1103, %v1084, %v1094
      %v1105 = vsel %vm1103, %v1086, %v1096
      %v1106 = vsel %vm1103, %v1088, %v1098
      %v1107 = vsel %vm1103, %v1090, %v1100
      %v1108 = vsel %vm1103, %v1092, %v1102
      %v1109 = vsel %vm1103, %v1094, %v1084
      %v1110 = vsel %vm1103, %v1096, %v1086
      %v1111 = vsel %vm1103, %v1098, %v1088
      %v1112 = vsel %vm1103, %v1100, %v1090
      %v1113 = vsel %vm1103, %v1102, %v1092
      %s1114 = scalar_lea.vmem %s5, 16
      %v1115 = vld [vmem:[%s1114] sm:$0x3]
      %v1117 = vlaneseq
      %v1118 = vshrl.u32 %v1117, 7
      %v1119 = vsub.s32 0, %v1118
      %v1120 = vrot.slane %v1115, %v1119
      %v1121 = vlaneseq
      %v1122 = vshrl.u32 %v1121, 7
      %v1123 = vsub.s32 1, %v1122
      %v1124 = vrot.slane %v1115, %v1123
      %v1127 = vmul.f32 %v1104, %v1120
      %v1128 = vmul.f32 %v1109, %v1124
      %v1129 = vmul.f32 %v1105, %v1120
      %v1130 = vmul.f32 %v1110, %v1124
      %v1131 = vmul.f32 %v1106, %v1120
      %v1132 = vmul.f32 %v1111, %v1124
      %v1133 = vmul.f32 %v1107, %v1120
      %v1134 = vmul.f32 %v1112, %v1124
      %v1135 = vmul.f32 %v1108, %v1120
      %v1136 = vmul.f32 %v1113, %v1124
      %1137 = vst [vmem:[#allocation2 + $0x280] sm:$0xff] %v1127
      %1138 = vst [vmem:[#allocation2 + $0x288] sm:$0xff] %v1128
      %1139 = vst [vmem:[#allocation2 + $0x290] sm:$0xff] %v1129
      %1140 = vst [vmem:[#allocation2 + $0x298] sm:$0xff] %v1130
      %1141 = vst [vmem:[#allocation2 + $0x2a0] sm:$0xff] %v1131
      %1142 = vst [vmem:[#allocation2 + $0x2a8] sm:$0xff] %v1132
      %1143 = vst [vmem:[#allocation2 + $0x2b0] sm:$0xff] %v1133
      %1144 = vst [vmem:[#allocation2 + $0x2b8] sm:$0xff] %v1134
      %1145 = vst [vmem:[#allocation2 + $0x2c0] sm:$0xff] %v1135
      %1146 = vst [vmem:[#allocation2 + $0x2c8] sm:$0xff] %v1136
      %v1147 = vld [vmem:[%s6] sm:$0xff]
      %v1148 = vld [vmem:[%s6 + $0x8] sm:$0xff]
      %v1149 = vld [vmem:[%s6 + $0x10] sm:$0xff]
      %v1150 = vld [vmem:[%s6 + $0x18] sm:$0xff]
      %v1151 = vld [vmem:[%s6 + $0x20] sm:$0xff]
      %v1152 = vld [vmem:[%s6 + $0x28] sm:$0xff]
      %v1153 = vld [vmem:[%s6 + $0x30] sm:$0xff]
      %v1154 = vld [vmem:[%s6 + $0x38] sm:$0xff]
      %v1155 = vld [vmem:[%s6 + $0x40] sm:$0xff]
      %v1156 = vld [vmem:[%s6 + $0x48] sm:$0xff]
      %v1157 = vld [vmem:[%s6 + $0x50] sm:$0xff]
      %v1158 = vld [vmem:[%s6 + $0x58] sm:$0xff]
      %v1159 = vld [vmem:[%s6 + $0x60] sm:$0xff]
      %v1160 = vld [vmem:[%s6 + $0x68] sm:$0xff]
      %v1161 = vld [vmem:[%s6 + $0x70] sm:$0xff]
      %v1162 = vld [vmem:[#allocation2] sm:$0xff]
      %v1163 = vld [vmem:[#allocation2 + $0x8] sm:$0xff]
      %v1164 = vld [vmem:[#allocation2 + $0x10] sm:$0xff]
      %v1165 = vld [vmem:[#allocation2 + $0x18] sm:$0xff]
      %v1166 = vld [vmem:[#allocation2 + $0x20] sm:$0xff]
      %v1167 = vld [vmem:[#allocation2 + $0x28] sm:$0xff]
      %v1168 = vld [vmem:[#allocation2 + $0x30] sm:$0xff]
      %v1169 = vld [vmem:[#allocation2 + $0x38] sm:$0xff]
      %v1170 = vld [vmem:[#allocation2 + $0x40] sm:$0xff]
      %v1171 = vld [vmem:[#allocation2 + $0x48] sm:$0xff]
      %v1172 = vld [vmem:[#allocation2 + $0x50] sm:$0xff]
      %v1173 = vld [vmem:[#allocation2 + $0x58] sm:$0xff]
      %v1174 = vld [vmem:[#allocation2 + $0x60] sm:$0xff]
      %v1175 = vld [vmem:[#allocation2 + $0x68] sm:$0xff]
      %v1176 = vld [vmem:[#allocation2 + $0x70] sm:$0xff]
      %v1177 = vld [vmem:[#allocation2 + $0x78] sm:$0xff]
      %v1178 = vld [vmem:[#allocation2 + $0x80] sm:$0xff]
      %v1179 = vld [vmem:[#allocation2 + $0x88] sm:$0xff]
      %v1180 = vld [vmem:[#allocation2 + $0x90] sm:$0xff]
      %v1181 = vld [vmem:[#allocation2 + $0x98] sm:$0xff]
      %v1182 = vld [vmem:[#allocation2 + $0xa0] sm:$0xff]
      %v1183 = vld [vmem:[#allocation2 + $0xa8] sm:$0xff]
      %v1184 = vld [vmem:[#allocation2 + $0xb0] sm:$0xff]
      %v1185 = vld [vmem:[#allocation2 + $0xb8] sm:$0xff]
      %v1186 = vld [vmem:[#allocation2 + $0xc0] sm:$0xff]
      %v1187 = vld [vmem:[#allocation2 + $0xc8] sm:$0xff]
      %v1188 = vld [vmem:[#allocation2 + $0xd0] sm:$0xff]
      %v1189 = vld [vmem:[#allocation2 + $0xd8] sm:$0xff]
      %v1190 = vld [vmem:[#allocation2 + $0xe0] sm:$0xff]
      %v1191 = vld [vmem:[#allocation2 + $0xe8] sm:$0xff]
      %v1192 = vld [vmem:[#allocation2 + $0xf0] sm:$0xff]
      %v1193 = vld [vmem:[#allocation2 + $0xf8] sm:$0xff]
      %v1194 = vld [vmem:[#allocation2 + $0x100] sm:$0xff]
      %v1195 = vld [vmem:[#allocation2 + $0x108] sm:$0xff]
      %v1196 = vld [vmem:[#allocation2 + $0x110] sm:$0xff]
      %v1197 = vld [vmem:[#allocation2 + $0x118] sm:$0xff]
      %v1198 = vld [vmem:[#allocation2 + $0x120] sm:$0xff]
      %v1199 = vld [vmem:[#allocation2 + $0x128] sm:$0xff]
      %v1200 = vld [vmem:[#allocation2 + $0x130] sm:$0xff]
      %v1201 = vld [vmem:[#allocation2 + $0x138] sm:$0xff]
      %v1202 = vld [vmem:[#allocation2 + $0x140] sm:$0xff]
      %v1203 = vld [vmem:[#allocation2 + $0x148] sm:$0xff]
      %v1204 = vld [vmem:[#allocation2 + $0x150] sm:$0xff]
      %v1205 = vld [vmem:[#allocation2 + $0x158] sm:$0xff]
      %v1206 = vld [vmem:[#allocation2 + $0x160] sm:$0xff]
      %v1207 = vld [vmem:[#allocation2 + $0x168] sm:$0xff]
      %v1208 = vld [vmem:[#allocation2 + $0x170] sm:$0xff]
      %v1209 = vld [vmem:[#allocation2 + $0x178] sm:$0xff]
      %v1210 = vld [vmem:[#allocation2 + $0x180] sm:$0xff]
      %v1211 = vld [vmem:[#allocation2 + $0x188] sm:$0xff]
      %v1212 = vld [vmem:[#allocation2 + $0x190] sm:$0xff]
      %v1213 = vld [vmem:[#allocation2 + $0x198] sm:$0xff]
      %v1214 = vld [vmem:[#allocation2 + $0x1a0] sm:$0xff]
      %v1215 = vld [vmem:[#allocation2 + $0x1a8] sm:$0xff]
      %v1216 = vld [vmem:[#allocation2 + $0x1b0] sm:$0xff]
      %v1217 = vld [vmem:[#allocation2 + $0x1b8] sm:$0xff]
      %v1218 = vld [vmem:[#allocation2 + $0x1c0] sm:$0xff]
      %v1219 = vld [vmem:[#allocation2 + $0x1c8] sm:$0xff]
      %v1220 = vld [vmem:[#allocation2 + $0x1d0] sm:$0xff]
      %v1221 = vld [vmem:[#allocation2 + $0x1d8] sm:$0xff]
      %v1222 = vld [vmem:[#allocation2 + $0x1e0] sm:$0xff]
      %v1223 = vld [vmem:[#allocation2 + $0x1e8] sm:$0xff]
      %v1224 = vld [vmem:[#allocation2 + $0x1f0] sm:$0xff]
      %v1225 = vld [vmem:[#allocation2 + $0x1f8] sm:$0xff]
      %v1226 = vld [vmem:[#allocation2 + $0x200] sm:$0xff]
      %v1227 = vld [vmem:[#allocation2 + $0x208] sm:$0xff]
      %v1228 = vld [vmem:[#allocation2 + $0x210] sm:$0xff]
      %v1229 = vld [vmem:[#allocation2 + $0x218] sm:$0xff]
      %v1230 = vld [vmem:[#allocation2 + $0x220] sm:$0xff]
      %v1231 = vld [vmem:[#allocation2 + $0x228] sm:$0xff]
      %v1232 = vld [vmem:[#allocation2 + $0x230] sm:$0xff]
      %v1233 = vld [vmem:[#allocation2 + $0x238] sm:$0xff]
      %v1234 = vld [vmem:[#allocation2 + $0x240] sm:$0xff]
      %v1235 = vld [vmem:[#allocation2 + $0x248] sm:$0xff]
      %v1236 = vld [vmem:[#allocation2 + $0x250] sm:$0xff]
      %v1237 = vld [vmem:[#allocation2 + $0x258] sm:$0xff]
      %v1238 = vld [vmem:[#allocation2 + $0x260] sm:$0xff]
      %v1239 = vld [vmem:[#allocation2 + $0x268] sm:$0xff]
      %v1240 = vld [vmem:[#allocation2 + $0x270] sm:$0xff]
      %v1241 = vld [vmem:[#allocation2 + $0x278] sm:$0xff]
      %v1242 = vld [vmem:[#allocation2 + $0x280] sm:$0xff]
      %v1243 = vld [vmem:[#allocation2 + $0x288] sm:$0xff]
      %v1244 = vld [vmem:[#allocation2 + $0x290] sm:$0xff]
      %v1245 = vld [vmem:[#allocation2 + $0x298] sm:$0xff]
      %v1246 = vld [vmem:[#allocation2 + $0x2a0] sm:$0xff]
      %v1247 = vld [vmem:[#allocation2 + $0x2a8] sm:$0xff]
      %v1248 = vld [vmem:[#allocation2 + $0x2b0] sm:$0xff]
      %v1249 = vld [vmem:[#allocation2 + $0x2b8] sm:$0xff]
      %v1250 = vld [vmem:[#allocation2 + $0x2c0] sm:$0xff]
      %v1251 = vld [vmem:[#allocation2 + $0x2c8] sm:$0xff]
      %vm1252 = vcmask 850944
      %v1254 = vsel %vm1252, %v1149, 0
      %v1257 = vsel %vm1252, %v1152, 0
      %v1260 = vsel %vm1252, %v1155, 0
      %v1263 = vsel %vm1252, %v1158, 0
      %v1266 = vsel %vm1252, %v1161, 0
      %1268 = vmatprep.subr.mxu0 %v1163
      %1269 = vmatpush1.msra.mxu0 %v1162
      %1270 = vmatprep.subr.mxu0 %v1165
      %1271 = vmatpush1.msra.mxu0 %v1164
      %1272 = vmatprep.subr.mxu0 %v1167
      %1273 = vmatpush1.msra.mxu0 %v1166
      %1274 = vmatprep.subr.mxu0 %v1169
      %1275 = vmatpush1.msra.mxu0 %v1168
      %1276 = vmatprep.subr.mxu0 %v1171
      %1277 = vmatpush1.msra.mxu0 %v1170
      %1278 = vmatprep.subr.mxu0 %v1173
      %1279 = vmatpush1.msra.mxu0 %v1172
      %1280 = vmatprep.subr.mxu0 %v1175
      %1281 = vmatpush1.msra.mxu0 %v1174
      %1282 = vmatprep.subr.mxu0 %v1177
      %1283 = vmatpush1.msra.mxu0 %v1176
      %1284 = vmatprep.subr.mxu0 %v1179
      %1285 = vmatpush1.msra.mxu0 %v1178
      %1286 = vmatprep.subr.mxu0 %v1181
      %1287 = vmatpush1.msra.mxu0 %v1180
      %1288 = vmatprep.subr.mxu0 %v1183
      %1289 = vmatpush1.msra.mxu0 %v1182
      %1290 = vmatprep.subr.mxu0 %v1185
      %1291 = vmatpush1.msra.mxu0 %v1184
      %1292 = vmatprep.subr.mxu0 %v1187
      %1293 = vmatpush1.msra.mxu0 %v1186
      %1294 = vmatprep.subr.mxu0 %v1189
      %1295 = vmatpush1.msra.mxu0 %v1188
      %1296 = vmatprep.subr.mxu0 %v1191
      %1297 = vmatpush1.msra.mxu0 %v1190
      %1298 = vmatprep.subr.mxu0 %v1193
      %1299 = vmatpush1.msra.mxu0 %v1192
      %1300 = vmatprep.subr.mxu0 %v1195
      %1301 = vmatpush1.msra.mxu0 %v1194
      %1302 = vmatprep.subr.mxu0 %v1197
      %1303 = vmatpush1.msra.mxu0 %v1196
      %1304 = vmatprep.subr.mxu0 %v1199
      %1305 = vmatpush1.msra.mxu0 %v1198
      %1306 = vmatprep.subr.mxu0 %v1201
      %1307 = vmatpush1.msra.mxu0 %v1200
      %1308 = vmatprep.subr.mxu0 %v1203
      %1309 = vmatpush1.msra.mxu0 %v1202
      %1310 = vmatprep.subr.mxu0 %v1205
      %1311 = vmatpush1.msra.mxu0 %v1204
      %1312 = vmatprep.subr.mxu0 %v1207
      %1313 = vmatpush1.msra.mxu0 %v1206
      %1314 = vmatprep.subr.mxu0 %v1209
      %1315 = vmatpush1.msra.mxu0 %v1208
      %1316 = vmatprep.subr.mxu0 %v1211
      %1317 = vmatpush1.msra.mxu0 %v1210
      %1318 = vmatprep.subr.mxu0 %v1213
      %1319 = vmatpush1.msra.mxu0 %v1212
      %1320 = vmatprep.subr.mxu0 %v1215
      %1321 = vmatpush1.msra.mxu0 %v1214
      %1322 = vmatprep.subr.mxu0 %v1217
      %1323 = vmatpush1.msra.mxu0 %v1216
      %1324 = vmatprep.subr.mxu0 %v1219
      %1325 = vmatpush1.msra.mxu0 %v1218
      %1326 = vmatprep.subr.mxu0 %v1221
      %1327 = vmatpush1.msra.mxu0 %v1220
      %1328 = vmatprep.subr.mxu0 %v1223
      %1329 = vmatpush1.msra.mxu0 %v1222
      %1330 = vmatprep.subr.mxu0 %v1225
      %1331 = vmatpush1.msra.mxu0 %v1224
      %1332 = vmatprep.mubr.f32.mxu0 %v1148
      %1333 = vmatmul.mubr.f32.gmra.mrb[0].mxu0 %v1147
      %v1334 = vpop.f32.mrb[0].mxu0
      %v1335 = vadd.f32 0.0, %v1334
      %v1336 = vpop.f32.mrb[0].mxu0
      %v1337 = vadd.f32 0.0, %v1336
      %1338 = vmatprep.mubr.f32.mxu0 %v1151
      %1339 = vmatmul.mubr.f32.gmra.mrb[0].mxu0 %v1150
      %v1340 = vpop.f32.mrb[0].mxu0
      %v1341 = vadd.f32 0.0, %v1340
      %v1342 = vpop.f32.mrb[0].mxu0
      %v1343 = vadd.f32 0.0, %v1342
      %1344 = vmatprep.mubr.f32.mxu0 %v1154
      %1345 = vmatmul.mubr.f32.gmra.mrb[0].mxu0 %v1153
      %v1346 = vpop.f32.mrb[0].mxu0
      %v1347 = vadd.f32 0.0, %v1346
      %v1348 = vpop.f32.mrb[0].mxu0
      %v1349 = vadd.f32 0.0, %v1348
      %1350 = vmatprep.mubr.f32.mxu0 %v1157
      %1351 = vmatmul.mubr.f32.gmra.mrb[0].mxu0 %v1156
      %v1352 = vpop.f32.mrb[0].mxu0
      %v1353 = vadd.f32 0.0, %v1352
      %v1354 = vpop.f32.mrb[0].mxu0
      %v1355 = vadd.f32 0.0, %v1354
      %1356 = vmatprep.mubr.f32.mxu0 %v1160
      %1357 = vmatmul.mubr.f32.gmra.mrb[0].mxu0 %v1159
      %v1358 = vpop.f32.mrb[0].mxu0
      %v1359 = vadd.f32 0.0, %v1358
      %v1360 = vpop.f32.mrb[0].mxu0
      %v1361 = vadd.f32 0.0, %v1360
      %1362 = vdwg.mxu0
      %1363 = vmatprep.subr.mxu0 %v1227
      %1364 = vmatpush1.msra.mxu0 %v1226
      %1365 = vmatprep.subr.mxu0 %v1229
      %1366 = vmatpush1.msra.mxu0 %v1228
      %1367 = vmatprep.subr.mxu0 %v1231
      %1368 = vmatpush1.msra.mxu0 %v1230
      %1369 = vmatprep.subr.mxu0 %v1233
      %1370 = vmatpush1.msra.mxu0 %v1232
      %1371 = vmatprep.subr.mxu0 %v1235
      %1372 = vmatpush1.msra.mxu0 %v1234
      %1373 = vmatprep.subr.mxu0 %v1237
      %1374 = vmatpush1.msra.mxu0 %v1236
      %1375 = vmatprep.subr.mxu0 %v1239
      %1376 = vmatpush1.msra.mxu0 %v1238
      %1377 = vmatprep.subr.mxu0 %v1241
      %1378 = vmatpush1.msra.mxu0 %v1240
      %1379 = vmatprep.subr.mxu0 %v1243
      %1380 = vmatpush1.msra.mxu0 %v1242
      %1381 = vmatprep.subr.mxu0 %v1245
      %1382 = vmatpush1.msra.mxu0 %v1244
      %1383 = vmatprep.subr.mxu0 %v1247
      %1384 = vmatpush1.msra.mxu0 %v1246
      %1385 = vmatprep.subr.mxu0 %v1249
      %1386 = vmatpush1.msra.mxu0 %v1248
      %1387 = vmatprep.subr.mxu0 %v1251
      %1388 = vmatpush1.msra.mxu0 %v1250
      %1389 = vmatprep.subr.mxu0 0.0
      %1390 = vmatpush1.msra.mxu0 0.0
      %1391 = vmatprep.subr.mxu0 0.0
      %1392 = vmatpush1.msra.mxu0 0.0
      %1393 = vmatprep.subr.mxu0 0.0
      %1394 = vmatpush1.msra.mxu0 0.0
      %1395 = vmatprep.subr.mxu0 0.0
      %1396 = vmatpush1.msra.mxu0 0.0
      %1397 = vmatprep.subr.mxu0 0.0
      %1398 = vmatpush1.msra.mxu0 0.0
      %1399 = vmatprep.subr.mxu0 0.0
      %1400 = vmatpush1.msra.mxu0 0.0
      %1401 = vmatprep.subr.mxu0 0.0
      %1402 = vmatpush1.msra.mxu0 0.0
      %1403 = vmatprep.subr.mxu0 0.0
      %1404 = vmatpush1.msra.mxu0 0.0
      %1405 = vmatprep.subr.mxu0 0.0
      %1406 = vmatpush1.msra.mxu0 0.0
      %1407 = vmatprep.subr.mxu0 0.0
      %1408 = vmatpush1.msra.mxu0 0.0
      %1409 = vmatprep.subr.mxu0 0.0
      %1410 = vmatpush1.msra.mxu0 0.0
      %1411 = vmatprep.subr.mxu0 0.0
      %1412 = vmatpush1.msra.mxu0 0.0
      %1413 = vmatprep.subr.mxu0 0.0
      %1414 = vmatpush1.msra.mxu0 0.0
      %1415 = vmatprep.subr.mxu0 0.0
      %1416 = vmatpush1.msra.mxu0 0.0
      %1417 = vmatprep.subr.mxu0 0.0
      %1418 = vmatpush1.msra.mxu0 0.0
      %1419 = vmatprep.subr.mxu0 0.0
      %1420 = vmatpush1.msra.mxu0 0.0
      %1421 = vmatprep.subr.mxu0 0.0
      %1422 = vmatpush1.msra.mxu0 0.0
      %1423 = vmatprep.subr.mxu0 0.0
      %1424 = vmatpush1.msra.mxu0 0.0
      %1425 = vmatprep.subr.mxu0 0.0
      %1426 = vmatpush1.msra.mxu0 0.0
      %1427 = vmatprep.mubr.f32.mxu0 0.0
      %1428 = vmatmul.mubr.f32.gmra.mrb[0].mxu0 %v1254
      %v1429 = vpop.f32.mrb[0].mxu0
      %v1430 = vadd.f32 %v1335, %v1429
      %v1431 = vpop.f32.mrb[0].mxu0
      %v1432 = vadd.f32 %v1337, %v1431
      %1433 = vmatprep.mubr.f32.mxu0 0.0
      %1434 = vmatmul.mubr.f32.gmra.mrb[0].mxu0 %v1257
      %v1435 = vpop.f32.mrb[0].mxu0
      %v1436 = vadd.f32 %v1341, %v1435
      %v1437 = vpop.f32.mrb[0].mxu0
      %v1438 = vadd.f32 %v1343, %v1437
      %1439 = vmatprep.mubr.f32.mxu0 0.0
      %1440 = vmatmul.mubr.f32.gmra.mrb[0].mxu0 %v1260
      %v1441 = vpop.f32.mrb[0].mxu0
      %v1442 = vadd.f32 %v1347, %v1441
      %v1443 = vpop.f32.mrb[0].mxu0
      %v1444 = vadd.f32 %v1349, %v1443
      %1445 = vmatprep.mubr.f32.mxu0 0.0
      %1446 = vmatmul.mubr.f32.gmra.mrb[0].mxu0 %v1263
      %v1447 = vpop.f32.mrb[0].mxu0
      %v1448 = vadd.f32 %v1353, %v1447
      %v1449 = vpop.f32.mrb[0].mxu0
      %v1450 = vadd.f32 %v1355, %v1449
      %1451 = vmatprep.mubr.f32.mxu0 0.0
      %1452 = vmatmul.mubr.f32.gmra.mrb[0].mxu0 %v1266
      %v1453 = vpop.f32.mrb[0].mxu0
      %v1454 = vadd.f32 %v1359, %v1453
      %v1455 = vpop.f32.mrb[0].mxu0
      %v1456 = vadd.f32 %v1361, %v1455
      %1457 = vdwg.mxu0
      %v1458 = vmul.f32 %v1430, %v1430
      %v1459 = vmul.f32 %v1432, %v1432
      %v1460 = vmul.f32 %v1436, %v1436
      %v1461 = vmul.f32 %v1438, %v1438
      %v1462 = vmul.f32 %v1442, %v1442
      %v1463 = vmul.f32 %v1444, %v1444
      %v1464 = vmul.f32 %v1448, %v1448
      %v1465 = vmul.f32 %v1450, %v1450
      %v1466 = vmul.f32 %v1454, %v1454
      %v1467 = vmul.f32 %v1456, %v1456
      %v1468 = vadd.f32 %v1458, %v1459
      %1469 = vadd.xlane.f32.xlu0 %v1468
      %v1470 = vpop.xlane.xlu0 %1469
      %v1471 = vadd.f32 %v1460, %v1461
      %1472 = vadd.xlane.f32.xlu0 %v1471
      %v1473 = vpop.xlane.xlu0 %1472
      %v1474 = vadd.f32 %v1462, %v1463
      %1475 = vadd.xlane.f32.xlu0 %v1474
      %v1476 = vpop.xlane.xlu0 %1475
      %v1477 = vadd.f32 %v1464, %v1465
      %1478 = vadd.xlane.f32.xlu0 %v1477
      %v1479 = vpop.xlane.xlu0 %1478
      %v1480 = vadd.f32 %v1466, %v1467
      %1481 = vadd.xlane.f32.xlu0 %v1480
      %v1482 = vpop.xlane.xlu0 %1481
      %v1483 = vmax.f32 %v1470, 1e-24
      %v1484 = vmax.f32 %v1473, 1e-24
      %v1485 = vmax.f32 %v1476, 1e-24
      %v1486 = vmax.f32 %v1479, 1e-24
      %v1487 = vmax.f32 %v1482, 1e-24
      %v1488 = vrsqrt.pop %v1483
      %v1489 = vrsqrt.pop %v1484
      %v1490 = vrsqrt.pop %v1485
      %v1491 = vrsqrt.pop %v1486
      %v1492 = vrsqrt.pop %v1487
      %v1493 = vmul.f32 %v1488, 0.15811388
      %v1494 = vmul.f32 %v1489, 0.15811388
      %v1495 = vmul.f32 %v1490, 0.15811388
      %v1496 = vmul.f32 %v1491, 0.15811388
      %v1497 = vmul.f32 %v1492, 0.15811388
      %v1498 = vmul.f32 %v1430, %v1493
      %v1499 = vmul.f32 %v1432, %v1493
      %v1500 = vmul.f32 %v1436, %v1494
      %v1501 = vmul.f32 %v1438, %v1494
      %v1502 = vmul.f32 %v1442, %v1495
      %v1503 = vmul.f32 %v1444, %v1495
      %v1504 = vmul.f32 %v1448, %v1496
      %v1505 = vmul.f32 %v1450, %v1496
      %v1506 = vmul.f32 %v1454, %v1497
      %v1507 = vmul.f32 %v1456, %v1497
      %1508 = vst [vmem:[#allocation3] sm:$0xff] %v1498
      %1509 = vst [vmem:[#allocation3 + $0x8] sm:$0xff] %v1499
      %1510 = vst [vmem:[#allocation3 + $0x10] sm:$0xff] %v1500
      %1511 = vst [vmem:[#allocation3 + $0x18] sm:$0xff] %v1501
      %1512 = vst [vmem:[#allocation3 + $0x20] sm:$0xff] %v1502
      %1513 = vst [vmem:[#allocation3 + $0x28] sm:$0xff] %v1503
      %1514 = vst [vmem:[#allocation3 + $0x30] sm:$0xff] %v1504
      %1515 = vst [vmem:[#allocation3 + $0x38] sm:$0xff] %v1505
      %1516 = vst [vmem:[#allocation3 + $0x40] sm:$0xff] %v1506
      %1517 = vst [vmem:[#allocation3 + $0x48] sm:$0xff] %v1507
      %v1518 = vld [vmem:[%s564] sm:$0xff]
      %v1519 = vld [vmem:[%s564 + $0x8] sm:$0xff]
      %v1520 = vld [vmem:[%s564 + $0x10] sm:$0xff]
      %v1521 = vld [vmem:[%s564 + $0x18] sm:$0xff]
      %v1522 = vld [vmem:[%s564 + $0x20] sm:$0xff]
      %v1523 = vld [vmem:[%s564 + $0x28] sm:$0xff]
      %v1524 = vld [vmem:[%s564 + $0x30] sm:$0xff]
      %v1525 = vld [vmem:[%s564 + $0x38] sm:$0xff]
      %v1526 = vld [vmem:[%s564 + $0x40] sm:$0xff]
      %v1527 = vld [vmem:[%s564 + $0x48] sm:$0xff]
      %v1528 = vld [vmem:[%s7] sm:$0xff]
      %v1529 = vld [vmem:[%s7 + $0x8] sm:$0xff]
      %v1530 = vld [vmem:[%s7 + $0x10] sm:$0xff]
      %v1531 = vld [vmem:[%s7 + $0x18] sm:$0xff]
      %v1532 = vld [vmem:[%s7 + $0x20] sm:$0xff]
      %v1533 = vld [vmem:[%s7 + $0x28] sm:$0xff]
      %v1534 = vld [vmem:[%s7 + $0x30] sm:$0xff]
      %v1535 = vld [vmem:[%s7 + $0x38] sm:$0xff]
      %v1536 = vld [vmem:[%s7 + $0x40] sm:$0xff]
      %v1537 = vld [vmem:[%s7 + $0x48] sm:$0xff]
      %vm1538 = vcmask 326656
      %v1540 = vsel %vm1538, %v1528, 0
      %v1543 = vsel %vm1538, %v1529, 0
      %v1546 = vsel %vm1538, %v1530, 0
      %v1549 = vsel %vm1538, %v1531, 0
      %v1552 = vsel %vm1538, %v1532, 0
      %v1555 = vsel %vm1538, %v1533, 0
      %v1558 = vsel %vm1538, %v1534, 0
      %v1561 = vsel %vm1538, %v1535, 0
      %v1564 = vsel %vm1538, %v1536, 0
      %v1567 = vsel %vm1538, %v1537, 0
      %1569 = vmatprep.subr.mxu0 %v1519
      %1570 = vmatpush1.msra.mxu0 %v1518
      %1571 = vmatprep.subr.mxu0 %v1521
      %1572 = vmatpush1.msra.mxu0 %v1520
      %1573 = vmatprep.subr.mxu0 %v1523
      %1574 = vmatpush1.msra.mxu0 %v1522
      %1575 = vmatprep.subr.mxu0 %v1525
      %1576 = vmatpush1.msra.mxu0 %v1524
      %1577 = vmatprep.subr.mxu0 %v1527
      %1578 = vmatpush1.msra.mxu0 %v1526
      %1579 = vmatprep.subr.mxu0 0.0
      %1580 = vmatpush1.msra.mxu0 0.0
      %1581 = vmatprep.subr.mxu0 0.0
      %1582 = vmatpush1.msra.mxu0 0.0
      %1583 = vmatprep.subr.mxu0 0.0
      %1584 = vmatpush1.msra.mxu0 0.0
      %1585 = vmatprep.subr.mxu0 0.0
      %1586 = vmatpush1.msra.mxu0 0.0
      %1587 = vmatprep.subr.mxu0 0.0
      %1588 = vmatpush1.msra.mxu0 0.0
      %1589 = vmatprep.subr.mxu0 0.0
      %1590 = vmatpush1.msra.mxu0 0.0
      %1591 = vmatprep.subr.mxu0 0.0
      %1592 = vmatpush1.msra.mxu0 0.0
      %1593 = vmatprep.subr.mxu0 0.0
      %1594 = vmatpush1.msra.mxu0 0.0
      %1595 = vmatprep.subr.mxu0 0.0
      %1596 = vmatpush1.msra.mxu0 0.0
      %1597 = vmatprep.subr.mxu0 0.0
      %1598 = vmatpush1.msra.mxu0 0.0
      %1599 = vmatprep.subr.mxu0 0.0
      %1600 = vmatpush1.msra.mxu0 0.0
      %1601 = vmatprep.subr.mxu0 0.0
      %1602 = vmatpush1.msra.mxu0 0.0
      %1603 = vmatprep.subr.mxu0 0.0
      %1604 = vmatpush1.msra.mxu0 0.0
      %1605 = vmatprep.subr.mxu0 0.0
      %1606 = vmatpush1.msra.mxu0 0.0
      %1607 = vmatprep.subr.mxu0 0.0
      %1608 = vmatpush1.msra.mxu0 0.0
      %1609 = vmatprep.subr.mxu0 0.0
      %1610 = vmatpush1.msra.mxu0 0.0
      %1611 = vmatprep.subr.mxu0 0.0
      %1612 = vmatpush1.msra.mxu0 0.0
      %1613 = vmatprep.subr.mxu0 0.0
      %1614 = vmatpush1.msra.mxu0 0.0
      %1615 = vmatprep.subr.mxu0 0.0
      %1616 = vmatpush1.msra.mxu0 0.0
      %1617 = vmatprep.subr.mxu0 0.0
      %1618 = vmatpush1.msra.mxu0 0.0
      %1619 = vmatprep.subr.mxu0 0.0
      %1620 = vmatpush1.msra.mxu0 0.0
      %1621 = vmatprep.subr.mxu0 0.0
      %1622 = vmatpush1.msra.mxu0 0.0
      %1623 = vmatprep.subr.mxu0 0.0
      %1624 = vmatpush1.msra.mxu0 0.0
      %1625 = vmatprep.subr.mxu0 0.0
      %1626 = vmatpush1.msra.mxu0 0.0
      %1627 = vmatprep.subr.mxu0 0.0
      %1628 = vmatpush1.msra.mxu0 0.0
      %1629 = vmatprep.subr.mxu0 0.0
      %1630 = vmatpush1.msra.mxu0 0.0
      %1631 = vmatprep.subr.mxu0 0.0
      %1632 = vmatpush1.msra.mxu0 0.0
      %1633 = vmatprep.mubr.f32.mxu0 0.0
      %1634 = vmatmul.mubr.f32.gmra.mrb[0].mxu0 %v1540
      %v1635 = vpop.f32.mrb[0].mxu0
      %v1636 = vadd.f32 0.0, %v1635
      %v1637 = vpop.f32.mrb[0].mxu0
      %v1638 = vadd.f32 0.0, %v1637
      %1639 = vmatprep.mubr.f32.mxu0 0.0
      %1640 = vmatmul.mubr.f32.gmra.mrb[0].mxu0 %v1543
      %v1641 = vpop.f32.mrb[0].mxu0
      %v1642 = vadd.f32 0.0, %v1641
      %v1643 = vpop.f32.mrb[0].mxu0
      %v1644 = vadd.f32 0.0, %v1643
      %1645 = vmatprep.mubr.f32.mxu0 0.0
      %1646 = vmatmul.mubr.f32.gmra.mrb[0].mxu0 %v1546
      %v1647 = vpop.f32.mrb[0].mxu0
      %v1648 = vadd.f32 0.0, %v1647
      %v1649 = vpop.f32.mrb[0].mxu0
      %v1650 = vadd.f32 0.0, %v1649
      %1651 = vmatprep.mubr.f32.mxu0 0.0
      %1652 = vmatmul.mubr.f32.gmra.mrb[0].mxu0 %v1549
      %v1653 = vpop.f32.mrb[0].mxu0
      %v1654 = vadd.f32 0.0, %v1653
      %v1655 = vpop.f32.mrb[0].mxu0
      %v1656 = vadd.f32 0.0, %v1655
      %1657 = vmatprep.mubr.f32.mxu0 0.0
      %1658 = vmatmul.mubr.f32.gmra.mrb[0].mxu0 %v1552
      %v1659 = vpop.f32.mrb[0].mxu0
      %v1660 = vadd.f32 0.0, %v1659
      %v1661 = vpop.f32.mrb[0].mxu0
      %v1662 = vadd.f32 0.0, %v1661
      %1663 = vmatprep.mubr.f32.mxu0 0.0
      %1664 = vmatmul.mubr.f32.gmra.mrb[0].mxu0 %v1555
      %v1665 = vpop.f32.mrb[0].mxu0
      %v1666 = vadd.f32 0.0, %v1665
      %v1667 = vpop.f32.mrb[0].mxu0
      %v1668 = vadd.f32 0.0, %v1667
      %1669 = vmatprep.mubr.f32.mxu0 0.0
      %1670 = vmatmul.mubr.f32.gmra.mrb[0].mxu0 %v1558
      %v1671 = vpop.f32.mrb[0].mxu0
      %v1672 = vadd.f32 0.0, %v1671
      %v1673 = vpop.f32.mrb[0].mxu0
      %v1674 = vadd.f32 0.0, %v1673
      %1675 = vmatprep.mubr.f32.mxu0 0.0
      %1676 = vmatmul.mubr.f32.gmra.mrb[0].mxu0 %v1561
      %v1677 = vpop.f32.mrb[0].mxu0
      %v1678 = vadd.f32 0.0, %v1677
      %v1679 = vpop.f32.mrb[0].mxu0
      %v1680 = vadd.f32 0.0, %v1679
      %1681 = vmatprep.mubr.f32.mxu0 0.0
      %1682 = vmatmul.mubr.f32.gmra.mrb[0].mxu0 %v1564
      %v1683 = vpop.f32.mrb[0].mxu0
      %v1684 = vadd.f32 0.0, %v1683
      %v1685 = vpop.f32.mrb[0].mxu0
      %v1686 = vadd.f32 0.0, %v1685
      %1687 = vmatprep.mubr.f32.mxu0 0.0
      %1688 = vmatmul.mubr.f32.gmra.mrb[0].mxu0 %v1567
      %v1689 = vpop.f32.mrb[0].mxu0
      %v1690 = vadd.f32 0.0, %v1689
      %v1691 = vpop.f32.mrb[0].mxu0
      %v1692 = vadd.f32 0.0, %v1691
      %1693 = vdwg.mxu0
      %s1694 = scalar_lea.vmem %s8, 640
      %v1695 = vld [vmem:[%s1694] sm:$0xff]
      %v1696 = vld [vmem:[%s1694 + $0x8] sm:$0xff]
      %v1697 = vld [vmem:[%s1694 + $0x10] sm:$0xff]
      %v1698 = vld [vmem:[%s1694 + $0x18] sm:$0xff]
      %v1699 = vld [vmem:[%s1694 + $0x20] sm:$0xff]
      %v1700 = vld [vmem:[%s1694 + $0x28] sm:$0xff]
      %v1701 = vld [vmem:[%s1694 + $0x30] sm:$0xff]
      %v1702 = vld [vmem:[%s1694 + $0x38] sm:$0xff]
      %v1703 = vld [vmem:[%s1694 + $0x40] sm:$0xff]
      %v1704 = vld [vmem:[%s1694 + $0x48] sm:$0xff]
      %v1705 = vld [vmem:[%s1694 + $0x50] sm:$0xff]
      %v1706 = vld [vmem:[%s1694 + $0x58] sm:$0xff]
      %v1707 = vld [vmem:[%s1694 + $0x60] sm:$0xff]
      %v1708 = vld [vmem:[%s1694 + $0x68] sm:$0xff]
      %v1709 = vld [vmem:[%s1694 + $0x70] sm:$0xff]
      %v1710 = vld [vmem:[%s1694 + $0x78] sm:$0xff]
      %v1711 = vld [vmem:[%s1694 + $0x80] sm:$0xff]
      %v1712 = vld [vmem:[%s1694 + $0x88] sm:$0xff]
      %v1713 = vld [vmem:[%s1694 + $0x90] sm:$0xff]
      %v1714 = vld [vmem:[%s1694 + $0x98] sm:$0xff]
      %v1715 = vmul.f32 %v1636, %v1695
      %v1716 = vmul.f32 %v1638, %v1696
      %v1717 = vmul.f32 %v1642, %v1697
      %v1718 = vmul.f32 %v1644, %v1698
      %v1719 = vmul.f32 %v1648, %v1699
      %v1720 = vmul.f32 %v1650, %v1700
      %v1721 = vmul.f32 %v1654, %v1701
      %v1722 = vmul.f32 %v1656, %v1702
      %v1723 = vmul.f32 %v1660, %v1703
      %v1724 = vmul.f32 %v1662, %v1704
      %v1725 = vmul.f32 %v1666, %v1705
      %v1726 = vmul.f32 %v1668, %v1706
      %v1727 = vmul.f32 %v1672, %v1707
      %v1728 = vmul.f32 %v1674, %v1708
      %v1729 = vmul.f32 %v1678, %v1709
      %v1730 = vmul.f32 %v1680, %v1710
      %v1731 = vmul.f32 %v1684, %v1711
      %v1732 = vmul.f32 %v1686, %v1712
      %v1733 = vmul.f32 %v1690, %v1713
      %v1734 = vmul.f32 %v1692, %v1714
      %1735 = vst [vmem:[#allocation4] sm:$0xff] %v1715
      %1736 = vst [vmem:[#allocation4 + $0x8] sm:$0xff] %v1716
      %1737 = vst [vmem:[#allocation4 + $0x10] sm:$0xff] %v1717
      %1738 = vst [vmem:[#allocation4 + $0x18] sm:$0xff] %v1718
      %1739 = vst [vmem:[#allocation4 + $0x20] sm:$0xff] %v1719
      %1740 = vst [vmem:[#allocation4 + $0x28] sm:$0xff] %v1720
      %1741 = vst [vmem:[#allocation4 + $0x30] sm:$0xff] %v1721
      %1742 = vst [vmem:[#allocation4 + $0x38] sm:$0xff] %v1722
      %1743 = vst [vmem:[#allocation4 + $0x40] sm:$0xff] %v1723
      %1744 = vst [vmem:[#allocation4 + $0x48] sm:$0xff] %v1724
      %1745 = vst [vmem:[#allocation4 + $0x50] sm:$0xff] %v1725
      %1746 = vst [vmem:[#allocation4 + $0x58] sm:$0xff] %v1726
      %1747 = vst [vmem:[#allocation4 + $0x60] sm:$0xff] %v1727
      %1748 = vst [vmem:[#allocation4 + $0x68] sm:$0xff] %v1728
      %1749 = vst [vmem:[#allocation4 + $0x70] sm:$0xff] %v1729
      %1750 = vst [vmem:[#allocation4 + $0x78] sm:$0xff] %v1730
      %1751 = vst [vmem:[#allocation4 + $0x80] sm:$0xff] %v1731
      %1752 = vst [vmem:[#allocation4 + $0x88] sm:$0xff] %v1732
      %1753 = vst [vmem:[#allocation4 + $0x90] sm:$0xff] %v1733
      %1754 = vst [vmem:[#allocation4 + $0x98] sm:$0xff] %v1734
      %v1755 = vld [vmem:[#allocation4] sm:$0xff]
      %v1756 = vld [vmem:[#allocation4 + $0x8] sm:$0xff]
      %v1757 = vld [vmem:[#allocation4 + $0x10] sm:$0xff]
      %v1758 = vld [vmem:[#allocation4 + $0x18] sm:$0xff]
      %v1759 = vld [vmem:[#allocation4 + $0x20] sm:$0xff]
      %v1760 = vld [vmem:[#allocation4 + $0x28] sm:$0xff]
      %v1761 = vld [vmem:[#allocation4 + $0x30] sm:$0xff]
      %v1762 = vld [vmem:[#allocation4 + $0x38] sm:$0xff]
      %v1763 = vld [vmem:[#allocation4 + $0x40] sm:$0xff]
      %v1764 = vld [vmem:[#allocation4 + $0x48] sm:$0xff]
      %v1765 = vld [vmem:[#allocation4 + $0x50] sm:$0xff]
      %v1766 = vld [vmem:[#allocation4 + $0x58] sm:$0xff]
      %v1767 = vld [vmem:[#allocation4 + $0x60] sm:$0xff]
      %v1768 = vld [vmem:[#allocation4 + $0x68] sm:$0xff]
      %v1769 = vld [vmem:[#allocation4 + $0x70] sm:$0xff]
      %v1770 = vld [vmem:[#allocation4 + $0x78] sm:$0xff]
      %v1771 = vld [vmem:[#allocation4 + $0x80] sm:$0xff]
      %v1772 = vld [vmem:[#allocation4 + $0x88] sm:$0xff]
      %v1773 = vld [vmem:[#allocation4 + $0x90] sm:$0xff]
      %v1774 = vld [vmem:[#allocation4 + $0x98] sm:$0xff]
      %v1775 = vld [vmem:[%s8] sm:$0xff]
      %v1776 = vld [vmem:[%s8 + $0x8] sm:$0xff]
      %v1777 = vld [vmem:[%s8 + $0x10] sm:$0xff]
      %v1778 = vld [vmem:[%s8 + $0x18] sm:$0xff]
      %v1779 = vld [vmem:[%s8 + $0x20] sm:$0xff]
      %v1780 = vld [vmem:[%s8 + $0x28] sm:$0xff]
      %v1781 = vld [vmem:[%s8 + $0x30] sm:$0xff]
      %v1782 = vld [vmem:[%s8 + $0x38] sm:$0xff]
      %v1783 = vld [vmem:[%s8 + $0x40] sm:$0xff]
      %v1784 = vld [vmem:[%s8 + $0x48] sm:$0xff]
      %v1785 = vld [vmem:[%s8 + $0x50] sm:$0xff]
      %v1786 = vld [vmem:[%s8 + $0x58] sm:$0xff]
      %v1787 = vld [vmem:[%s8 + $0x60] sm:$0xff]
      %v1788 = vld [vmem:[%s8 + $0x68] sm:$0xff]
      %v1789 = vld [vmem:[%s8 + $0x70] sm:$0xff]
      %v1790 = vld [vmem:[%s8 + $0x78] sm:$0xff]
      %v1791 = vld [vmem:[%s8 + $0x80] sm:$0xff]
      %v1792 = vld [vmem:[%s8 + $0x88] sm:$0xff]
      %v1793 = vld [vmem:[%s8 + $0x90] sm:$0xff]
      %v1794 = vld [vmem:[%s8 + $0x98] sm:$0xff]
      %1795 = vrot.lane.b32.xlu0 %v1636, 17
      %v1796 = vpop.permute.xlu0 %1795
      %1797 = vrot.lane.b32.xlu0 %v1642, 17
      %v1798 = vpop.permute.xlu0 %1797
      %1799 = vrot.lane.b32.xlu0 %v1648, 17
      %v1800 = vpop.permute.xlu0 %1799
      %1801 = vrot.lane.b32.xlu0 %v1654, 17
      %v1802 = vpop.permute.xlu0 %1801
      %1803 = vrot.lane.b32.xlu0 %v1660, 17
      %v1804 = vpop.permute.xlu0 %1803
      %1805 = vrot.lane.b32.xlu0 %v1666, 17
      %v1806 = vpop.permute.xlu0 %1805
      %1807 = vrot.lane.b32.xlu0 %v1672, 17
      %v1808 = vpop.permute.xlu0 %1807
      %1809 = vrot.lane.b32.xlu0 %v1678, 17
      %v1810 = vpop.permute.xlu0 %1809
      %1811 = vrot.lane.b32.xlu0 %v1684, 17
      %v1812 = vpop.permute.xlu0 %1811
      %1813 = vrot.lane.b32.xlu0 %v1690, 17
      %v1814 = vpop.permute.xlu0 %1813
      %1815 = vrot.lane.b32.xlu0 %v1638, 17
      %v1816 = vpop.permute.xlu0 %1815
      %1817 = vrot.lane.b32.xlu0 %v1644, 17
      %v1818 = vpop.permute.xlu0 %1817
      %1819 = vrot.lane.b32.xlu0 %v1650, 17
      %v1820 = vpop.permute.xlu0 %1819
      %1821 = vrot.lane.b32.xlu0 %v1656, 17
      %v1822 = vpop.permute.xlu0 %1821
      %1823 = vrot.lane.b32.xlu0 %v1662, 17
      %v1824 = vpop.permute.xlu0 %1823
      %1825 = vrot.lane.b32.xlu0 %v1668, 17
      %v1826 = vpop.permute.xlu0 %1825
      %1827 = vrot.lane.b32.xlu0 %v1674, 17
      %v1828 = vpop.permute.xlu0 %1827
      %1829 = vrot.lane.b32.xlu0 %v1680, 17
      %v1830 = vpop.permute.xlu0 %1829
      %1831 = vrot.lane.b32.xlu0 %v1686, 17
      %v1832 = vpop.permute.xlu0 %1831
      %1833 = vrot.lane.b32.xlu0 %v1692, 17
      %v1834 = vpop.permute.xlu0 %1833
      %v1835 = vsel %vm656, %v1796, %v1816
      %v1836 = vsel %vm656, %v1798, %v1818
      %v1837 = vsel %vm656, %v1800, %v1820
      %v1838 = vsel %vm656, %v1802, %v1822
      %v1839 = vsel %vm656, %v1804, %v1824
      %v1840 = vsel %vm656, %v1806, %v1826
      %v1841 = vsel %vm656, %v1808, %v1828
      %v1842 = vsel %vm656, %v1810, %v1830
      %v1843 = vsel %vm656, %v1812, %v1832
      %v1844 = vsel %vm656, %v1814, %v1834
      %v1845 = vsel %vm656, %v1816, %v1796
      %v1846 = vsel %vm656, %v1818, %v1798
      %v1847 = vsel %vm656, %v1820, %v1800
      %v1848 = vsel %vm656, %v1822, %v1802
      %v1849 = vsel %vm656, %v1824, %v1804
      %v1850 = vsel %vm656, %v1826, %v1806
      %v1851 = vsel %vm656, %v1828, %v1808
      %v1852 = vsel %vm656, %v1830, %v1810
      %v1853 = vsel %vm656, %v1832, %v1812
      %v1854 = vsel %vm656, %v1834, %v1814
      %v1855 = vmul.f32 %v1775, %v1845
      %v1856 = vmul.f32 %v1776, %v1835
      %v1857 = vmul.f32 %v1777, %v1846
      %v1858 = vmul.f32 %v1778, %v1836
      %v1859 = vmul.f32 %v1779, %v1847
      %v1860 = vmul.f32 %v1780, %v1837
      %v1861 = vmul.f32 %v1781, %v1848
      %v1862 = vmul.f32 %v1782, %v1838
      %v1863 = vmul.f32 %v1783, %v1849
      %v1864 = vmul.f32 %v1784, %v1839
      %v1865 = vmul.f32 %v1785, %v1850
      %v1866 = vmul.f32 %v1786, %v1840
      %v1867 = vmul.f32 %v1787, %v1851
      %v1868 = vmul.f32 %v1788, %v1841
      %v1869 = vmul.f32 %v1789, %v1852
      %v1870 = vmul.f32 %v1790, %v1842
      %v1871 = vmul.f32 %v1791, %v1853
      %v1872 = vmul.f32 %v1792, %v1843
      %v1873 = vmul.f32 %v1793, %v1854
      %v1874 = vmul.f32 %v1794, %v1844
      %v1875 = vadd.f32 %v1755, %v1855
      %v1876 = vadd.f32 %v1756, %v1856
      %v1877 = vadd.f32 %v1757, %v1857
      %v1878 = vadd.f32 %v1758, %v1858
      %v1879 = vadd.f32 %v1759, %v1859
      %v1880 = vadd.f32 %v1760, %v1860
      %v1881 = vadd.f32 %v1761, %v1861
      %v1882 = vadd.f32 %v1762, %v1862
      %v1883 = vadd.f32 %v1763, %v1863
      %v1884 = vadd.f32 %v1764, %v1864
      %v1885 = vadd.f32 %v1765, %v1865
      %v1886 = vadd.f32 %v1766, %v1866
      %v1887 = vadd.f32 %v1767, %v1867
      %v1888 = vadd.f32 %v1768, %v1868
      %v1889 = vadd.f32 %v1769, %v1869
      %v1890 = vadd.f32 %v1770, %v1870
      %v1891 = vadd.f32 %v1771, %v1871
      %v1892 = vadd.f32 %v1772, %v1872
      %v1893 = vadd.f32 %v1773, %v1873
      %v1894 = vadd.f32 %v1774, %v1874
      %1895 = vst [vmem:[#allocation4] sm:$0xff] %v1875
      %1896 = vst [vmem:[#allocation4 + $0x8] sm:$0xff] %v1876
      %1897 = vst [vmem:[#allocation4 + $0x10] sm:$0xff] %v1877
      %1898 = vst [vmem:[#allocation4 + $0x18] sm:$0xff] %v1878
      %1899 = vst [vmem:[#allocation4 + $0x20] sm:$0xff] %v1879
      %1900 = vst [vmem:[#allocation4 + $0x28] sm:$0xff] %v1880
      %1901 = vst [vmem:[#allocation4 + $0x30] sm:$0xff] %v1881
      %1902 = vst [vmem:[#allocation4 + $0x38] sm:$0xff] %v1882
      %1903 = vst [vmem:[#allocation4 + $0x40] sm:$0xff] %v1883
      %1904 = vst [vmem:[#allocation4 + $0x48] sm:$0xff] %v1884
      %1905 = vst [vmem:[#allocation4 + $0x50] sm:$0xff] %v1885
      %1906 = vst [vmem:[#allocation4 + $0x58] sm:$0xff] %v1886
      %1907 = vst [vmem:[#allocation4 + $0x60] sm:$0xff] %v1887
      %1908 = vst [vmem:[#allocation4 + $0x68] sm:$0xff] %v1888
      %1909 = vst [vmem:[#allocation4 + $0x70] sm:$0xff] %v1889
      %1910 = vst [vmem:[#allocation4 + $0x78] sm:$0xff] %v1890
      %1911 = vst [vmem:[#allocation4 + $0x80] sm:$0xff] %v1891
      %1912 = vst [vmem:[#allocation4 + $0x88] sm:$0xff] %v1892
      %1913 = vst [vmem:[#allocation4 + $0x90] sm:$0xff] %v1893
      %1914 = vst [vmem:[#allocation4 + $0x98] sm:$0xff] %v1894
      %v1915 = vld [vmem:[#allocation4] sm:$0xff]
      %v1916 = vld [vmem:[#allocation4 + $0x8] sm:$0xff]
      %v1917 = vld [vmem:[#allocation4 + $0x10] sm:$0xff]
      %v1918 = vld [vmem:[#allocation4 + $0x18] sm:$0xff]
      %v1919 = vld [vmem:[#allocation4 + $0x20] sm:$0xff]
      %v1920 = vld [vmem:[#allocation4 + $0x28] sm:$0xff]
      %v1921 = vld [vmem:[#allocation4 + $0x30] sm:$0xff]
      %v1922 = vld [vmem:[#allocation4 + $0x38] sm:$0xff]
      %v1923 = vld [vmem:[#allocation4 + $0x40] sm:$0xff]
      %v1924 = vld [vmem:[#allocation4 + $0x48] sm:$0xff]
      %v1925 = vld [vmem:[#allocation4 + $0x50] sm:$0xff]
      %v1926 = vld [vmem:[#allocation4 + $0x58] sm:$0xff]
      %v1927 = vld [vmem:[#allocation4 + $0x60] sm:$0xff]
      %v1928 = vld [vmem:[#allocation4 + $0x68] sm:$0xff]
      %v1929 = vld [vmem:[#allocation4 + $0x70] sm:$0xff]
      %v1930 = vld [vmem:[#allocation4 + $0x78] sm:$0xff]
      %v1931 = vld [vmem:[#allocation4 + $0x80] sm:$0xff]
      %v1932 = vld [vmem:[#allocation4 + $0x88] sm:$0xff]
      %v1933 = vld [vmem:[#allocation4 + $0x90] sm:$0xff]
      %v1934 = vld [vmem:[#allocation4 + $0x98] sm:$0xff]
      %s1935 = scalar_lea.vmem %s8, 160
      %v1936 = vld [vmem:[%s1935] sm:$0xff]
      %v1937 = vld [vmem:[%s1935 + $0x8] sm:$0xff]
      %v1938 = vld [vmem:[%s1935 + $0x10] sm:$0xff]
      %v1939 = vld [vmem:[%s1935 + $0x18] sm:$0xff]
      %v1940 = vld [vmem:[%s1935 + $0x20] sm:$0xff]
      %v1941 = vld [vmem:[%s1935 + $0x28] sm:$0xff]
      %v1942 = vld [vmem:[%s1935 + $0x30] sm:$0xff]
      %v1943 = vld [vmem:[%s1935 + $0x38] sm:$0xff]
      %v1944 = vld [vmem:[%s1935 + $0x40] sm:$0xff]
      %v1945 = vld [vmem:[%s1935 + $0x48] sm:$0xff]
      %v1946 = vld [vmem:[%s1935 + $0x50] sm:$0xff]
      %v1947 = vld [vmem:[%s1935 + $0x58] sm:$0xff]
      %v1948 = vld [vmem:[%s1935 + $0x60] sm:$0xff]
      %v1949 = vld [vmem:[%s1935 + $0x68] sm:$0xff]
      %v1950 = vld [vmem:[%s1935 + $0x70] sm:$0xff]
      %v1951 = vld [vmem:[%s1935 + $0x78] sm:$0xff]
      %v1952 = vld [vmem:[%s1935 + $0x80] sm:$0xff]
      %v1953 = vld [vmem:[%s1935 + $0x88] sm:$0xff]
      %v1954 = vld [vmem:[%s1935 + $0x90] sm:$0xff]
      %v1955 = vld [vmem:[%s1935 + $0x98] sm:$0xff]
      %1956 = vrot.lane.b32.xlu0 %v1636, 16
      %v1957 = vpop.permute.xlu0 %1956
      %1958 = vrot.lane.b32.xlu0 %v1642, 16
      %v1959 = vpop.permute.xlu0 %1958
      %1960 = vrot.lane.b32.xlu0 %v1648, 16
      %v1961 = vpop.permute.xlu0 %1960
      %1962 = vrot.lane.b32.xlu0 %v1654, 16
      %v1963 = vpop.permute.xlu0 %1962
      %1964 = vrot.lane.b32.xlu0 %v1660, 16
      %v1965 = vpop.permute.xlu0 %1964
      %1966 = vrot.lane.b32.xlu0 %v1666, 16
      %v1967 = vpop.permute.xlu0 %1966
      %1968 = vrot.lane.b32.xlu0 %v1672, 16
      %v1969 = vpop.permute.xlu0 %1968
      %1970 = vrot.lane.b32.xlu0 %v1678, 16
      %v1971 = vpop.permute.xlu0 %1970
      %1972 = vrot.lane.b32.xlu0 %v1684, 16
      %v1973 = vpop.permute.xlu0 %1972
      %1974 = vrot.lane.b32.xlu0 %v1690, 16
      %v1975 = vpop.permute.xlu0 %1974
      %1976 = vrot.lane.b32.xlu0 %v1638, 16
      %v1977 = vpop.permute.xlu0 %1976
      %1978 = vrot.lane.b32.xlu0 %v1644, 16
      %v1979 = vpop.permute.xlu0 %1978
      %1980 = vrot.lane.b32.xlu0 %v1650, 16
      %v1981 = vpop.permute.xlu0 %1980
      %1982 = vrot.lane.b32.xlu0 %v1656, 16
      %v1983 = vpop.permute.xlu0 %1982
      %1984 = vrot.lane.b32.xlu0 %v1662, 16
      %v1985 = vpop.permute.xlu0 %1984
      %1986 = vrot.lane.b32.xlu0 %v1668, 16
      %v1987 = vpop.permute.xlu0 %1986
      %1988 = vrot.lane.b32.xlu0 %v1674, 16
      %v1989 = vpop.permute.xlu0 %1988
      %1990 = vrot.lane.b32.xlu0 %v1680, 16
      %v1991 = vpop.permute.xlu0 %1990
      %1992 = vrot.lane.b32.xlu0 %v1686, 16
      %v1993 = vpop.permute.xlu0 %1992
      %1994 = vrot.lane.b32.xlu0 %v1692, 16
      %v1995 = vpop.permute.xlu0 %1994
      %v1996 = vsel %vm719, %v1957, %v1977
      %v1997 = vsel %vm719, %v1959, %v1979
      %v1998 = vsel %vm719, %v1961, %v1981
      %v1999 = vsel %vm719, %v1963, %v1983
      %v2000 = vsel %vm719, %v1965, %v1985
      %v2001 = vsel %vm719, %v1967, %v1987
      %v2002 = vsel %vm719, %v1969, %v1989
      %v2003 = vsel %vm719, %v1971, %v1991
      %v2004 = vsel %vm719, %v1973, %v1993
      %v2005 = vsel %vm719, %v1975, %v1995
      %v2006 = vsel %vm719, %v1977, %v1957
      %v2007 = vsel %vm719, %v1979, %v1959
      %v2008 = vsel %vm719, %v1981, %v1961
      %v2009 = vsel %vm719, %v1983, %v1963
      %v2010 = vsel %vm719, %v1985, %v1965
      %v2011 = vsel %vm719, %v1987, %v1967
      %v2012 = vsel %vm719, %v1989, %v1969
      %v2013 = vsel %vm719, %v1991, %v1971
      %v2014 = vsel %vm719, %v1993, %v1973
      %v2015 = vsel %vm719, %v1995, %v1975
      %v2016 = vmul.f32 %v1936, %v2006
      %v2017 = vmul.f32 %v1937, %v1996
      %v2018 = vmul.f32 %v1938, %v2007
      %v2019 = vmul.f32 %v1939, %v1997
      %v2020 = vmul.f32 %v1940, %v2008
      %v2021 = vmul.f32 %v1941, %v1998
      %v2022 = vmul.f32 %v1942, %v2009
      %v2023 = vmul.f32 %v1943, %v1999
      %v2024 = vmul.f32 %v1944, %v2010
      %v2025 = vmul.f32 %v1945, %v2000
      %v2026 = vmul.f32 %v1946, %v2011
      %v2027 = vmul.f32 %v1947, %v2001
      %v2028 = vmul.f32 %v1948, %v2012
      %v2029 = vmul.f32 %v1949, %v2002
      %v2030 = vmul.f32 %v1950, %v2013
      %v2031 = vmul.f32 %v1951, %v2003
      %v2032 = vmul.f32 %v1952, %v2014
      %v2033 = vmul.f32 %v1953, %v2004
      %v2034 = vmul.f32 %v1954, %v2015
      %v2035 = vmul.f32 %v1955, %v2005
      %v2036 = vadd.f32 %v1915, %v2016
      %v2037 = vadd.f32 %v1916, %v2017
      %v2038 = vadd.f32 %v1917, %v2018
      %v2039 = vadd.f32 %v1918, %v2019
      %v2040 = vadd.f32 %v1919, %v2020
      %v2041 = vadd.f32 %v1920, %v2021
      %v2042 = vadd.f32 %v1921, %v2022
      %v2043 = vadd.f32 %v1922, %v2023
      %v2044 = vadd.f32 %v1923, %v2024
      %v2045 = vadd.f32 %v1924, %v2025
      %v2046 = vadd.f32 %v1925, %v2026
      %v2047 = vadd.f32 %v1926, %v2027
      %v2048 = vadd.f32 %v1927, %v2028
      %v2049 = vadd.f32 %v1928, %v2029
      %v2050 = vadd.f32 %v1929, %v2030
      %v2051 = vadd.f32 %v1930, %v2031
      %v2052 = vadd.f32 %v1931, %v2032
      %v2053 = vadd.f32 %v1932, %v2033
      %v2054 = vadd.f32 %v1933, %v2034
      %v2055 = vadd.f32 %v1934, %v2035
      %2056 = vst [vmem:[#allocation4] sm:$0xff] %v2036
      %2057 = vst [vmem:[#allocation4 + $0x8] sm:$0xff] %v2037
      %2058 = vst [vmem:[#allocation4 + $0x10] sm:$0xff] %v2038
      %2059 = vst [vmem:[#allocation4 + $0x18] sm:$0xff] %v2039
      %2060 = vst [vmem:[#allocation4 + $0x20] sm:$0xff] %v2040
      %2061 = vst [vmem:[#allocation4 + $0x28] sm:$0xff] %v2041
      %2062 = vst [vmem:[#allocation4 + $0x30] sm:$0xff] %v2042
      %2063 = vst [vmem:[#allocation4 + $0x38] sm:$0xff] %v2043
      %2064 = vst [vmem:[#allocation4 + $0x40] sm:$0xff] %v2044
      %2065 = vst [vmem:[#allocation4 + $0x48] sm:$0xff] %v2045
      %2066 = vst [vmem:[#allocation4 + $0x50] sm:$0xff] %v2046
      %2067 = vst [vmem:[#allocation4 + $0x58] sm:$0xff] %v2047
      %2068 = vst [vmem:[#allocation4 + $0x60] sm:$0xff] %v2048
      %2069 = vst [vmem:[#allocation4 + $0x68] sm:$0xff] %v2049
      %2070 = vst [vmem:[#allocation4 + $0x70] sm:$0xff] %v2050
      %2071 = vst [vmem:[#allocation4 + $0x78] sm:$0xff] %v2051
      %2072 = vst [vmem:[#allocation4 + $0x80] sm:$0xff] %v2052
      %2073 = vst [vmem:[#allocation4 + $0x88] sm:$0xff] %v2053
      %2074 = vst [vmem:[#allocation4 + $0x90] sm:$0xff] %v2054
      %2075 = vst [vmem:[#allocation4 + $0x98] sm:$0xff] %v2055
      %v2076 = vld [vmem:[#allocation4] sm:$0xff]
      %v2077 = vld [vmem:[#allocation4 + $0x8] sm:$0xff]
      %v2078 = vld [vmem:[#allocation4 + $0x10] sm:$0xff]
      %v2079 = vld [vmem:[#allocation4 + $0x18] sm:$0xff]
      %v2080 = vld [vmem:[#allocation4 + $0x20] sm:$0xff]
      %v2081 = vld [vmem:[#allocation4 + $0x28] sm:$0xff]
      %v2082 = vld [vmem:[#allocation4 + $0x30] sm:$0xff]
      %v2083 = vld [vmem:[#allocation4 + $0x38] sm:$0xff]
      %v2084 = vld [vmem:[#allocation4 + $0x40] sm:$0xff]
      %v2085 = vld [vmem:[#allocation4 + $0x48] sm:$0xff]
      %v2086 = vld [vmem:[#allocation4 + $0x50] sm:$0xff]
      %v2087 = vld [vmem:[#allocation4 + $0x58] sm:$0xff]
      %v2088 = vld [vmem:[#allocation4 + $0x60] sm:$0xff]
      %v2089 = vld [vmem:[#allocation4 + $0x68] sm:$0xff]
      %v2090 = vld [vmem:[#allocation4 + $0x70] sm:$0xff]
      %v2091 = vld [vmem:[#allocation4 + $0x78] sm:$0xff]
      %v2092 = vld [vmem:[#allocation4 + $0x80] sm:$0xff]
      %v2093 = vld [vmem:[#allocation4 + $0x88] sm:$0xff]
      %v2094 = vld [vmem:[#allocation4 + $0x90] sm:$0xff]
      %v2095 = vld [vmem:[#allocation4 + $0x98] sm:$0xff]
      %s2096 = scalar_lea.vmem %s8, 320
      %v2097 = vld [vmem:[%s2096] sm:$0xff]
      %v2098 = vld [vmem:[%s2096 + $0x8] sm:$0xff]
      %v2099 = vld [vmem:[%s2096 + $0x10] sm:$0xff]
      %v2100 = vld [vmem:[%s2096 + $0x18] sm:$0xff]
      %v2101 = vld [vmem:[%s2096 + $0x20] sm:$0xff]
      %v2102 = vld [vmem:[%s2096 + $0x28] sm:$0xff]
      %v2103 = vld [vmem:[%s2096 + $0x30] sm:$0xff]
      %v2104 = vld [vmem:[%s2096 + $0x38] sm:$0xff]
      %v2105 = vld [vmem:[%s2096 + $0x40] sm:$0xff]
      %v2106 = vld [vmem:[%s2096 + $0x48] sm:$0xff]
      %v2107 = vld [vmem:[%s2096 + $0x50] sm:$0xff]
      %v2108 = vld [vmem:[%s2096 + $0x58] sm:$0xff]
      %v2109 = vld [vmem:[%s2096 + $0x60] sm:$0xff]
      %v2110 = vld [vmem:[%s2096 + $0x68] sm:$0xff]
      %v2111 = vld [vmem:[%s2096 + $0x70] sm:$0xff]
      %v2112 = vld [vmem:[%s2096 + $0x78] sm:$0xff]
      %v2113 = vld [vmem:[%s2096 + $0x80] sm:$0xff]
      %v2114 = vld [vmem:[%s2096 + $0x88] sm:$0xff]
      %v2115 = vld [vmem:[%s2096 + $0x90] sm:$0xff]
      %v2116 = vld [vmem:[%s2096 + $0x98] sm:$0xff]
      %2117 = vrot.lane.b32.xlu0 %v1636, 15
      %v2118 = vpop.permute.xlu0 %2117
      %2119 = vrot.lane.b32.xlu0 %v1642, 15
      %v2120 = vpop.permute.xlu0 %2119
      %2121 = vrot.lane.b32.xlu0 %v1648, 15
      %v2122 = vpop.permute.xlu0 %2121
      %2123 = vrot.lane.b32.xlu0 %v1654, 15
      %v2124 = vpop.permute.xlu0 %2123
      %2125 = vrot.lane.b32.xlu0 %v1660, 15
      %v2126 = vpop.permute.xlu0 %2125
      %2127 = vrot.lane.b32.xlu0 %v1666, 15
      %v2128 = vpop.permute.xlu0 %2127
      %2129 = vrot.lane.b32.xlu0 %v1672, 15
      %v2130 = vpop.permute.xlu0 %2129
      %2131 = vrot.lane.b32.xlu0 %v1678, 15
      %v2132 = vpop.permute.xlu0 %2131
      %2133 = vrot.lane.b32.xlu0 %v1684, 15
      %v2134 = vpop.permute.xlu0 %2133
      %2135 = vrot.lane.b32.xlu0 %v1690, 15
      %v2136 = vpop.permute.xlu0 %2135
      %2137 = vrot.lane.b32.xlu0 %v1638, 15
      %v2138 = vpop.permute.xlu0 %2137
      %2139 = vrot.lane.b32.xlu0 %v1644, 15
      %v2140 = vpop.permute.xlu0 %2139
      %2141 = vrot.lane.b32.xlu0 %v1650, 15
      %v2142 = vpop.permute.xlu0 %2141
      %2143 = vrot.lane.b32.xlu0 %v1656, 15
      %v2144 = vpop.permute.xlu0 %2143
      %2145 = vrot.lane.b32.xlu0 %v1662, 15
      %v2146 = vpop.permute.xlu0 %2145
      %2147 = vrot.lane.b32.xlu0 %v1668, 15
      %v2148 = vpop.permute.xlu0 %2147
      %2149 = vrot.lane.b32.xlu0 %v1674, 15
      %v2150 = vpop.permute.xlu0 %2149
      %2151 = vrot.lane.b32.xlu0 %v1680, 15
      %v2152 = vpop.permute.xlu0 %2151
      %2153 = vrot.lane.b32.xlu0 %v1686, 15
      %v2154 = vpop.permute.xlu0 %2153
      %2155 = vrot.lane.b32.xlu0 %v1692, 15
      %v2156 = vpop.permute.xlu0 %2155
      %v2157 = vsel %vm783, %v2118, %v2138
      %v2158 = vsel %vm783, %v2120, %v2140
      %v2159 = vsel %vm783, %v2122, %v2142
      %v2160 = vsel %vm783, %v2124, %v2144
      %v2161 = vsel %vm783, %v2126, %v2146
      %v2162 = vsel %vm783, %v2128, %v2148
      %v2163 = vsel %vm783, %v2130, %v2150
      %v2164 = vsel %vm783, %v2132, %v2152
      %v2165 = vsel %vm783, %v2134, %v2154
      %v2166 = vsel %vm783, %v2136, %v2156
      %v2167 = vsel %vm783, %v2138, %v2118
      %v2168 = vsel %vm783, %v2140, %v2120
      %v2169 = vsel %vm783, %v2142, %v2122
      %v2170 = vsel %vm783, %v2144, %v2124
      %v2171 = vsel %vm783, %v2146, %v2126
      %v2172 = vsel %vm783, %v2148, %v2128
      %v2173 = vsel %vm783, %v2150, %v2130
      %v2174 = vsel %vm783, %v2152, %v2132
      %v2175 = vsel %vm783, %v2154, %v2134
      %v2176 = vsel %vm783, %v2156, %v2136
      %v2177 = vmul.f32 %v2097, %v2167
      %v2178 = vmul.f32 %v2098, %v2157
      %v2179 = vmul.f32 %v2099, %v2168
      %v2180 = vmul.f32 %v2100, %v2158
      %v2181 = vmul.f32 %v2101, %v2169
      %v2182 = vmul.f32 %v2102, %v2159
      %v2183 = vmul.f32 %v2103, %v2170
      %v2184 = vmul.f32 %v2104, %v2160
      %v2185 = vmul.f32 %v2105, %v2171
      %v2186 = vmul.f32 %v2106, %v2161
      %v2187 = vmul.f32 %v2107, %v2172
      %v2188 = vmul.f32 %v2108, %v2162
      %v2189 = vmul.f32 %v2109, %v2173
      %v2190 = vmul.f32 %v2110, %v2163
      %v2191 = vmul.f32 %v2111, %v2174
      %v2192 = vmul.f32 %v2112, %v2164
      %v2193 = vmul.f32 %v2113, %v2175
      %v2194 = vmul.f32 %v2114, %v2165
      %v2195 = vmul.f32 %v2115, %v2176
      %v2196 = vmul.f32 %v2116, %v2166
      %v2197 = vadd.f32 %v2076, %v2177
      %v2198 = vadd.f32 %v2077, %v2178
      %v2199 = vadd.f32 %v2078, %v2179
      %v2200 = vadd.f32 %v2079, %v2180
      %v2201 = vadd.f32 %v2080, %v2181
      %v2202 = vadd.f32 %v2081, %v2182
      %v2203 = vadd.f32 %v2082, %v2183
      %v2204 = vadd.f32 %v2083, %v2184
      %v2205 = vadd.f32 %v2084, %v2185
      %v2206 = vadd.f32 %v2085, %v2186
      %v2207 = vadd.f32 %v2086, %v2187
      %v2208 = vadd.f32 %v2087, %v2188
      %v2209 = vadd.f32 %v2088, %v2189
      %v2210 = vadd.f32 %v2089, %v2190
      %v2211 = vadd.f32 %v2090, %v2191
      %v2212 = vadd.f32 %v2091, %v2192
      %v2213 = vadd.f32 %v2092, %v2193
      %v2214 = vadd.f32 %v2093, %v2194
      %v2215 = vadd.f32 %v2094, %v2195
      %v2216 = vadd.f32 %v2095, %v2196
      %2217 = vst [vmem:[#allocation4] sm:$0xff] %v2197
      %2218 = vst [vmem:[#allocation4 + $0x8] sm:$0xff] %v2198
      %2219 = vst [vmem:[#allocation4 + $0x10] sm:$0xff] %v2199
      %2220 = vst [vmem:[#allocation4 + $0x18] sm:$0xff] %v2200
      %2221 = vst [vmem:[#allocation4 + $0x20] sm:$0xff] %v2201
      %2222 = vst [vmem:[#allocation4 + $0x28] sm:$0xff] %v2202
      %2223 = vst [vmem:[#allocation4 + $0x30] sm:$0xff] %v2203
      %2224 = vst [vmem:[#allocation4 + $0x38] sm:$0xff] %v2204
      %2225 = vst [vmem:[#allocation4 + $0x40] sm:$0xff] %v2205
      %2226 = vst [vmem:[#allocation4 + $0x48] sm:$0xff] %v2206
      %2227 = vst [vmem:[#allocation4 + $0x50] sm:$0xff] %v2207
      %2228 = vst [vmem:[#allocation4 + $0x58] sm:$0xff] %v2208
      %2229 = vst [vmem:[#allocation4 + $0x60] sm:$0xff] %v2209
      %2230 = vst [vmem:[#allocation4 + $0x68] sm:$0xff] %v2210
      %2231 = vst [vmem:[#allocation4 + $0x70] sm:$0xff] %v2211
      %2232 = vst [vmem:[#allocation4 + $0x78] sm:$0xff] %v2212
      %2233 = vst [vmem:[#allocation4 + $0x80] sm:$0xff] %v2213
      %2234 = vst [vmem:[#allocation4 + $0x88] sm:$0xff] %v2214
      %2235 = vst [vmem:[#allocation4 + $0x90] sm:$0xff] %v2215
      %2236 = vst [vmem:[#allocation4 + $0x98] sm:$0xff] %v2216
      %v2237 = vld [vmem:[#allocation4] sm:$0xff]
      %v2238 = vld [vmem:[#allocation4 + $0x8] sm:$0xff]
      %v2239 = vld [vmem:[#allocation4 + $0x10] sm:$0xff]
      %v2240 = vld [vmem:[#allocation4 + $0x18] sm:$0xff]
      %v2241 = vld [vmem:[#allocation4 + $0x20] sm:$0xff]
      %v2242 = vld [vmem:[#allocation4 + $0x28] sm:$0xff]
      %v2243 = vld [vmem:[#allocation4 + $0x30] sm:$0xff]
      %v2244 = vld [vmem:[#allocation4 + $0x38] sm:$0xff]
      %v2245 = vld [vmem:[#allocation4 + $0x40] sm:$0xff]
      %v2246 = vld [vmem:[#allocation4 + $0x48] sm:$0xff]
      %v2247 = vld [vmem:[#allocation4 + $0x50] sm:$0xff]
      %v2248 = vld [vmem:[#allocation4 + $0x58] sm:$0xff]
      %v2249 = vld [vmem:[#allocation4 + $0x60] sm:$0xff]
      %v2250 = vld [vmem:[#allocation4 + $0x68] sm:$0xff]
      %v2251 = vld [vmem:[#allocation4 + $0x70] sm:$0xff]
      %v2252 = vld [vmem:[#allocation4 + $0x78] sm:$0xff]
      %v2253 = vld [vmem:[#allocation4 + $0x80] sm:$0xff]
      %v2254 = vld [vmem:[#allocation4 + $0x88] sm:$0xff]
      %v2255 = vld [vmem:[#allocation4 + $0x90] sm:$0xff]
      %v2256 = vld [vmem:[#allocation4 + $0x98] sm:$0xff]
      %s2257 = scalar_lea.vmem %s8, 480
      %v2258 = vld [vmem:[%s2257] sm:$0xff]
      %v2259 = vld [vmem:[%s2257 + $0x8] sm:$0xff]
      %v2260 = vld [vmem:[%s2257 + $0x10] sm:$0xff]
      %v2261 = vld [vmem:[%s2257 + $0x18] sm:$0xff]
      %v2262 = vld [vmem:[%s2257 + $0x20] sm:$0xff]
      %v2263 = vld [vmem:[%s2257 + $0x28] sm:$0xff]
      %v2264 = vld [vmem:[%s2257 + $0x30] sm:$0xff]
      %v2265 = vld [vmem:[%s2257 + $0x38] sm:$0xff]
      %v2266 = vld [vmem:[%s2257 + $0x40] sm:$0xff]
      %v2267 = vld [vmem:[%s2257 + $0x48] sm:$0xff]
      %v2268 = vld [vmem:[%s2257 + $0x50] sm:$0xff]
      %v2269 = vld [vmem:[%s2257 + $0x58] sm:$0xff]
      %v2270 = vld [vmem:[%s2257 + $0x60] sm:$0xff]
      %v2271 = vld [vmem:[%s2257 + $0x68] sm:$0xff]
      %v2272 = vld [vmem:[%s2257 + $0x70] sm:$0xff]
      %v2273 = vld [vmem:[%s2257 + $0x78] sm:$0xff]
      %v2274 = vld [vmem:[%s2257 + $0x80] sm:$0xff]
      %v2275 = vld [vmem:[%s2257 + $0x88] sm:$0xff]
      %v2276 = vld [vmem:[%s2257 + $0x90] sm:$0xff]
      %v2277 = vld [vmem:[%s2257 + $0x98] sm:$0xff]
      %2278 = vrot.lane.b32.xlu0 %v1636, 1
      %v2279 = vpop.permute.xlu0 %2278
      %2280 = vrot.lane.b32.xlu0 %v1642, 1
      %v2281 = vpop.permute.xlu0 %2280
      %2282 = vrot.lane.b32.xlu0 %v1648, 1
      %v2283 = vpop.permute.xlu0 %2282
      %2284 = vrot.lane.b32.xlu0 %v1654, 1
      %v2285 = vpop.permute.xlu0 %2284
      %2286 = vrot.lane.b32.xlu0 %v1660, 1
      %v2287 = vpop.permute.xlu0 %2286
      %2288 = vrot.lane.b32.xlu0 %v1666, 1
      %v2289 = vpop.permute.xlu0 %2288
      %2290 = vrot.lane.b32.xlu0 %v1672, 1
      %v2291 = vpop.permute.xlu0 %2290
      %2292 = vrot.lane.b32.xlu0 %v1678, 1
      %v2293 = vpop.permute.xlu0 %2292
      %2294 = vrot.lane.b32.xlu0 %v1684, 1
      %v2295 = vpop.permute.xlu0 %2294
      %2296 = vrot.lane.b32.xlu0 %v1690, 1
      %v2297 = vpop.permute.xlu0 %2296
      %2298 = vrot.lane.b32.xlu0 %v1638, 1
      %v2299 = vpop.permute.xlu0 %2298
      %2300 = vrot.lane.b32.xlu0 %v1644, 1
      %v2301 = vpop.permute.xlu0 %2300
      %2302 = vrot.lane.b32.xlu0 %v1650, 1
      %v2303 = vpop.permute.xlu0 %2302
      %2304 = vrot.lane.b32.xlu0 %v1656, 1
      %v2305 = vpop.permute.xlu0 %2304
      %2306 = vrot.lane.b32.xlu0 %v1662, 1
      %v2307 = vpop.permute.xlu0 %2306
      %2308 = vrot.lane.b32.xlu0 %v1668, 1
      %v2309 = vpop.permute.xlu0 %2308
      %2310 = vrot.lane.b32.xlu0 %v1674, 1
      %v2311 = vpop.permute.xlu0 %2310
      %2312 = vrot.lane.b32.xlu0 %v1680, 1
      %v2313 = vpop.permute.xlu0 %2312
      %2314 = vrot.lane.b32.xlu0 %v1686, 1
      %v2315 = vpop.permute.xlu0 %2314
      %2316 = vrot.lane.b32.xlu0 %v1692, 1
      %v2317 = vpop.permute.xlu0 %2316
      %v2318 = vsel %vm847, %v2279, %v2299
      %v2319 = vsel %vm847, %v2281, %v2301
      %v2320 = vsel %vm847, %v2283, %v2303
      %v2321 = vsel %vm847, %v2285, %v2305
      %v2322 = vsel %vm847, %v2287, %v2307
      %v2323 = vsel %vm847, %v2289, %v2309
      %v2324 = vsel %vm847, %v2291, %v2311
      %v2325 = vsel %vm847, %v2293, %v2313
      %v2326 = vsel %vm847, %v2295, %v2315
      %v2327 = vsel %vm847, %v2297, %v2317
      %v2328 = vsel %vm847, %v2299, %v2279
      %v2329 = vsel %vm847, %v2301, %v2281
      %v2330 = vsel %vm847, %v2303, %v2283
      %v2331 = vsel %vm847, %v2305, %v2285
      %v2332 = vsel %vm847, %v2307, %v2287
      %v2333 = vsel %vm847, %v2309, %v2289
      %v2334 = vsel %vm847, %v2311, %v2291
      %v2335 = vsel %vm847, %v2313, %v2293
      %v2336 = vsel %vm847, %v2315, %v2295
      %v2337 = vsel %vm847, %v2317, %v2297
      %v2338 = vmul.f32 %v2258, %v2328
      %v2339 = vmul.f32 %v2259, %v2318
      %v2340 = vmul.f32 %v2260, %v2329
      %v2341 = vmul.f32 %v2261, %v2319
      %v2342 = vmul.f32 %v2262, %v2330
      %v2343 = vmul.f32 %v2263, %v2320
      %v2344 = vmul.f32 %v2264, %v2331
      %v2345 = vmul.f32 %v2265, %v2321
      %v2346 = vmul.f32 %v2266, %v2332
      %v2347 = vmul.f32 %v2267, %v2322
      %v2348 = vmul.f32 %v2268, %v2333
      %v2349 = vmul.f32 %v2269, %v2323
      %v2350 = vmul.f32 %v2270, %v2334
      %v2351 = vmul.f32 %v2271, %v2324
      %v2352 = vmul.f32 %v2272, %v2335
      %v2353 = vmul.f32 %v2273, %v2325
      %v2354 = vmul.f32 %v2274, %v2336
      %v2355 = vmul.f32 %v2275, %v2326
      %v2356 = vmul.f32 %v2276, %v2337
      %v2357 = vmul.f32 %v2277, %v2327
      %v2358 = vadd.f32 %v2237, %v2338
      %v2359 = vadd.f32 %v2238, %v2339
      %v2360 = vadd.f32 %v2239, %v2340
      %v2361 = vadd.f32 %v2240, %v2341
      %v2362 = vadd.f32 %v2241, %v2342
      %v2363 = vadd.f32 %v2242, %v2343
      %v2364 = vadd.f32 %v2243, %v2344
      %v2365 = vadd.f32 %v2244, %v2345
      %v2366 = vadd.f32 %v2245, %v2346
      %v2367 = vadd.f32 %v2246, %v2347
      %v2368 = vadd.f32 %v2247, %v2348
      %v2369 = vadd.f32 %v2248, %v2349
      %v2370 = vadd.f32 %v2249, %v2350
      %v2371 = vadd.f32 %v2250, %v2351
      %v2372 = vadd.f32 %v2251, %v2352
      %v2373 = vadd.f32 %v2252, %v2353
      %v2374 = vadd.f32 %v2253, %v2354
      %v2375 = vadd.f32 %v2254, %v2355
      %v2376 = vadd.f32 %v2255, %v2356
      %v2377 = vadd.f32 %v2256, %v2357
      %2378 = vst [vmem:[#allocation4] sm:$0xff] %v2358
      %2379 = vst [vmem:[#allocation4 + $0x8] sm:$0xff] %v2359
      %2380 = vst [vmem:[#allocation4 + $0x10] sm:$0xff] %v2360
      %2381 = vst [vmem:[#allocation4 + $0x18] sm:$0xff] %v2361
      %2382 = vst [vmem:[#allocation4 + $0x20] sm:$0xff] %v2362
      %2383 = vst [vmem:[#allocation4 + $0x28] sm:$0xff] %v2363
      %2384 = vst [vmem:[#allocation4 + $0x30] sm:$0xff] %v2364
      %2385 = vst [vmem:[#allocation4 + $0x38] sm:$0xff] %v2365
      %2386 = vst [vmem:[#allocation4 + $0x40] sm:$0xff] %v2366
      %2387 = vst [vmem:[#allocation4 + $0x48] sm:$0xff] %v2367
      %2388 = vst [vmem:[#allocation4 + $0x50] sm:$0xff] %v2368
      %2389 = vst [vmem:[#allocation4 + $0x58] sm:$0xff] %v2369
      %2390 = vst [vmem:[#allocation4 + $0x60] sm:$0xff] %v2370
      %2391 = vst [vmem:[#allocation4 + $0x68] sm:$0xff] %v2371
      %2392 = vst [vmem:[#allocation4 + $0x70] sm:$0xff] %v2372
      %2393 = vst [vmem:[#allocation4 + $0x78] sm:$0xff] %v2373
      %2394 = vst [vmem:[#allocation4 + $0x80] sm:$0xff] %v2374
      %2395 = vst [vmem:[#allocation4 + $0x88] sm:$0xff] %v2375
      %2396 = vst [vmem:[#allocation4 + $0x90] sm:$0xff] %v2376
      %2397 = vst [vmem:[#allocation4 + $0x98] sm:$0xff] %v2377
      %v2398 = vld [vmem:[#allocation4] sm:$0xff]
      %v2399 = vld [vmem:[#allocation4 + $0x8] sm:$0xff]
      %v2400 = vld [vmem:[#allocation4 + $0x10] sm:$0xff]
      %v2401 = vld [vmem:[#allocation4 + $0x18] sm:$0xff]
      %v2402 = vld [vmem:[#allocation4 + $0x20] sm:$0xff]
      %v2403 = vld [vmem:[#allocation4 + $0x28] sm:$0xff]
      %v2404 = vld [vmem:[#allocation4 + $0x30] sm:$0xff]
      %v2405 = vld [vmem:[#allocation4 + $0x38] sm:$0xff]
      %v2406 = vld [vmem:[#allocation4 + $0x40] sm:$0xff]
      %v2407 = vld [vmem:[#allocation4 + $0x48] sm:$0xff]
      %v2408 = vld [vmem:[#allocation4 + $0x50] sm:$0xff]
      %v2409 = vld [vmem:[#allocation4 + $0x58] sm:$0xff]
      %v2410 = vld [vmem:[#allocation4 + $0x60] sm:$0xff]
      %v2411 = vld [vmem:[#allocation4 + $0x68] sm:$0xff]
      %v2412 = vld [vmem:[#allocation4 + $0x70] sm:$0xff]
      %v2413 = vld [vmem:[#allocation4 + $0x78] sm:$0xff]
      %v2414 = vld [vmem:[#allocation4 + $0x80] sm:$0xff]
      %v2415 = vld [vmem:[#allocation4 + $0x88] sm:$0xff]
      %v2416 = vld [vmem:[#allocation4 + $0x90] sm:$0xff]
      %v2417 = vld [vmem:[#allocation4 + $0x98] sm:$0xff]
      %s2418 = scalar_lea.vmem %s8, 800
      %v2419 = vld [vmem:[%s2418] sm:$0xff]
      %v2420 = vld [vmem:[%s2418 + $0x8] sm:$0xff]
      %v2421 = vld [vmem:[%s2418 + $0x10] sm:$0xff]
      %v2422 = vld [vmem:[%s2418 + $0x18] sm:$0xff]
      %v2423 = vld [vmem:[%s2418 + $0x20] sm:$0xff]
      %v2424 = vld [vmem:[%s2418 + $0x28] sm:$0xff]
      %v2425 = vld [vmem:[%s2418 + $0x30] sm:$0xff]
      %v2426 = vld [vmem:[%s2418 + $0x38] sm:$0xff]
      %v2427 = vld [vmem:[%s2418 + $0x40] sm:$0xff]
      %v2428 = vld [vmem:[%s2418 + $0x48] sm:$0xff]
      %v2429 = vld [vmem:[%s2418 + $0x50] sm:$0xff]
      %v2430 = vld [vmem:[%s2418 + $0x58] sm:$0xff]
      %v2431 = vld [vmem:[%s2418 + $0x60] sm:$0xff]
      %v2432 = vld [vmem:[%s2418 + $0x68] sm:$0xff]
      %v2433 = vld [vmem:[%s2418 + $0x70] sm:$0xff]
      %v2434 = vld [vmem:[%s2418 + $0x78] sm:$0xff]
      %v2435 = vld [vmem:[%s2418 + $0x80] sm:$0xff]
      %v2436 = vld [vmem:[%s2418 + $0x88] sm:$0xff]
      %v2437 = vld [vmem:[%s2418 + $0x90] sm:$0xff]
      %v2438 = vld [vmem:[%s2418 + $0x98] sm:$0xff]
      %2439 = vrot.lane.b32.xlu0 %v1636, 127
      %v2440 = vpop.permute.xlu0 %2439
      %2441 = vrot.lane.b32.xlu0 %v1642, 127
      %v2442 = vpop.permute.xlu0 %2441
      %2443 = vrot.lane.b32.xlu0 %v1648, 127
      %v2444 = vpop.permute.xlu0 %2443
      %2445 = vrot.lane.b32.xlu0 %v1654, 127
      %v2446 = vpop.permute.xlu0 %2445
      %2447 = vrot.lane.b32.xlu0 %v1660, 127
      %v2448 = vpop.permute.xlu0 %2447
      %2449 = vrot.lane.b32.xlu0 %v1666, 127
      %v2450 = vpop.permute.xlu0 %2449
      %2451 = vrot.lane.b32.xlu0 %v1672, 127
      %v2452 = vpop.permute.xlu0 %2451
      %2453 = vrot.lane.b32.xlu0 %v1678, 127
      %v2454 = vpop.permute.xlu0 %2453
      %2455 = vrot.lane.b32.xlu0 %v1684, 127
      %v2456 = vpop.permute.xlu0 %2455
      %2457 = vrot.lane.b32.xlu0 %v1690, 127
      %v2458 = vpop.permute.xlu0 %2457
      %2459 = vrot.lane.b32.xlu0 %v1638, 127
      %v2460 = vpop.permute.xlu0 %2459
      %2461 = vrot.lane.b32.xlu0 %v1644, 127
      %v2462 = vpop.permute.xlu0 %2461
      %2463 = vrot.lane.b32.xlu0 %v1650, 127
      %v2464 = vpop.permute.xlu0 %2463
      %2465 = vrot.lane.b32.xlu0 %v1656, 127
      %v2466 = vpop.permute.xlu0 %2465
      %2467 = vrot.lane.b32.xlu0 %v1662, 127
      %v2468 = vpop.permute.xlu0 %2467
      %2469 = vrot.lane.b32.xlu0 %v1668, 127
      %v2470 = vpop.permute.xlu0 %2469
      %2471 = vrot.lane.b32.xlu0 %v1674, 127
      %v2472 = vpop.permute.xlu0 %2471
      %2473 = vrot.lane.b32.xlu0 %v1680, 127
      %v2474 = vpop.permute.xlu0 %2473
      %2475 = vrot.lane.b32.xlu0 %v1686, 127
      %v2476 = vpop.permute.xlu0 %2475
      %2477 = vrot.lane.b32.xlu0 %v1692, 127
      %v2478 = vpop.permute.xlu0 %2477
      %v2479 = vsel %vm911, %v2440, %v2460
      %v2480 = vsel %vm911, %v2442, %v2462
      %v2481 = vsel %vm911, %v2444, %v2464
      %v2482 = vsel %vm911, %v2446, %v2466
      %v2483 = vsel %vm911, %v2448, %v2468
      %v2484 = vsel %vm911, %v2450, %v2470
      %v2485 = vsel %vm911, %v2452, %v2472
      %v2486 = vsel %vm911, %v2454, %v2474
      %v2487 = vsel %vm911, %v2456, %v2476
      %v2488 = vsel %vm911, %v2458, %v2478
      %v2489 = vsel %vm911, %v2460, %v2440
      %v2490 = vsel %vm911, %v2462, %v2442
      %v2491 = vsel %vm911, %v2464, %v2444
      %v2492 = vsel %vm911, %v2466, %v2446
      %v2493 = vsel %vm911, %v2468, %v2448
      %v2494 = vsel %vm911, %v2470, %v2450
      %v2495 = vsel %vm911, %v2472, %v2452
      %v2496 = vsel %vm911, %v2474, %v2454
      %v2497 = vsel %vm911, %v2476, %v2456
      %v2498 = vsel %vm911, %v2478, %v2458
      %v2499 = vmul.f32 %v2419, %v2479
      %v2500 = vmul.f32 %v2420, %v2489
      %v2501 = vmul.f32 %v2421, %v2480
      %v2502 = vmul.f32 %v2422, %v2490
      %v2503 = vmul.f32 %v2423, %v2481
      %v2504 = vmul.f32 %v2424, %v2491
      %v2505 = vmul.f32 %v2425, %v2482
      %v2506 = vmul.f32 %v2426, %v2492
      %v2507 = vmul.f32 %v2427, %v2483
      %v2508 = vmul.f32 %v2428, %v2493
      %v2509 = vmul.f32 %v2429, %v2484
      %v2510 = vmul.f32 %v2430, %v2494
      %v2511 = vmul.f32 %v2431, %v2485
      %v2512 = vmul.f32 %v2432, %v2495
      %v2513 = vmul.f32 %v2433, %v2486
      %v2514 = vmul.f32 %v2434, %v2496
      %v2515 = vmul.f32 %v2435, %v2487
      %v2516 = vmul.f32 %v2436, %v2497
      %v2517 = vmul.f32 %v2437, %v2488
      %v2518 = vmul.f32 %v2438, %v2498
      %v2519 = vadd.f32 %v2398, %v2499
      %v2520 = vadd.f32 %v2399, %v2500
      %v2521 = vadd.f32 %v2400, %v2501
      %v2522 = vadd.f32 %v2401, %v2502
      %v2523 = vadd.f32 %v2402, %v2503
      %v2524 = vadd.f32 %v2403, %v2504
      %v2525 = vadd.f32 %v2404, %v2505
      %v2526 = vadd.f32 %v2405, %v2506
      %v2527 = vadd.f32 %v2406, %v2507
      %v2528 = vadd.f32 %v2407, %v2508
      %v2529 = vadd.f32 %v2408, %v2509
      %v2530 = vadd.f32 %v2409, %v2510
      %v2531 = vadd.f32 %v2410, %v2511
      %v2532 = vadd.f32 %v2411, %v2512
      %v2533 = vadd.f32 %v2412, %v2513
      %v2534 = vadd.f32 %v2413, %v2514
      %v2535 = vadd.f32 %v2414, %v2515
      %v2536 = vadd.f32 %v2415, %v2516
      %v2537 = vadd.f32 %v2416, %v2517
      %v2538 = vadd.f32 %v2417, %v2518
      %2539 = vst [vmem:[#allocation4] sm:$0xff] %v2519
      %2540 = vst [vmem:[#allocation4 + $0x8] sm:$0xff] %v2520
      %2541 = vst [vmem:[#allocation4 + $0x10] sm:$0xff] %v2521
      %2542 = vst [vmem:[#allocation4 + $0x18] sm:$0xff] %v2522
      %2543 = vst [vmem:[#allocation4 + $0x20] sm:$0xff] %v2523
      %2544 = vst [vmem:[#allocation4 + $0x28] sm:$0xff] %v2524
      %2545 = vst [vmem:[#allocation4 + $0x30] sm:$0xff] %v2525
      %2546 = vst [vmem:[#allocation4 + $0x38] sm:$0xff] %v2526
      %2547 = vst [vmem:[#allocation4 + $0x40] sm:$0xff] %v2527
      %2548 = vst [vmem:[#allocation4 + $0x48] sm:$0xff] %v2528
      %2549 = vst [vmem:[#allocation4 + $0x50] sm:$0xff] %v2529
      %2550 = vst [vmem:[#allocation4 + $0x58] sm:$0xff] %v2530
      %2551 = vst [vmem:[#allocation4 + $0x60] sm:$0xff] %v2531
      %2552 = vst [vmem:[#allocation4 + $0x68] sm:$0xff] %v2532
      %2553 = vst [vmem:[#allocation4 + $0x70] sm:$0xff] %v2533
      %2554 = vst [vmem:[#allocation4 + $0x78] sm:$0xff] %v2534
      %2555 = vst [vmem:[#allocation4 + $0x80] sm:$0xff] %v2535
      %2556 = vst [vmem:[#allocation4 + $0x88] sm:$0xff] %v2536
      %2557 = vst [vmem:[#allocation4 + $0x90] sm:$0xff] %v2537
      %2558 = vst [vmem:[#allocation4 + $0x98] sm:$0xff] %v2538
      %v2559 = vld [vmem:[#allocation4] sm:$0xff]
      %v2560 = vld [vmem:[#allocation4 + $0x8] sm:$0xff]
      %v2561 = vld [vmem:[#allocation4 + $0x10] sm:$0xff]
      %v2562 = vld [vmem:[#allocation4 + $0x18] sm:$0xff]
      %v2563 = vld [vmem:[#allocation4 + $0x20] sm:$0xff]
      %v2564 = vld [vmem:[#allocation4 + $0x28] sm:$0xff]
      %v2565 = vld [vmem:[#allocation4 + $0x30] sm:$0xff]
      %v2566 = vld [vmem:[#allocation4 + $0x38] sm:$0xff]
      %v2567 = vld [vmem:[#allocation4 + $0x40] sm:$0xff]
      %v2568 = vld [vmem:[#allocation4 + $0x48] sm:$0xff]
      %v2569 = vld [vmem:[#allocation4 + $0x50] sm:$0xff]
      %v2570 = vld [vmem:[#allocation4 + $0x58] sm:$0xff]
      %v2571 = vld [vmem:[#allocation4 + $0x60] sm:$0xff]
      %v2572 = vld [vmem:[#allocation4 + $0x68] sm:$0xff]
      %v2573 = vld [vmem:[#allocation4 + $0x70] sm:$0xff]
      %v2574 = vld [vmem:[#allocation4 + $0x78] sm:$0xff]
      %v2575 = vld [vmem:[#allocation4 + $0x80] sm:$0xff]
      %v2576 = vld [vmem:[#allocation4 + $0x88] sm:$0xff]
      %v2577 = vld [vmem:[#allocation4 + $0x90] sm:$0xff]
      %v2578 = vld [vmem:[#allocation4 + $0x98] sm:$0xff]
      %s2579 = scalar_lea.vmem %s8, 960
      %v2580 = vld [vmem:[%s2579] sm:$0xff]
      %v2581 = vld [vmem:[%s2579 + $0x8] sm:$0xff]
      %v2582 = vld [vmem:[%s2579 + $0x10] sm:$0xff]
      %v2583 = vld [vmem:[%s2579 + $0x18] sm:$0xff]
      %v2584 = vld [vmem:[%s2579 + $0x20] sm:$0xff]
      %v2585 = vld [vmem:[%s2579 + $0x28] sm:$0xff]
      %v2586 = vld [vmem:[%s2579 + $0x30] sm:$0xff]
      %v2587 = vld [vmem:[%s2579 + $0x38] sm:$0xff]
      %v2588 = vld [vmem:[%s2579 + $0x40] sm:$0xff]
      %v2589 = vld [vmem:[%s2579 + $0x48] sm:$0xff]
      %v2590 = vld [vmem:[%s2579 + $0x50] sm:$0xff]
      %v2591 = vld [vmem:[%s2579 + $0x58] sm:$0xff]
      %v2592 = vld [vmem:[%s2579 + $0x60] sm:$0xff]
      %v2593 = vld [vmem:[%s2579 + $0x68] sm:$0xff]
      %v2594 = vld [vmem:[%s2579 + $0x70] sm:$0xff]
      %v2595 = vld [vmem:[%s2579 + $0x78] sm:$0xff]
      %v2596 = vld [vmem:[%s2579 + $0x80] sm:$0xff]
      %v2597 = vld [vmem:[%s2579 + $0x88] sm:$0xff]
      %v2598 = vld [vmem:[%s2579 + $0x90] sm:$0xff]
      %v2599 = vld [vmem:[%s2579 + $0x98] sm:$0xff]
      %2600 = vrot.lane.b32.xlu0 %v1636, 113
      %v2601 = vpop.permute.xlu0 %2600
      %2602 = vrot.lane.b32.xlu0 %v1642, 113
      %v2603 = vpop.permute.xlu0 %2602
      %2604 = vrot.lane.b32.xlu0 %v1648, 113
      %v2605 = vpop.permute.xlu0 %2604
      %2606 = vrot.lane.b32.xlu0 %v1654, 113
      %v2607 = vpop.permute.xlu0 %2606
      %2608 = vrot.lane.b32.xlu0 %v1660, 113
      %v2609 = vpop.permute.xlu0 %2608
      %2610 = vrot.lane.b32.xlu0 %v1666, 113
      %v2611 = vpop.permute.xlu0 %2610
      %2612 = vrot.lane.b32.xlu0 %v1672, 113
      %v2613 = vpop.permute.xlu0 %2612
      %2614 = vrot.lane.b32.xlu0 %v1678, 113
      %v2615 = vpop.permute.xlu0 %2614
      %2616 = vrot.lane.b32.xlu0 %v1684, 113
      %v2617 = vpop.permute.xlu0 %2616
      %2618 = vrot.lane.b32.xlu0 %v1690, 113
      %v2619 = vpop.permute.xlu0 %2618
      %2620 = vrot.lane.b32.xlu0 %v1638, 113
      %v2621 = vpop.permute.xlu0 %2620
      %2622 = vrot.lane.b32.xlu0 %v1644, 113
      %v2623 = vpop.permute.xlu0 %2622
      %2624 = vrot.lane.b32.xlu0 %v1650, 113
      %v2625 = vpop.permute.xlu0 %2624
      %2626 = vrot.lane.b32.xlu0 %v1656, 113
      %v2627 = vpop.permute.xlu0 %2626
      %2628 = vrot.lane.b32.xlu0 %v1662, 113
      %v2629 = vpop.permute.xlu0 %2628
      %2630 = vrot.lane.b32.xlu0 %v1668, 113
      %v2631 = vpop.permute.xlu0 %2630
      %2632 = vrot.lane.b32.xlu0 %v1674, 113
      %v2633 = vpop.permute.xlu0 %2632
      %2634 = vrot.lane.b32.xlu0 %v1680, 113
      %v2635 = vpop.permute.xlu0 %2634
      %2636 = vrot.lane.b32.xlu0 %v1686, 113
      %v2637 = vpop.permute.xlu0 %2636
      %2638 = vrot.lane.b32.xlu0 %v1692, 113
      %v2639 = vpop.permute.xlu0 %2638
      %v2640 = vsel %vm975, %v2601, %v2621
      %v2641 = vsel %vm975, %v2603, %v2623
      %v2642 = vsel %vm975, %v2605, %v2625
      %v2643 = vsel %vm975, %v2607, %v2627
      %v2644 = vsel %vm975, %v2609, %v2629
      %v2645 = vsel %vm975, %v2611, %v2631
      %v2646 = vsel %vm975, %v2613, %v2633
      %v2647 = vsel %vm975, %v2615, %v2635
      %v2648 = vsel %vm975, %v2617, %v2637
      %v2649 = vsel %vm975, %v2619, %v2639
      %v2650 = vsel %vm975, %v2621, %v2601
      %v2651 = vsel %vm975, %v2623, %v2603
      %v2652 = vsel %vm975, %v2625, %v2605
      %v2653 = vsel %vm975, %v2627, %v2607
      %v2654 = vsel %vm975, %v2629, %v2609
      %v2655 = vsel %vm975, %v2631, %v2611
      %v2656 = vsel %vm975, %v2633, %v2613
      %v2657 = vsel %vm975, %v2635, %v2615
      %v2658 = vsel %vm975, %v2637, %v2617
      %v2659 = vsel %vm975, %v2639, %v2619
      %v2660 = vmul.f32 %v2580, %v2640
      %v2661 = vmul.f32 %v2581, %v2650
      %v2662 = vmul.f32 %v2582, %v2641
      %v2663 = vmul.f32 %v2583, %v2651
      %v2664 = vmul.f32 %v2584, %v2642
      %v2665 = vmul.f32 %v2585, %v2652
      %v2666 = vmul.f32 %v2586, %v2643
      %v2667 = vmul.f32 %v2587, %v2653
      %v2668 = vmul.f32 %v2588, %v2644
      %v2669 = vmul.f32 %v2589, %v2654
      %v2670 = vmul.f32 %v2590, %v2645
      %v2671 = vmul.f32 %v2591, %v2655
      %v2672 = vmul.f32 %v2592, %v2646
      %v2673 = vmul.f32 %v2593, %v2656
      %v2674 = vmul.f32 %v2594, %v2647
      %v2675 = vmul.f32 %v2595, %v2657
      %v2676 = vmul.f32 %v2596, %v2648
      %v2677 = vmul.f32 %v2597, %v2658
      %v2678 = vmul.f32 %v2598, %v2649
      %v2679 = vmul.f32 %v2599, %v2659
      %v2680 = vadd.f32 %v2559, %v2660
      %v2681 = vadd.f32 %v2560, %v2661
      %v2682 = vadd.f32 %v2561, %v2662
      %v2683 = vadd.f32 %v2562, %v2663
      %v2684 = vadd.f32 %v2563, %v2664
      %v2685 = vadd.f32 %v2564, %v2665
      %v2686 = vadd.f32 %v2565, %v2666
      %v2687 = vadd.f32 %v2566, %v2667
      %v2688 = vadd.f32 %v2567, %v2668
      %v2689 = vadd.f32 %v2568, %v2669
      %v2690 = vadd.f32 %v2569, %v2670
      %v2691 = vadd.f32 %v2570, %v2671
      %v2692 = vadd.f32 %v2571, %v2672
      %v2693 = vadd.f32 %v2572, %v2673
      %v2694 = vadd.f32 %v2573, %v2674
      %v2695 = vadd.f32 %v2574, %v2675
      %v2696 = vadd.f32 %v2575, %v2676
      %v2697 = vadd.f32 %v2576, %v2677
      %v2698 = vadd.f32 %v2577, %v2678
      %v2699 = vadd.f32 %v2578, %v2679
      %2700 = vst [vmem:[#allocation4] sm:$0xff] %v2680
      %2701 = vst [vmem:[#allocation4 + $0x8] sm:$0xff] %v2681
      %2702 = vst [vmem:[#allocation4 + $0x10] sm:$0xff] %v2682
      %2703 = vst [vmem:[#allocation4 + $0x18] sm:$0xff] %v2683
      %2704 = vst [vmem:[#allocation4 + $0x20] sm:$0xff] %v2684
      %2705 = vst [vmem:[#allocation4 + $0x28] sm:$0xff] %v2685
      %2706 = vst [vmem:[#allocation4 + $0x30] sm:$0xff] %v2686
      %2707 = vst [vmem:[#allocation4 + $0x38] sm:$0xff] %v2687
      %2708 = vst [vmem:[#allocation4 + $0x40] sm:$0xff] %v2688
      %2709 = vst [vmem:[#allocation4 + $0x48] sm:$0xff] %v2689
      %2710 = vst [vmem:[#allocation4 + $0x50] sm:$0xff] %v2690
      %2711 = vst [vmem:[#allocation4 + $0x58] sm:$0xff] %v2691
      %2712 = vst [vmem:[#allocation4 + $0x60] sm:$0xff] %v2692
      %2713 = vst [vmem:[#allocation4 + $0x68] sm:$0xff] %v2693
      %2714 = vst [vmem:[#allocation4 + $0x70] sm:$0xff] %v2694
      %2715 = vst [vmem:[#allocation4 + $0x78] sm:$0xff] %v2695
      %2716 = vst [vmem:[#allocation4 + $0x80] sm:$0xff] %v2696
      %2717 = vst [vmem:[#allocation4 + $0x88] sm:$0xff] %v2697
      %2718 = vst [vmem:[#allocation4 + $0x90] sm:$0xff] %v2698
      %2719 = vst [vmem:[#allocation4 + $0x98] sm:$0xff] %v2699
      %v2720 = vld [vmem:[#allocation4] sm:$0xff]
      %v2721 = vld [vmem:[#allocation4 + $0x8] sm:$0xff]
      %v2722 = vld [vmem:[#allocation4 + $0x10] sm:$0xff]
      %v2723 = vld [vmem:[#allocation4 + $0x18] sm:$0xff]
      %v2724 = vld [vmem:[#allocation4 + $0x20] sm:$0xff]
      %v2725 = vld [vmem:[#allocation4 + $0x28] sm:$0xff]
      %v2726 = vld [vmem:[#allocation4 + $0x30] sm:$0xff]
      %v2727 = vld [vmem:[#allocation4 + $0x38] sm:$0xff]
      %v2728 = vld [vmem:[#allocation4 + $0x40] sm:$0xff]
      %v2729 = vld [vmem:[#allocation4 + $0x48] sm:$0xff]
      %v2730 = vld [vmem:[#allocation4 + $0x50] sm:$0xff]
      %v2731 = vld [vmem:[#allocation4 + $0x58] sm:$0xff]
      %v2732 = vld [vmem:[#allocation4 + $0x60] sm:$0xff]
      %v2733 = vld [vmem:[#allocation4 + $0x68] sm:$0xff]
      %v2734 = vld [vmem:[#allocation4 + $0x70] sm:$0xff]
      %v2735 = vld [vmem:[#allocation4 + $0x78] sm:$0xff]
      %v2736 = vld [vmem:[#allocation4 + $0x80] sm:$0xff]
      %v2737 = vld [vmem:[#allocation4 + $0x88] sm:$0xff]
      %v2738 = vld [vmem:[#allocation4 + $0x90] sm:$0xff]
      %v2739 = vld [vmem:[#allocation4 + $0x98] sm:$0xff]
      %s2740 = scalar_lea.vmem %s8, 1120
      %v2741 = vld [vmem:[%s2740] sm:$0xff]
      %v2742 = vld [vmem:[%s2740 + $0x8] sm:$0xff]
      %v2743 = vld [vmem:[%s2740 + $0x10] sm:$0xff]
      %v2744 = vld [vmem:[%s2740 + $0x18] sm:$0xff]
      %v2745 = vld [vmem:[%s2740 + $0x20] sm:$0xff]
      %v2746 = vld [vmem:[%s2740 + $0x28] sm:$0xff]
      %v2747 = vld [vmem:[%s2740 + $0x30] sm:$0xff]
      %v2748 = vld [vmem:[%s2740 + $0x38] sm:$0xff]
      %v2749 = vld [vmem:[%s2740 + $0x40] sm:$0xff]
      %v2750 = vld [vmem:[%s2740 + $0x48] sm:$0xff]
      %v2751 = vld [vmem:[%s2740 + $0x50] sm:$0xff]
      %v2752 = vld [vmem:[%s2740 + $0x58] sm:$0xff]
      %v2753 = vld [vmem:[%s2740 + $0x60] sm:$0xff]
      %v2754 = vld [vmem:[%s2740 + $0x68] sm:$0xff]
      %v2755 = vld [vmem:[%s2740 + $0x70] sm:$0xff]
      %v2756 = vld [vmem:[%s2740 + $0x78] sm:$0xff]
      %v2757 = vld [vmem:[%s2740 + $0x80] sm:$0xff]
      %v2758 = vld [vmem:[%s2740 + $0x88] sm:$0xff]
      %v2759 = vld [vmem:[%s2740 + $0x90] sm:$0xff]
      %v2760 = vld [vmem:[%s2740 + $0x98] sm:$0xff]
      %2761 = vrot.lane.b32.xlu0 %v1636, 112
      %v2762 = vpop.permute.xlu0 %2761
      %2763 = vrot.lane.b32.xlu0 %v1642, 112
      %v2764 = vpop.permute.xlu0 %2763
      %2765 = vrot.lane.b32.xlu0 %v1648, 112
      %v2766 = vpop.permute.xlu0 %2765
      %2767 = vrot.lane.b32.xlu0 %v1654, 112
      %v2768 = vpop.permute.xlu0 %2767
      %2769 = vrot.lane.b32.xlu0 %v1660, 112
      %v2770 = vpop.permute.xlu0 %2769
      %2771 = vrot.lane.b32.xlu0 %v1666, 112
      %v2772 = vpop.permute.xlu0 %2771
      %2773 = vrot.lane.b32.xlu0 %v1672, 112
      %v2774 = vpop.permute.xlu0 %2773
      %2775 = vrot.lane.b32.xlu0 %v1678, 112
      %v2776 = vpop.permute.xlu0 %2775
      %2777 = vrot.lane.b32.xlu0 %v1684, 112
      %v2778 = vpop.permute.xlu0 %2777
      %2779 = vrot.lane.b32.xlu0 %v1690, 112
      %v2780 = vpop.permute.xlu0 %2779
      %2781 = vrot.lane.b32.xlu0 %v1638, 112
      %v2782 = vpop.permute.xlu0 %2781
      %2783 = vrot.lane.b32.xlu0 %v1644, 112
      %v2784 = vpop.permute.xlu0 %2783
      %2785 = vrot.lane.b32.xlu0 %v1650, 112
      %v2786 = vpop.permute.xlu0 %2785
      %2787 = vrot.lane.b32.xlu0 %v1656, 112
      %v2788 = vpop.permute.xlu0 %2787
      %2789 = vrot.lane.b32.xlu0 %v1662, 112
      %v2790 = vpop.permute.xlu0 %2789
      %2791 = vrot.lane.b32.xlu0 %v1668, 112
      %v2792 = vpop.permute.xlu0 %2791
      %2793 = vrot.lane.b32.xlu0 %v1674, 112
      %v2794 = vpop.permute.xlu0 %2793
      %2795 = vrot.lane.b32.xlu0 %v1680, 112
      %v2796 = vpop.permute.xlu0 %2795
      %2797 = vrot.lane.b32.xlu0 %v1686, 112
      %v2798 = vpop.permute.xlu0 %2797
      %2799 = vrot.lane.b32.xlu0 %v1692, 112
      %v2800 = vpop.permute.xlu0 %2799
      %v2801 = vsel %vm1039, %v2762, %v2782
      %v2802 = vsel %vm1039, %v2764, %v2784
      %v2803 = vsel %vm1039, %v2766, %v2786
      %v2804 = vsel %vm1039, %v2768, %v2788
      %v2805 = vsel %vm1039, %v2770, %v2790
      %v2806 = vsel %vm1039, %v2772, %v2792
      %v2807 = vsel %vm1039, %v2774, %v2794
      %v2808 = vsel %vm1039, %v2776, %v2796
      %v2809 = vsel %vm1039, %v2778, %v2798
      %v2810 = vsel %vm1039, %v2780, %v2800
      %v2811 = vsel %vm1039, %v2782, %v2762
      %v2812 = vsel %vm1039, %v2784, %v2764
      %v2813 = vsel %vm1039, %v2786, %v2766
      %v2814 = vsel %vm1039, %v2788, %v2768
      %v2815 = vsel %vm1039, %v2790, %v2770
      %v2816 = vsel %vm1039, %v2792, %v2772
      %v2817 = vsel %vm1039, %v2794, %v2774
      %v2818 = vsel %vm1039, %v2796, %v2776
      %v2819 = vsel %vm1039, %v2798, %v2778
      %v2820 = vsel %vm1039, %v2800, %v2780
      %v2821 = vmul.f32 %v2741, %v2801
      %v2822 = vmul.f32 %v2742, %v2811
      %v2823 = vmul.f32 %v2743, %v2802
      %v2824 = vmul.f32 %v2744, %v2812
      %v2825 = vmul.f32 %v2745, %v2803
      %v2826 = vmul.f32 %v2746, %v2813
      %v2827 = vmul.f32 %v2747, %v2804
      %v2828 = vmul.f32 %v2748, %v2814
      %v2829 = vmul.f32 %v2749, %v2805
      %v2830 = vmul.f32 %v2750, %v2815
      %v2831 = vmul.f32 %v2751, %v2806
      %v2832 = vmul.f32 %v2752, %v2816
      %v2833 = vmul.f32 %v2753, %v2807
      %v2834 = vmul.f32 %v2754, %v2817
      %v2835 = vmul.f32 %v2755, %v2808
      %v2836 = vmul.f32 %v2756, %v2818
      %v2837 = vmul.f32 %v2757, %v2809
      %v2838 = vmul.f32 %v2758, %v2819
      %v2839 = vmul.f32 %v2759, %v2810
      %v2840 = vmul.f32 %v2760, %v2820
      %v2841 = vadd.f32 %v2720, %v2821
      %v2842 = vadd.f32 %v2721, %v2822
      %v2843 = vadd.f32 %v2722, %v2823
      %v2844 = vadd.f32 %v2723, %v2824
      %v2845 = vadd.f32 %v2724, %v2825
      %v2846 = vadd.f32 %v2725, %v2826
      %v2847 = vadd.f32 %v2726, %v2827
      %v2848 = vadd.f32 %v2727, %v2828
      %v2849 = vadd.f32 %v2728, %v2829
      %v2850 = vadd.f32 %v2729, %v2830
      %v2851 = vadd.f32 %v2730, %v2831
      %v2852 = vadd.f32 %v2731, %v2832
      %v2853 = vadd.f32 %v2732, %v2833
      %v2854 = vadd.f32 %v2733, %v2834
      %v2855 = vadd.f32 %v2734, %v2835
      %v2856 = vadd.f32 %v2735, %v2836
      %v2857 = vadd.f32 %v2736, %v2837
      %v2858 = vadd.f32 %v2737, %v2838
      %v2859 = vadd.f32 %v2738, %v2839
      %v2860 = vadd.f32 %v2739, %v2840
      %2861 = vst [vmem:[#allocation4] sm:$0xff] %v2841
      %2862 = vst [vmem:[#allocation4 + $0x8] sm:$0xff] %v2842
      %2863 = vst [vmem:[#allocation4 + $0x10] sm:$0xff] %v2843
      %2864 = vst [vmem:[#allocation4 + $0x18] sm:$0xff] %v2844
      %2865 = vst [vmem:[#allocation4 + $0x20] sm:$0xff] %v2845
      %2866 = vst [vmem:[#allocation4 + $0x28] sm:$0xff] %v2846
      %2867 = vst [vmem:[#allocation4 + $0x30] sm:$0xff] %v2847
      %2868 = vst [vmem:[#allocation4 + $0x38] sm:$0xff] %v2848
      %2869 = vst [vmem:[#allocation4 + $0x40] sm:$0xff] %v2849
      %2870 = vst [vmem:[#allocation4 + $0x48] sm:$0xff] %v2850
      %2871 = vst [vmem:[#allocation4 + $0x50] sm:$0xff] %v2851
      %2872 = vst [vmem:[#allocation4 + $0x58] sm:$0xff] %v2852
      %2873 = vst [vmem:[#allocation4 + $0x60] sm:$0xff] %v2853
      %2874 = vst [vmem:[#allocation4 + $0x68] sm:$0xff] %v2854
      %2875 = vst [vmem:[#allocation4 + $0x70] sm:$0xff] %v2855
      %2876 = vst [vmem:[#allocation4 + $0x78] sm:$0xff] %v2856
      %2877 = vst [vmem:[#allocation4 + $0x80] sm:$0xff] %v2857
      %2878 = vst [vmem:[#allocation4 + $0x88] sm:$0xff] %v2858
      %2879 = vst [vmem:[#allocation4 + $0x90] sm:$0xff] %v2859
      %2880 = vst [vmem:[#allocation4 + $0x98] sm:$0xff] %v2860
      %v2881 = vld [vmem:[#allocation4] sm:$0xff]
      %v2882 = vld [vmem:[#allocation4 + $0x8] sm:$0xff]
      %v2883 = vld [vmem:[#allocation4 + $0x10] sm:$0xff]
      %v2884 = vld [vmem:[#allocation4 + $0x18] sm:$0xff]
      %v2885 = vld [vmem:[#allocation4 + $0x20] sm:$0xff]
      %v2886 = vld [vmem:[#allocation4 + $0x28] sm:$0xff]
      %v2887 = vld [vmem:[#allocation4 + $0x30] sm:$0xff]
      %v2888 = vld [vmem:[#allocation4 + $0x38] sm:$0xff]
      %v2889 = vld [vmem:[#allocation4 + $0x40] sm:$0xff]
      %v2890 = vld [vmem:[#allocation4 + $0x48] sm:$0xff]
      %v2891 = vld [vmem:[#allocation4 + $0x50] sm:$0xff]
      %v2892 = vld [vmem:[#allocation4 + $0x58] sm:$0xff]
      %v2893 = vld [vmem:[#allocation4 + $0x60] sm:$0xff]
      %v2894 = vld [vmem:[#allocation4 + $0x68] sm:$0xff]
      %v2895 = vld [vmem:[#allocation4 + $0x70] sm:$0xff]
      %v2896 = vld [vmem:[#allocation4 + $0x78] sm:$0xff]
      %v2897 = vld [vmem:[#allocation4 + $0x80] sm:$0xff]
      %v2898 = vld [vmem:[#allocation4 + $0x88] sm:$0xff]
      %v2899 = vld [vmem:[#allocation4 + $0x90] sm:$0xff]
      %v2900 = vld [vmem:[#allocation4 + $0x98] sm:$0xff]
      %s2901 = scalar_lea.vmem %s8, 1280
      %v2902 = vld [vmem:[%s2901] sm:$0xff]
      %v2903 = vld [vmem:[%s2901 + $0x8] sm:$0xff]
      %v2904 = vld [vmem:[%s2901 + $0x10] sm:$0xff]
      %v2905 = vld [vmem:[%s2901 + $0x18] sm:$0xff]
      %v2906 = vld [vmem:[%s2901 + $0x20] sm:$0xff]
      %v2907 = vld [vmem:[%s2901 + $0x28] sm:$0xff]
      %v2908 = vld [vmem:[%s2901 + $0x30] sm:$0xff]
      %v2909 = vld [vmem:[%s2901 + $0x38] sm:$0xff]
      %v2910 = vld [vmem:[%s2901 + $0x40] sm:$0xff]
      %v2911 = vld [vmem:[%s2901 + $0x48] sm:$0xff]
      %v2912 = vld [vmem:[%s2901 + $0x50] sm:$0xff]
      %v2913 = vld [vmem:[%s2901 + $0x58] sm:$0xff]
      %v2914 = vld [vmem:[%s2901 + $0x60] sm:$0xff]
      %v2915 = vld [vmem:[%s2901 + $0x68] sm:$0xff]
      %v2916 = vld [vmem:[%s2901 + $0x70] sm:$0xff]
      %v2917 = vld [vmem:[%s2901 + $0x78] sm:$0xff]
      %v2918 = vld [vmem:[%s2901 + $0x80] sm:$0xff]
      %v2919 = vld [vmem:[%s2901 + $0x88] sm:$0xff]
      %v2920 = vld [vmem:[%s2901 + $0x90] sm:$0xff]
      %v2921 = vld [vmem:[%s2901 + $0x98] sm:$0xff]
      %2922 = vrot.lane.b32.xlu0 %v1636, 111
      %v2923 = vpop.permute.xlu0 %2922
      %2924 = vrot.lane.b32.xlu0 %v1642, 111
      %v2925 = vpop.permute.xlu0 %2924
      %2926 = vrot.lane.b32.xlu0 %v1648, 111
      %v2927 = vpop.permute.xlu0 %2926
      %2928 = vrot.lane.b32.xlu0 %v1654, 111
      %v2929 = vpop.permute.xlu0 %2928
      %2930 = vrot.lane.b32.xlu0 %v1660, 111
      %v2931 = vpop.permute.xlu0 %2930
      %2932 = vrot.lane.b32.xlu0 %v1666, 111
      %v2933 = vpop.permute.xlu0 %2932
      %2934 = vrot.lane.b32.xlu0 %v1672, 111
      %v2935 = vpop.permute.xlu0 %2934
      %2936 = vrot.lane.b32.xlu0 %v1678, 111
      %v2937 = vpop.permute.xlu0 %2936
      %2938 = vrot.lane.b32.xlu0 %v1684, 111
      %v2939 = vpop.permute.xlu0 %2938
      %2940 = vrot.lane.b32.xlu0 %v1690, 111
      %v2941 = vpop.permute.xlu0 %2940
      %2942 = vrot.lane.b32.xlu0 %v1638, 111
      %v2943 = vpop.permute.xlu0 %2942
      %2944 = vrot.lane.b32.xlu0 %v1644, 111
      %v2945 = vpop.permute.xlu0 %2944
      %2946 = vrot.lane.b32.xlu0 %v1650, 111
      %v2947 = vpop.permute.xlu0 %2946
      %2948 = vrot.lane.b32.xlu0 %v1656, 111
      %v2949 = vpop.permute.xlu0 %2948
      %2950 = vrot.lane.b32.xlu0 %v1662, 111
      %v2951 = vpop.permute.xlu0 %2950
      %2952 = vrot.lane.b32.xlu0 %v1668, 111
      %v2953 = vpop.permute.xlu0 %2952
      %2954 = vrot.lane.b32.xlu0 %v1674, 111
      %v2955 = vpop.permute.xlu0 %2954
      %2956 = vrot.lane.b32.xlu0 %v1680, 111
      %v2957 = vpop.permute.xlu0 %2956
      %2958 = vrot.lane.b32.xlu0 %v1686, 111
      %v2959 = vpop.permute.xlu0 %2958
      %2960 = vrot.lane.b32.xlu0 %v1692, 111
      %v2961 = vpop.permute.xlu0 %2960
      %v2962 = vsel %vm1103, %v2923, %v2943
      %v2963 = vsel %vm1103, %v2925, %v2945
      %v2964 = vsel %vm1103, %v2927, %v2947
      %v2965 = vsel %vm1103, %v2929, %v2949
      %v2966 = vsel %vm1103, %v2931, %v2951
      %v2967 = vsel %vm1103, %v2933, %v2953
      %v2968 = vsel %vm1103, %v2935, %v2955
      %v2969 = vsel %vm1103, %v2937, %v2957
      %v2970 = vsel %vm1103, %v2939, %v2959
      %v2971 = vsel %vm1103, %v2941, %v2961
      %v2972 = vsel %vm1103, %v2943, %v2923
      %v2973 = vsel %vm1103, %v2945, %v2925
      %v2974 = vsel %vm1103, %v2947, %v2927
      %v2975 = vsel %vm1103, %v2949, %v2929
      %v2976 = vsel %vm1103, %v2951, %v2931
      %v2977 = vsel %vm1103, %v2953, %v2933
      %v2978 = vsel %vm1103, %v2955, %v2935
      %v2979 = vsel %vm1103, %v2957, %v2937
      %v2980 = vsel %vm1103, %v2959, %v2939
      %v2981 = vsel %vm1103, %v2961, %v2941
      %v2982 = vmul.f32 %v2902, %v2962
      %v2983 = vmul.f32 %v2903, %v2972
      %v2984 = vmul.f32 %v2904, %v2963
      %v2985 = vmul.f32 %v2905, %v2973
      %v2986 = vmul.f32 %v2906, %v2964
      %v2987 = vmul.f32 %v2907, %v2974
      %v2988 = vmul.f32 %v2908, %v2965
      %v2989 = vmul.f32 %v2909, %v2975
      %v2990 = vmul.f32 %v2910, %v2966
      %v2991 = vmul.f32 %v2911, %v2976
      %v2992 = vmul.f32 %v2912, %v2967
      %v2993 = vmul.f32 %v2913, %v2977
      %v2994 = vmul.f32 %v2914, %v2968
      %v2995 = vmul.f32 %v2915, %v2978
      %v2996 = vmul.f32 %v2916, %v2969
      %v2997 = vmul.f32 %v2917, %v2979
      %v2998 = vmul.f32 %v2918, %v2970
      %v2999 = vmul.f32 %v2919, %v2980
      %v3000 = vmul.f32 %v2920, %v2971
      %v3001 = vmul.f32 %v2921, %v2981
      %v3002 = vadd.f32 %v2881, %v2982
      %v3003 = vadd.f32 %v2882, %v2983
      %v3004 = vadd.f32 %v2883, %v2984
      %v3005 = vadd.f32 %v2884, %v2985
      %v3006 = vadd.f32 %v2885, %v2986
      %v3007 = vadd.f32 %v2886, %v2987
      %v3008 = vadd.f32 %v2887, %v2988
      %v3009 = vadd.f32 %v2888, %v2989
      %v3010 = vadd.f32 %v2889, %v2990
      %v3011 = vadd.f32 %v2890, %v2991
      %v3012 = vadd.f32 %v2891, %v2992
      %v3013 = vadd.f32 %v2892, %v2993
      %v3014 = vadd.f32 %v2893, %v2994
      %v3015 = vadd.f32 %v2894, %v2995
      %v3016 = vadd.f32 %v2895, %v2996
      %v3017 = vadd.f32 %v2896, %v2997
      %v3018 = vadd.f32 %v2897, %v2998
      %v3019 = vadd.f32 %v2898, %v2999
      %v3020 = vadd.f32 %v2899, %v3000
      %v3021 = vadd.f32 %v2900, %v3001
      %3022 = vst [vmem:[#allocation4] sm:$0xff] %v3002
      %3023 = vst [vmem:[#allocation4 + $0x8] sm:$0xff] %v3003
      %3024 = vst [vmem:[#allocation4 + $0x10] sm:$0xff] %v3004
      %3025 = vst [vmem:[#allocation4 + $0x18] sm:$0xff] %v3005
      %3026 = vst [vmem:[#allocation4 + $0x20] sm:$0xff] %v3006
      %3027 = vst [vmem:[#allocation4 + $0x28] sm:$0xff] %v3007
      %3028 = vst [vmem:[#allocation4 + $0x30] sm:$0xff] %v3008
      %3029 = vst [vmem:[#allocation4 + $0x38] sm:$0xff] %v3009
      %3030 = vst [vmem:[#allocation4 + $0x40] sm:$0xff] %v3010
      %3031 = vst [vmem:[#allocation4 + $0x48] sm:$0xff] %v3011
      %3032 = vst [vmem:[#allocation4 + $0x50] sm:$0xff] %v3012
      %3033 = vst [vmem:[#allocation4 + $0x58] sm:$0xff] %v3013
      %3034 = vst [vmem:[#allocation4 + $0x60] sm:$0xff] %v3014
      %3035 = vst [vmem:[#allocation4 + $0x68] sm:$0xff] %v3015
      %3036 = vst [vmem:[#allocation4 + $0x70] sm:$0xff] %v3016
      %3037 = vst [vmem:[#allocation4 + $0x78] sm:$0xff] %v3017
      %3038 = vst [vmem:[#allocation4 + $0x80] sm:$0xff] %v3018
      %3039 = vst [vmem:[#allocation4 + $0x88] sm:$0xff] %v3019
      %3040 = vst [vmem:[#allocation4 + $0x90] sm:$0xff] %v3020
      %3041 = vst [vmem:[#allocation4 + $0x98] sm:$0xff] %v3021
      %v3042 = vld [vmem:[#allocation4] sm:$0xff]
      %v3043 = vld [vmem:[#allocation4 + $0x8] sm:$0xff]
      %v3044 = vld [vmem:[#allocation4 + $0x10] sm:$0xff]
      %v3045 = vld [vmem:[#allocation4 + $0x18] sm:$0xff]
      %v3046 = vld [vmem:[#allocation4 + $0x20] sm:$0xff]
      %v3047 = vld [vmem:[#allocation4 + $0x28] sm:$0xff]
      %v3048 = vld [vmem:[#allocation4 + $0x30] sm:$0xff]
      %v3049 = vld [vmem:[#allocation4 + $0x38] sm:$0xff]
      %v3050 = vld [vmem:[#allocation4 + $0x40] sm:$0xff]
      %v3051 = vld [vmem:[#allocation4 + $0x48] sm:$0xff]
      %v3052 = vmul.f32 %v3042, %v3042
      %v3053 = vmul.f32 %v3043, %v3043
      %v3054 = vmul.f32 %v3044, %v3044
      %v3055 = vmul.f32 %v3045, %v3045
      %v3056 = vmul.f32 %v3046, %v3046
      %v3057 = vmul.f32 %v3047, %v3047
      %v3058 = vmul.f32 %v3048, %v3048
      %v3059 = vmul.f32 %v3049, %v3049
      %v3060 = vmul.f32 %v3050, %v3050
      %v3061 = vmul.f32 %v3051, %v3051
      %v3062 = vadd.f32 %v3052, %v3053
      %3063 = vadd.xlane.f32.xlu0 %v3062
      %v3064 = vpop.xlane.xlu0 %3063
      %v3065 = vadd.f32 %v3054, %v3055
      %3066 = vadd.xlane.f32.xlu0 %v3065
      %v3067 = vpop.xlane.xlu0 %3066
      %v3068 = vadd.f32 %v3056, %v3057
      %3069 = vadd.xlane.f32.xlu0 %v3068
      %v3070 = vpop.xlane.xlu0 %3069
      %v3071 = vadd.f32 %v3058, %v3059
      %3072 = vadd.xlane.f32.xlu0 %v3071
      %v3073 = vpop.xlane.xlu0 %3072
      %v3074 = vadd.f32 %v3060, %v3061
      %3075 = vadd.xlane.f32.xlu0 %v3074
      %v3076 = vpop.xlane.xlu0 %3075
      %v3077 = vmax.f32 %v3064, 1e-24
      %v3078 = vmax.f32 %v3067, 1e-24
      %v3079 = vmax.f32 %v3070, 1e-24
      %v3080 = vmax.f32 %v3073, 1e-24
      %v3081 = vmax.f32 %v3076, 1e-24
      %v3082 = vrsqrt.pop %v3077
      %v3083 = vrsqrt.pop %v3078
      %v3084 = vrsqrt.pop %v3079
      %v3085 = vrsqrt.pop %v3080
      %v3086 = vrsqrt.pop %v3081
      %v3087 = vmul.f32 %v3042, %v3082
      %v3088 = vmul.f32 %v3043, %v3082
      %v3089 = vmul.f32 %v3044, %v3083
      %v3090 = vmul.f32 %v3045, %v3083
      %v3091 = vmul.f32 %v3046, %v3084
      %v3092 = vmul.f32 %v3047, %v3084
      %v3093 = vmul.f32 %v3048, %v3085
      %v3094 = vmul.f32 %v3049, %v3085
      %v3095 = vmul.f32 %v3050, %v3086
      %v3096 = vmul.f32 %v3051, %v3086
      %v3097 = vld [vmem:[#allocation3] sm:$0xff]
      %v3098 = vld [vmem:[#allocation3 + $0x8] sm:$0xff]
      %v3099 = vld [vmem:[#allocation3 + $0x10] sm:$0xff]
      %v3100 = vld [vmem:[#allocation3 + $0x18] sm:$0xff]
      %v3101 = vld [vmem:[#allocation3 + $0x20] sm:$0xff]
      %v3102 = vld [vmem:[#allocation3 + $0x28] sm:$0xff]
      %v3103 = vld [vmem:[#allocation3 + $0x30] sm:$0xff]
      %v3104 = vld [vmem:[#allocation3 + $0x38] sm:$0xff]
      %v3105 = vld [vmem:[#allocation3 + $0x40] sm:$0xff]
      %v3106 = vld [vmem:[#allocation3 + $0x48] sm:$0xff]
      %3107 = vmatprep.subr.mxu0 %v3088
      %3108 = vmatpush1.xpose.msra.mxu0 %v3087
      %3109 = vmatprep.subr.mxu0 %v3090
      %3110 = vmatpush1.xpose.msra.mxu0 %v3089
      %3111 = vmatprep.subr.mxu0 %v3092
      %3112 = vmatpush1.xpose.msra.mxu0 %v3091
      %3113 = vmatprep.subr.mxu0 %v3094
      %3114 = vmatpush1.xpose.msra.mxu0 %v3093
      %3115 = vmatprep.subr.mxu0 %v3096
      %3116 = vmatpush1.xpose.msra.mxu0 %v3095
      %3117 = vmatprep.subr.mxu0 0.0
      %3118 = vmatpush1.xpose.msra.mxu0 0.0
      %3119 = vmatprep.subr.mxu0 0.0
      %3120 = vmatpush1.xpose.msra.mxu0 0.0
      %3121 = vmatprep.subr.mxu0 0.0
      %3122 = vmatpush1.xpose.msra.mxu0 0.0
      %3123 = vmatprep.subr.mxu0 0.0
      %3124 = vmatpush1.xpose.msra.mxu0 0.0
      %3125 = vmatprep.subr.mxu0 0.0
      %3126 = vmatpush1.xpose.msra.mxu0 0.0
      %3127 = vmatprep.subr.mxu0 0.0
      %3128 = vmatpush1.xpose.msra.mxu0 0.0
      %3129 = vmatprep.subr.mxu0 0.0
      %3130 = vmatpush1.xpose.msra.mxu0 0.0
      %3131 = vmatprep.subr.mxu0 0.0
      %3132 = vmatpush1.xpose.msra.mxu0 0.0
      %3133 = vmatprep.subr.mxu0 0.0
      %3134 = vmatpush1.xpose.msra.mxu0 0.0
      %3135 = vmatprep.subr.mxu0 0.0
      %3136 = vmatpush1.xpose.msra.mxu0 0.0
      %3137 = vmatprep.subr.mxu0 0.0
      %3138 = vmatpush1.xpose.msra.mxu0 0.0
      %3139 = vmatprep.subr.mxu0 0.0
      %3140 = vmatpush1.xpose.msra.mxu0 0.0
      %3141 = vmatprep.subr.mxu0 0.0
      %3142 = vmatpush1.xpose.msra.mxu0 0.0
      %3143 = vmatprep.subr.mxu0 0.0
      %3144 = vmatpush1.xpose.msra.mxu0 0.0
      %3145 = vmatprep.subr.mxu0 0.0
      %3146 = vmatpush1.xpose.msra.mxu0 0.0
      %3147 = vmatprep.subr.mxu0 0.0
      %3148 = vmatpush1.xpose.msra.mxu0 0.0
      %3149 = vmatprep.subr.mxu0 0.0
      %3150 = vmatpush1.xpose.msra.mxu0 0.0
      %3151 = vmatprep.subr.mxu0 0.0
      %3152 = vmatpush1.xpose.msra.mxu0 0.0
      %3153 = vmatprep.subr.mxu0 0.0
      %3154 = vmatpush1.xpose.msra.mxu0 0.0
      %3155 = vmatprep.subr.mxu0 0.0
      %3156 = vmatpush1.xpose.msra.mxu0 0.0
      %3157 = vmatprep.subr.mxu0 0.0
      %3158 = vmatpush1.xpose.msra.mxu0 0.0
      %3159 = vmatprep.subr.mxu0 0.0
      %3160 = vmatpush1.xpose.msra.mxu0 0.0
      %3161 = vmatprep.subr.mxu0 0.0
      %3162 = vmatpush1.xpose.msra.mxu0 0.0
      %3163 = vmatprep.subr.mxu0 0.0
      %3164 = vmatpush1.xpose.msra.mxu0 0.0
      %3165 = vmatprep.subr.mxu0 0.0
      %3166 = vmatpush1.xpose.msra.mxu0 0.0
      %3167 = vmatprep.subr.mxu0 0.0
      %3168 = vmatpush1.xpose.msra.mxu0 0.0
      %3169 = vmatprep.subr.mxu0 0.0
      %3170 = vmatpush1.xpose.msra.mxu0 0.0
      %3171 = vmatprep.mubr.f32.mxu0 %v3098
      %3172 = vmatmul.mubr.f32.gmra.mrb[0].mxu0 %v3097
      %v3173 = vpop.f32.mrb[0].mxu0
      %v3174 = vadd.f32 0.0, %v3173
      %v3175 = vpop.f32.mrb[0].mxu0
      %3176 = vmatprep.mubr.f32.mxu0 %v3100
      %3177 = vmatmul.mubr.f32.gmra.mrb[0].mxu0 %v3099
      %v3178 = vpop.f32.mrb[0].mxu0
      %v3179 = vadd.f32 0.0, %v3178
      %v3180 = vpop.f32.mrb[0].mxu0
      %3181 = vmatprep.mubr.f32.mxu0 %v3102
      %3182 = vmatmul.mubr.f32.gmra.mrb[0].mxu0 %v3101
      %v3183 = vpop.f32.mrb[0].mxu0
      %v3184 = vadd.f32 0.0, %v3183
      %v3185 = vpop.f32.mrb[0].mxu0
      %3186 = vmatprep.mubr.f32.mxu0 %v3104
      %3187 = vmatmul.mubr.f32.gmra.mrb[0].mxu0 %v3103
      %v3188 = vpop.f32.mrb[0].mxu0
      %v3189 = vadd.f32 0.0, %v3188
      %v3190 = vpop.f32.mrb[0].mxu0
      %3191 = vmatprep.mubr.f32.mxu0 %v3106
      %3192 = vmatmul.mubr.f32.gmra.mrb[0].mxu0 %v3105
      %v3193 = vpop.f32.mrb[0].mxu0
      %v3194 = vadd.f32 0.0, %v3193
      %v3195 = vpop.f32.mrb[0].mxu0
      %3196 = vdwg.mxu0
      %v3197 = vld [vmem:[%s9] sm:$0xff]
      %v3198 = vld [vmem:[%s9 + $0x8] sm:$0xff]
      %v3199 = vld [vmem:[%s9 + $0x10] sm:$0xff]
      %v3200 = vld [vmem:[%s9 + $0x18] sm:$0xff]
      %v3201 = vld [vmem:[%s9 + $0x20] sm:$0xff]
      %v3203 = vsel %vm1538, %v3197, 0
      %v3206 = vsel %vm1538, %v3198, 0
      %v3209 = vsel %vm1538, %v3199, 0
      %v3212 = vsel %vm1538, %v3200, 0
      %v3215 = vsel %vm1538, %v3201, 0
      %3217 = vmatprep.subr.mxu0 0.0
      %3218 = vmatpush1.msra.mxu0 %v3174
      %3219 = vmatprep.subr.mxu0 0.0
      %3220 = vmatpush1.msra.mxu0 %v3179
      %3221 = vmatprep.subr.mxu0 0.0
      %3222 = vmatpush1.msra.mxu0 %v3184
      %3223 = vmatprep.subr.mxu0 0.0
      %3224 = vmatpush1.msra.mxu0 %v3189
      %3225 = vmatprep.subr.mxu0 0.0
      %3226 = vmatpush1.msra.mxu0 %v3194
      %3227 = vmatprep.subr.mxu0 0.0
      %3228 = vmatpush1.msra.mxu0 0.0
      %3229 = vmatprep.subr.mxu0 0.0
      %3230 = vmatpush1.msra.mxu0 0.0
      %3231 = vmatprep.subr.mxu0 0.0
      %3232 = vmatpush1.msra.mxu0 0.0
      %3233 = vmatprep.subr.mxu0 0.0
      %3234 = vmatpush1.msra.mxu0 0.0
      %3235 = vmatprep.subr.mxu0 0.0
      %3236 = vmatpush1.msra.mxu0 0.0
      %3237 = vmatprep.subr.mxu0 0.0
      %3238 = vmatpush1.msra.mxu0 0.0
      %3239 = vmatprep.subr.mxu0 0.0
      %3240 = vmatpush1.msra.mxu0 0.0
      %3241 = vmatprep.subr.mxu0 0.0
      %3242 = vmatpush1.msra.mxu0 0.0
      %3243 = vmatprep.subr.mxu0 0.0
      %3244 = vmatpush1.msra.mxu0 0.0
      %3245 = vmatprep.subr.mxu0 0.0
      %3246 = vmatpush1.msra.mxu0 0.0
      %3247 = vmatprep.subr.mxu0 0.0
      %3248 = vmatpush1.msra.mxu0 0.0
      %3249 = vmatprep.subr.mxu0 0.0
      %3250 = vmatpush1.msra.mxu0 0.0
      %3251 = vmatprep.subr.mxu0 0.0
      %3252 = vmatpush1.msra.mxu0 0.0
      %3253 = vmatprep.subr.mxu0 0.0
      %3254 = vmatpush1.msra.mxu0 0.0
      %3255 = vmatprep.subr.mxu0 0.0
      %3256 = vmatpush1.msra.mxu0 0.0
      %3257 = vmatprep.subr.mxu0 0.0
      %3258 = vmatpush1.msra.mxu0 0.0
      %3259 = vmatprep.subr.mxu0 0.0
      %3260 = vmatpush1.msra.mxu0 0.0
      %3261 = vmatprep.subr.mxu0 0.0
      %3262 = vmatpush1.msra.mxu0 0.0
      %3263 = vmatprep.subr.mxu0 0.0
      %3264 = vmatpush1.msra.mxu0 0.0
      %3265 = vmatprep.subr.mxu0 0.0
      %3266 = vmatpush1.msra.mxu0 0.0
      %3267 = vmatprep.subr.mxu0 0.0
      %3268 = vmatpush1.msra.mxu0 0.0
      %3269 = vmatprep.subr.mxu0 0.0
      %3270 = vmatpush1.msra.mxu0 0.0
      %3271 = vmatprep.subr.mxu0 0.0
      %3272 = vmatpush1.msra.mxu0 0.0
      %3273 = vmatprep.subr.mxu0 0.0
      %3274 = vmatpush1.msra.mxu0 0.0
      %3275 = vmatprep.subr.mxu0 0.0
      %3276 = vmatpush1.msra.mxu0 0.0
      %3277 = vmatprep.subr.mxu0 0.0
      %3278 = vmatpush1.msra.mxu0 0.0
      %3279 = vmatprep.subr.mxu0 0.0
      %3280 = vmatpush1.msra.mxu0 0.0
      %3281 = vmatprep.mubr.f32.mxu0 0.0
      %3282 = vmatmul.mubr.f32.gmra.mrb[0].mxu0 %v3203
      %v3283 = vpop.f32.mrb[0].mxu0
      %v3284 = vadd.f32 0.0, %v3283
      %v3285 = vpop.f32.mrb[0].mxu0
      %3286 = vmatprep.mubr.f32.mxu0 0.0
      %3287 = vmatmul.mubr.f32.gmra.mrb[0].mxu0 %v3206
      %v3288 = vpop.f32.mrb[0].mxu0
      %v3289 = vadd.f32 0.0, %v3288
      %v3290 = vpop.f32.mrb[0].mxu0
      %3291 = vmatprep.mubr.f32.mxu0 0.0
      %3292 = vmatmul.mubr.f32.gmra.mrb[0].mxu0 %v3209
      %v3293 = vpop.f32.mrb[0].mxu0
      %v3294 = vadd.f32 0.0, %v3293
      %v3295 = vpop.f32.mrb[0].mxu0
      %3296 = vmatprep.mubr.f32.mxu0 0.0
      %3297 = vmatmul.mubr.f32.gmra.mrb[0].mxu0 %v3212
      %v3298 = vpop.f32.mrb[0].mxu0
      %v3299 = vadd.f32 0.0, %v3298
      %v3300 = vpop.f32.mrb[0].mxu0
      %3301 = vmatprep.mubr.f32.mxu0 0.0
      %3302 = vmatmul.mubr.f32.gmra.mrb[0].mxu0 %v3215
      %v3303 = vpop.f32.mrb[0].mxu0
      %v3304 = vadd.f32 0.0, %v3303
      %v3305 = vpop.f32.mrb[0].mxu0
      %3306 = vdwg.mxu0
      %v3307 = vsel %vm1538, %v3284, 0.0
      %3308 = vadd.xlane.f32.xlu0 %v3307
      %v3309 = vpop.xlane.xlu0 %3308
      %v3310 = vsel %vm1538, %v3289, 0.0
      %3311 = vadd.xlane.f32.xlu0 %v3310
      %v3312 = vpop.xlane.xlu0 %3311
      %v3313 = vsel %vm1538, %v3294, 0.0
      %3314 = vadd.xlane.f32.xlu0 %v3313
      %v3315 = vpop.xlane.xlu0 %3314
      %v3316 = vsel %vm1538, %v3299, 0.0
      %3317 = vadd.xlane.f32.xlu0 %v3316
      %v3318 = vpop.xlane.xlu0 %3317
      %v3319 = vsel %vm1538, %v3304, 0.0
      %3320 = vadd.xlane.f32.xlu0 %v3319
      %v3321 = vpop.xlane.xlu0 %3320
      %v3322 = vsub.f32 %v3174, %v3309
      %v3323 = vsub.f32 %v3179, %v3312
      %v3324 = vsub.f32 %v3184, %v3315
      %v3325 = vsub.f32 %v3189, %v3318
      %v3326 = vsub.f32 %v3194, %v3321
      %v3327 = vmul.f32 %v3322, %v3322
      %v3328 = vmul.f32 %v3323, %v3323
      %v3329 = vmul.f32 %v3324, %v3324
      %v3330 = vmul.f32 %v3325, %v3325
      %v3331 = vmul.f32 %v3326, %v3326
      %3332 = vmatprep.subr.mxu0 0.0
      %3333 = vmatpush1.msra.mxu0 %v3327
      %3334 = vmatprep.subr.mxu0 0.0
      %3335 = vmatpush1.msra.mxu0 %v3328
      %3336 = vmatprep.subr.mxu0 0.0
      %3337 = vmatpush1.msra.mxu0 %v3329
      %3338 = vmatprep.subr.mxu0 0.0
      %3339 = vmatpush1.msra.mxu0 %v3330
      %3340 = vmatprep.subr.mxu0 0.0
      %3341 = vmatpush1.msra.mxu0 %v3331
      %3342 = vmatprep.subr.mxu0 0.0
      %3343 = vmatpush1.msra.mxu0 0.0
      %3344 = vmatprep.subr.mxu0 0.0
      %3345 = vmatpush1.msra.mxu0 0.0
      %3346 = vmatprep.subr.mxu0 0.0
      %3347 = vmatpush1.msra.mxu0 0.0
      %3348 = vmatprep.subr.mxu0 0.0
      %3349 = vmatpush1.msra.mxu0 0.0
      %3350 = vmatprep.subr.mxu0 0.0
      %3351 = vmatpush1.msra.mxu0 0.0
      %3352 = vmatprep.subr.mxu0 0.0
      %3353 = vmatpush1.msra.mxu0 0.0
      %3354 = vmatprep.subr.mxu0 0.0
      %3355 = vmatpush1.msra.mxu0 0.0
      %3356 = vmatprep.subr.mxu0 0.0
      %3357 = vmatpush1.msra.mxu0 0.0
      %3358 = vmatprep.subr.mxu0 0.0
      %3359 = vmatpush1.msra.mxu0 0.0
      %3360 = vmatprep.subr.mxu0 0.0
      %3361 = vmatpush1.msra.mxu0 0.0
      %3362 = vmatprep.subr.mxu0 0.0
      %3363 = vmatpush1.msra.mxu0 0.0
      %3364 = vmatprep.subr.mxu0 0.0
      %3365 = vmatpush1.msra.mxu0 0.0
      %3366 = vmatprep.subr.mxu0 0.0
      %3367 = vmatpush1.msra.mxu0 0.0
      %3368 = vmatprep.subr.mxu0 0.0
      %3369 = vmatpush1.msra.mxu0 0.0
      %3370 = vmatprep.subr.mxu0 0.0
      %3371 = vmatpush1.msra.mxu0 0.0
      %3372 = vmatprep.subr.mxu0 0.0
      %3373 = vmatpush1.msra.mxu0 0.0
      %3374 = vmatprep.subr.mxu0 0.0
      %3375 = vmatpush1.msra.mxu0 0.0
      %3376 = vmatprep.subr.mxu0 0.0
      %3377 = vmatpush1.msra.mxu0 0.0
      %3378 = vmatprep.subr.mxu0 0.0
      %3379 = vmatpush1.msra.mxu0 0.0
      %3380 = vmatprep.subr.mxu0 0.0
      %3381 = vmatpush1.msra.mxu0 0.0
      %3382 = vmatprep.subr.mxu0 0.0
      %3383 = vmatpush1.msra.mxu0 0.0
      %3384 = vmatprep.subr.mxu0 0.0
      %3385 = vmatpush1.msra.mxu0 0.0
      %3386 = vmatprep.subr.mxu0 0.0
      %3387 = vmatpush1.msra.mxu0 0.0
      %3388 = vmatprep.subr.mxu0 0.0
      %3389 = vmatpush1.msra.mxu0 0.0
      %3390 = vmatprep.subr.mxu0 0.0
      %3391 = vmatpush1.msra.mxu0 0.0
      %3392 = vmatprep.subr.mxu0 0.0
      %3393 = vmatpush1.msra.mxu0 0.0
      %3394 = vmatprep.subr.mxu0 0.0
      %3395 = vmatpush1.msra.mxu0 0.0
      %3396 = vmatprep.mubr.f32.mxu0 0.0
      %3397 = vmatmul.mubr.f32.gmra.mrb[0].mxu0 %v3203
      %v3398 = vpop.f32.mrb[0].mxu0
      %v3399 = vadd.f32 0.0, %v3398
      %v3400 = vpop.f32.mrb[0].mxu0
      %3401 = vmatprep.mubr.f32.mxu0 0.0
      %3402 = vmatmul.mubr.f32.gmra.mrb[0].mxu0 %v3206
      %v3403 = vpop.f32.mrb[0].mxu0
      %v3404 = vadd.f32 0.0, %v3403
      %v3405 = vpop.f32.mrb[0].mxu0
      %3406 = vmatprep.mubr.f32.mxu0 0.0
      %3407 = vmatmul.mubr.f32.gmra.mrb[0].mxu0 %v3209
      %v3408 = vpop.f32.mrb[0].mxu0
      %v3409 = vadd.f32 0.0, %v3408
      %v3410 = vpop.f32.mrb[0].mxu0
      %3411 = vmatprep.mubr.f32.mxu0 0.0
      %3412 = vmatmul.mubr.f32.gmra.mrb[0].mxu0 %v3212
      %v3413 = vpop.f32.mrb[0].mxu0
      %v3414 = vadd.f32 0.0, %v3413
      %v3415 = vpop.f32.mrb[0].mxu0
      %3416 = vmatprep.mubr.f32.mxu0 0.0
      %3417 = vmatmul.mubr.f32.gmra.mrb[0].mxu0 %v3215
      %v3418 = vpop.f32.mrb[0].mxu0
      %v3419 = vadd.f32 0.0, %v3418
      %v3420 = vpop.f32.mrb[0].mxu0
      %3421 = vdwg.mxu0
      %v3422 = vsel %vm1538, %v3399, 0.0
      %3423 = vadd.xlane.f32.xlu0 %v3422
      %v3424 = vpop.xlane.xlu0 %3423
      %v3425 = vsel %vm1538, %v3404, 0.0
      %3426 = vadd.xlane.f32.xlu0 %v3425
      %v3427 = vpop.xlane.xlu0 %3426
      %v3428 = vsel %vm1538, %v3409, 0.0
      %3429 = vadd.xlane.f32.xlu0 %v3428
      %v3430 = vpop.xlane.xlu0 %3429
      %v3431 = vsel %vm1538, %v3414, 0.0
      %3432 = vadd.xlane.f32.xlu0 %v3431
      %v3433 = vpop.xlane.xlu0 %3432
      %v3434 = vsel %vm1538, %v3419, 0.0
      %3435 = vadd.xlane.f32.xlu0 %v3434
      %v3436 = vpop.xlane.xlu0 %3435
      %v3437 = vadd.f32 %v3424, 1e-05
      %v3438 = vadd.f32 %v3427, 1e-05
      %v3439 = vadd.f32 %v3430, 1e-05
      %v3440 = vadd.f32 %v3433, 1e-05
      %v3441 = vadd.f32 %v3436, 1e-05
      %v3442 = vrsqrt.pop %v3437
      %v3443 = vrsqrt.pop %v3438
      %v3444 = vrsqrt.pop %v3439
      %v3445 = vrsqrt.pop %v3440
      %v3446 = vrsqrt.pop %v3441
      %v3447 = vmul.f32 %v3322, %v3442
      %v3448 = vmul.f32 %v3323, %v3443
      %v3449 = vmul.f32 %v3324, %v3444
      %v3450 = vmul.f32 %v3325, %v3445
      %v3451 = vmul.f32 %v3326, %v3446
      %v3452 = vsel %vm1538, %v3447, -inf
      %3453 = vmax.xlane.f32.xlu0 %v3452
      %v3454 = vpop.xlane.xlu0 %3453
      %v3455 = vsel %vm1538, %v3448, -inf
      %3456 = vmax.xlane.f32.xlu0 %v3455
      %v3457 = vpop.xlane.xlu0 %3456
      %v3458 = vsel %vm1538, %v3449, -inf
      %3459 = vmax.xlane.f32.xlu0 %v3458
      %v3460 = vpop.xlane.xlu0 %3459
      %v3461 = vsel %vm1538, %v3450, -inf
      %3462 = vmax.xlane.f32.xlu0 %v3461
      %v3463 = vpop.xlane.xlu0 %3462
      %v3464 = vsel %vm1538, %v3451, -inf
      %3465 = vmax.xlane.f32.xlu0 %v3464
      %v3466 = vpop.xlane.xlu0 %3465
      %v3467 = vsub.f32 %v3447, %v3454
      %v3468 = vsub.f32 %v3448, %v3457
      %v3469 = vsub.f32 %v3449, %v3460
      %v3470 = vsub.f32 %v3450, %v3463
      %v3471 = vsub.f32 %v3451, %v3466
      %v3472 = vmul.f32 %v3467, 1.442695
      %v3473 = vpow.pop %v3472
      %v3474 = vmul.f32 %v3468, 1.442695
      %v3475 = vpow.pop %v3474
      %v3476 = vmul.f32 %v3469, 1.442695
      %v3477 = vpow.pop %v3476
      %v3478 = vmul.f32 %v3470, 1.442695
      %v3479 = vpow.pop %v3478
      %v3480 = vmul.f32 %v3471, 1.442695
      %v3481 = vpow.pop %v3480
      %v3482 = vsel %vm1538, %v3473, 0.0
      %3483 = vadd.xlane.f32.xlu0 %v3482
      %v3484 = vpop.xlane.xlu0 %3483
      %v3485 = vsel %vm1538, %v3475, 0.0
      %3486 = vadd.xlane.f32.xlu0 %v3485
      %v3487 = vpop.xlane.xlu0 %3486
      %v3488 = vsel %vm1538, %v3477, 0.0
      %3489 = vadd.xlane.f32.xlu0 %v3488
      %v3490 = vpop.xlane.xlu0 %3489
      %v3491 = vsel %vm1538, %v3479, 0.0
      %3492 = vadd.xlane.f32.xlu0 %v3491
      %v3493 = vpop.xlane.xlu0 %3492
      %v3494 = vsel %vm1538, %v3481, 0.0
      %3495 = vadd.xlane.f32.xlu0 %v3494
      %v3496 = vpop.xlane.xlu0 %3495
      %v3497 = vrcp.pop %v3484
      %v3498 = vrcp.pop %v3487
      %v3499 = vrcp.pop %v3490
      %v3500 = vrcp.pop %v3493
      %v3501 = vrcp.pop %v3496
      %v3502 = vmul.f32 %v3473, %v3497
      %v3503 = vmul.f32 %v3475, %v3498
      %v3504 = vmul.f32 %v3477, %v3499
      %v3505 = vmul.f32 %v3479, %v3500
      %v3506 = vmul.f32 %v3481, %v3501
      %v3507 = vld [vmem:[#allocation4 + $0x50] sm:$0xff]
      %v3508 = vld [vmem:[#allocation4 + $0x58] sm:$0xff]
      %v3509 = vld [vmem:[#allocation4 + $0x60] sm:$0xff]
      %v3510 = vld [vmem:[#allocation4 + $0x68] sm:$0xff]
      %v3511 = vld [vmem:[#allocation4 + $0x70] sm:$0xff]
      %v3512 = vld [vmem:[#allocation4 + $0x78] sm:$0xff]
      %v3513 = vld [vmem:[#allocation4 + $0x80] sm:$0xff]
      %v3514 = vld [vmem:[#allocation4 + $0x88] sm:$0xff]
      %v3515 = vld [vmem:[#allocation4 + $0x90] sm:$0xff]
      %v3516 = vld [vmem:[#allocation4 + $0x98] sm:$0xff]
      %v3518 = vsel %vm1538, %v3502, 0
      %v3521 = vsel %vm1538, %v3503, 0
      %v3524 = vsel %vm1538, %v3504, 0
      %v3527 = vsel %vm1538, %v3505, 0
      %v3530 = vsel %vm1538, %v3506, 0
      %3532 = vmatprep.subr.mxu0 %v3508
      %3533 = vmatpush1.msra.mxu0 %v3507
      %3534 = vmatprep.subr.mxu0 %v3510
      %3535 = vmatpush1.msra.mxu0 %v3509
      %3536 = vmatprep.subr.mxu0 %v3512
      %3537 = vmatpush1.msra.mxu0 %v3511
      %3538 = vmatprep.subr.mxu0 %v3514
      %3539 = vmatpush1.msra.mxu0 %v3513
      %3540 = vmatprep.subr.mxu0 %v3516
      %3541 = vmatpush1.msra.mxu0 %v3515
      %3542 = vmatprep.subr.mxu0 0.0
      %3543 = vmatpush1.msra.mxu0 0.0
      %3544 = vmatprep.subr.mxu0 0.0
      %3545 = vmatpush1.msra.mxu0 0.0
      %3546 = vmatprep.subr.mxu0 0.0
      %3547 = vmatpush1.msra.mxu0 0.0
      %3548 = vmatprep.subr.mxu0 0.0
      %3549 = vmatpush1.msra.mxu0 0.0
      %3550 = vmatprep.subr.mxu0 0.0
      %3551 = vmatpush1.msra.mxu0 0.0
      %3552 = vmatprep.subr.mxu0 0.0
      %3553 = vmatpush1.msra.mxu0 0.0
      %3554 = vmatprep.subr.mxu0 0.0
      %3555 = vmatpush1.msra.mxu0 0.0
      %3556 = vmatprep.subr.mxu0 0.0
      %3557 = vmatpush1.msra.mxu0 0.0
      %3558 = vmatprep.subr.mxu0 0.0
      %3559 = vmatpush1.msra.mxu0 0.0
      %3560 = vmatprep.subr.mxu0 0.0
      %3561 = vmatpush1.msra.mxu0 0.0
      %3562 = vmatprep.subr.mxu0 0.0
      %3563 = vmatpush1.msra.mxu0 0.0
      %3564 = vmatprep.subr.mxu0 0.0
      %3565 = vmatpush1.msra.mxu0 0.0
      %3566 = vmatprep.subr.mxu0 0.0
      %3567 = vmatpush1.msra.mxu0 0.0
      %3568 = vmatprep.subr.mxu0 0.0
      %3569 = vmatpush1.msra.mxu0 0.0
      %3570 = vmatprep.subr.mxu0 0.0
      %3571 = vmatpush1.msra.mxu0 0.0
      %3572 = vmatprep.subr.mxu0 0.0
      %3573 = vmatpush1.msra.mxu0 0.0
      %3574 = vmatprep.subr.mxu0 0.0
      %3575 = vmatpush1.msra.mxu0 0.0
      %3576 = vmatprep.subr.mxu0 0.0
      %3577 = vmatpush1.msra.mxu0 0.0
      %3578 = vmatprep.subr.mxu0 0.0
      %3579 = vmatpush1.msra.mxu0 0.0
      %3580 = vmatprep.subr.mxu0 0.0
      %3581 = vmatpush1.msra.mxu0 0.0
      %3582 = vmatprep.subr.mxu0 0.0
      %3583 = vmatpush1.msra.mxu0 0.0
      %3584 = vmatprep.subr.mxu0 0.0
      %3585 = vmatpush1.msra.mxu0 0.0
      %3586 = vmatprep.subr.mxu0 0.0
      %3587 = vmatpush1.msra.mxu0 0.0
      %3588 = vmatprep.subr.mxu0 0.0
      %3589 = vmatpush1.msra.mxu0 0.0
      %3590 = vmatprep.subr.mxu0 0.0
      %3591 = vmatpush1.msra.mxu0 0.0
      %3592 = vmatprep.subr.mxu0 0.0
      %3593 = vmatpush1.msra.mxu0 0.0
      %3594 = vmatprep.subr.mxu0 0.0
      %3595 = vmatpush1.msra.mxu0 0.0
      %3596 = vmatprep.mubr.f32.mxu0 0.0
      %3597 = vmatmul.mubr.f32.gmra.mrb[0].mxu0 %v3518
      %v3598 = vpop.f32.mrb[0].mxu0
      %v3599 = vadd.f32 0.0, %v3598
      %v3600 = vpop.f32.mrb[0].mxu0
      %v3601 = vadd.f32 0.0, %v3600
      %3602 = vmatprep.mubr.f32.mxu0 0.0
      %3603 = vmatmul.mubr.f32.gmra.mrb[0].mxu0 %v3521
      %v3604 = vpop.f32.mrb[0].mxu0
      %v3605 = vadd.f32 0.0, %v3604
      %v3606 = vpop.f32.mrb[0].mxu0
      %v3607 = vadd.f32 0.0, %v3606
      %3608 = vmatprep.mubr.f32.mxu0 0.0
      %3609 = vmatmul.mubr.f32.gmra.mrb[0].mxu0 %v3524
      %v3610 = vpop.f32.mrb[0].mxu0
      %v3611 = vadd.f32 0.0, %v3610
      %v3612 = vpop.f32.mrb[0].mxu0
      %v3613 = vadd.f32 0.0, %v3612
      %3614 = vmatprep.mubr.f32.mxu0 0.0
      %3615 = vmatmul.mubr.f32.gmra.mrb[0].mxu0 %v3527
      %v3616 = vpop.f32.mrb[0].mxu0
      %v3617 = vadd.f32 0.0, %v3616
      %v3618 = vpop.f32.mrb[0].mxu0
      %v3619 = vadd.f32 0.0, %v3618
      %3620 = vmatprep.mubr.f32.mxu0 0.0
      %3621 = vmatmul.mubr.f32.gmra.mrb[0].mxu0 %v3530
      %v3622 = vpop.f32.mrb[0].mxu0
      %v3623 = vadd.f32 0.0, %v3622
      %v3624 = vpop.f32.mrb[0].mxu0
      %v3625 = vadd.f32 0.0, %v3624
      %3626 = vdwg.mxu0
      %v3627 = vld [vmem:[%s10] sm:$0xff]
      %v3628 = vld [vmem:[%s10 + $0x8] sm:$0xff]
      %v3629 = vld [vmem:[%s10 + $0x10] sm:$0xff]
      %v3630 = vld [vmem:[%s10 + $0x18] sm:$0xff]
      %v3631 = vld [vmem:[%s10 + $0x20] sm:$0xff]
      %v3633 = vsel %vm1538, %v3627, 0
      %v3636 = vsel %vm1538, %v3628, 0
      %v3639 = vsel %vm1538, %v3629, 0
      %v3642 = vsel %vm1538, %v3630, 0
      %v3645 = vsel %vm1538, %v3631, 0
      %3647 = vmatprep.subr.mxu0 %v3601
      %3648 = vmatpush1.msra.mxu0 %v3599
      %3649 = vmatprep.subr.mxu0 %v3607
      %3650 = vmatpush1.msra.mxu0 %v3605
      %3651 = vmatprep.subr.mxu0 %v3613
      %3652 = vmatpush1.msra.mxu0 %v3611
      %3653 = vmatprep.subr.mxu0 %v3619
      %3654 = vmatpush1.msra.mxu0 %v3617
      %3655 = vmatprep.subr.mxu0 %v3625
      %3656 = vmatpush1.msra.mxu0 %v3623
      %3657 = vmatprep.subr.mxu0 0.0
      %3658 = vmatpush1.msra.mxu0 0.0
      %3659 = vmatprep.subr.mxu0 0.0
      %3660 = vmatpush1.msra.mxu0 0.0
      %3661 = vmatprep.subr.mxu0 0.0
      %3662 = vmatpush1.msra.mxu0 0.0
      %3663 = vmatprep.subr.mxu0 0.0
      %3664 = vmatpush1.msra.mxu0 0.0
      %3665 = vmatprep.subr.mxu0 0.0
      %3666 = vmatpush1.msra.mxu0 0.0
      %3667 = vmatprep.subr.mxu0 0.0
      %3668 = vmatpush1.msra.mxu0 0.0
      %3669 = vmatprep.subr.mxu0 0.0
      %3670 = vmatpush1.msra.mxu0 0.0
      %3671 = vmatprep.subr.mxu0 0.0
      %3672 = vmatpush1.msra.mxu0 0.0
      %3673 = vmatprep.subr.mxu0 0.0
      %3674 = vmatpush1.msra.mxu0 0.0
      %3675 = vmatprep.subr.mxu0 0.0
      %3676 = vmatpush1.msra.mxu0 0.0
      %3677 = vmatprep.subr.mxu0 0.0
      %3678 = vmatpush1.msra.mxu0 0.0
      %3679 = vmatprep.subr.mxu0 0.0
      %3680 = vmatpush1.msra.mxu0 0.0
      %3681 = vmatprep.subr.mxu0 0.0
      %3682 = vmatpush1.msra.mxu0 0.0
      %3683 = vmatprep.subr.mxu0 0.0
      %3684 = vmatpush1.msra.mxu0 0.0
      %3685 = vmatprep.subr.mxu0 0.0
      %3686 = vmatpush1.msra.mxu0 0.0
      %3687 = vmatprep.subr.mxu0 0.0
      %3688 = vmatpush1.msra.mxu0 0.0
      %3689 = vmatprep.subr.mxu0 0.0
      %3690 = vmatpush1.msra.mxu0 0.0
      %3691 = vmatprep.subr.mxu0 0.0
      %3692 = vmatpush1.msra.mxu0 0.0
      %3693 = vmatprep.subr.mxu0 0.0
      %3694 = vmatpush1.msra.mxu0 0.0
      %3695 = vmatprep.subr.mxu0 0.0
      %3696 = vmatpush1.msra.mxu0 0.0
      %3697 = vmatprep.subr.mxu0 0.0
      %3698 = vmatpush1.msra.mxu0 0.0
      %3699 = vmatprep.subr.mxu0 0.0
      %3700 = vmatpush1.msra.mxu0 0.0
      %3701 = vmatprep.subr.mxu0 0.0
      %3702 = vmatpush1.msra.mxu0 0.0
      %3703 = vmatprep.subr.mxu0 0.0
      %3704 = vmatpush1.msra.mxu0 0.0
      %3705 = vmatprep.subr.mxu0 0.0
      %3706 = vmatpush1.msra.mxu0 0.0
      %3707 = vmatprep.subr.mxu0 0.0
      %3708 = vmatpush1.msra.mxu0 0.0
      %3709 = vmatprep.subr.mxu0 0.0
      %3710 = vmatpush1.msra.mxu0 0.0
      %3711 = vmatprep.mubr.f32.mxu0 0.0
      %3712 = vmatmul.mubr.f32.gmra.mrb[0].mxu0 %v3633
      %v3713 = vpop.f32.mrb[0].mxu0
      %v3714 = vadd.f32 0.0, %v3713
      %v3715 = vpop.f32.mrb[0].mxu0
      %v3716 = vadd.f32 0.0, %v3715
      %3717 = vmatprep.mubr.f32.mxu0 0.0
      %3718 = vmatmul.mubr.f32.gmra.mrb[0].mxu0 %v3636
      %v3719 = vpop.f32.mrb[0].mxu0
      %v3720 = vadd.f32 0.0, %v3719
      %v3721 = vpop.f32.mrb[0].mxu0
      %v3722 = vadd.f32 0.0, %v3721
      %3723 = vmatprep.mubr.f32.mxu0 0.0
      %3724 = vmatmul.mubr.f32.gmra.mrb[0].mxu0 %v3639
      %v3725 = vpop.f32.mrb[0].mxu0
      %v3726 = vadd.f32 0.0, %v3725
      %v3727 = vpop.f32.mrb[0].mxu0
      %v3728 = vadd.f32 0.0, %v3727
      %3729 = vmatprep.mubr.f32.mxu0 0.0
      %3730 = vmatmul.mubr.f32.gmra.mrb[0].mxu0 %v3642
      %v3731 = vpop.f32.mrb[0].mxu0
      %v3732 = vadd.f32 0.0, %v3731
      %v3733 = vpop.f32.mrb[0].mxu0
      %v3734 = vadd.f32 0.0, %v3733
      %3735 = vmatprep.mubr.f32.mxu0 0.0
      %3736 = vmatmul.mubr.f32.gmra.mrb[0].mxu0 %v3645
      %v3737 = vpop.f32.mrb[0].mxu0
      %v3738 = vadd.f32 0.0, %v3737
      %v3739 = vpop.f32.mrb[0].mxu0
      %v3740 = vadd.f32 0.0, %v3739
      %3741 = vdwg.mxu0
      %v3744 = vcombine.low %v3714, %v3716
      %3746 = vst [vmem:[%s569] sm:$0xff] %v3744
      %v3749 = vrot.slane %v3714, 4
      %v3750 = vrot.slane %v3720, 4
      %v3751 = vsel %vm609, %v3749, %v3750
      %v3752 = vrot.slane %v3716, 4
      %v3753 = vrot.slane %v3722, 4
      %v3754 = vsel %vm609, %v3752, %v3753
      %3757 = vst [vmem:[%s574] sm:$0xff] %v3751
      %3758 = vst [vmem:[%s574 + $0x8] sm:$0xff] %v3754
      %v3761 = vrot.slane %v3726, 4
      %v3762 = vsel %vm609, %v3750, %v3761
      %v3763 = vrot.slane %v3728, 4
      %v3764 = vsel %vm609, %v3753, %v3763
      %3769 = vst [vmem:[%s579] sm:$0xff] %v3762
      %3770 = vst [vmem:[%s579 + $0x8] sm:$0xff] %v3764
      %3771 = vst [vmem:[%s579 + $0x10] sm:$0xf] %v3761
      %3772 = vst [vmem:[%s579 + $0x18] sm:$0xf] %v3763
      %3773 = vst [vmem:[%s584] sm:$0xff] %v3732
      %3774 = vst [vmem:[%s584 + $0x8] sm:$0xff] %v3734
      %3775 = vst [vmem:[%s584 + $0x10] sm:$0xff] %v3738
      %3776 = vst [vmem:[%s584 + $0x18] sm:$0xff] %v3740
      %p3777 = scmp.lt.s32.totalorder %s26, 1
      %s3778 = scalar_select %p3777, %s26, 1
      %s3779 = smul.addr %s3778, 2
      %s3780 = smul.addr %s3779, 4
      %s3781 = scalar_lea.vmem %s11, %s3780
      %p3782 = scmp.lt.s32.totalorder %s26, 1
      %s3783 = scalar_select %p3782, %s26, 1
      %s3784 = smul.addr %s3783, 2
      %s3785 = smul.addr %s3784, 8
      %s3786 = scalar_lea.vmem %s12, %s3785
      %p3787 = scmp.lt.s32.totalorder %s26, 1
      %s3788 = scalar_select %p3787, %s26, 1
      %s3789 = smul.addr %s3788, 4
      %s3790 = smul.addr %s3789, 8
      %s3791 = scalar_lea.vmem %s13, %s3790
      %p3792 = scmp.lt.s32.totalorder %s26, 1
      %s3793 = scalar_select %p3792, %s26, 1
      %s3794 = smul.addr %s3793, 4
      %s3795 = smul.addr %s3794, 8
      %s3796 = scalar_lea.vmem %s14, %s3795
      // Predicated region
      $region65: #{attention_org_forward.1} parent=63 // pred_check
        %p3797 = pneg %p300
      $region66: #{attention_org_forward.1} parent=63 // pred_check_branch
        %3799 = sbr.rel (%p3797) target = $region68
      $region67: #{attention_org_forward.1} parent=63 // pred_region
        _
      $region68: #{attention_org_forward.1} parent=63 // pred_fallthru
        _
      // Predicated region
      $region69: #{attention_org_forward.1} parent=63 // pred_check
        %p3800 = pneg %p326
      $region70: #{attention_org_forward.1} parent=63 // pred_check_branch
        %3802 = sbr.rel (%p3800) target = $region72
      $region71: #{attention_org_forward.1} parent=63 // pred_region
        _
      $region72: #{attention_org_forward.1} parent=63 // pred_fallthru
        _
      // Predicated region
      $region73: #{attention_org_forward.1} parent=63 // pred_check
        %p3803 = pneg %p352
      $region74: #{attention_org_forward.1} parent=63 // pred_check_branch
        %3805 = sbr.rel (%p3803) target = $region76
      $region75: #{attention_org_forward.1} parent=63 // pred_region
        _
      $region76: #{attention_org_forward.1} parent=63 // pred_fallthru
        _
      // Predicated region
      $region77: #{attention_org_forward.1} parent=63 // pred_check
        %p3806 = pneg %p378
      $region78: #{attention_org_forward.1} parent=63 // pred_check_branch
        %3808 = sbr.rel (%p3806) target = $region80
      $region79: #{attention_org_forward.1} parent=63 // pred_region
        _
      $region80: #{attention_org_forward.1} parent=63 // pred_fallthru
        _
    $region64: #{attention_org_forward.1} parent=5 // pred_fallthru
      _
    %p3809 = scmp.le.s32.totalorder 2, %s21
    // Predicated region
    $region81: #{attention_org_forward.1} parent=5 // pred_check
      %p3810 = pneg %p3809
    $region82: #{attention_org_forward.1} parent=5 // pred_check_branch
      %3812 = sbr.rel (%p3810) target = $region84
    $region83: #{attention_org_forward.1} parent=5 // pred_region
      %s3813 = ssub.s32 %s21, 2
      // Predicated region
      $region85: #{attention_org_forward.1} parent=83 // pred_check
        %p3814 = pneg %p306
      $region86: #{attention_org_forward.1} parent=83 // pred_check_branch
        %3816 = sbr.rel (%p3814) target = $region88
      $region87: #{attention_org_forward.1} parent=83 // pred_region
        %p3817 = scmp.lt.s32.totalorder %s27, 1
        %s3818 = scalar_select %p3817, %s27, 1
        %s3819 = smul.addr %s3818, 2
        %s3820 = smul.addr %s3819, 4
        %s3821 = scalar_lea.vmem %s11, %s3820
      $region88: #{attention_org_forward.1} parent=83 // pred_fallthru
        _
      // Predicated region
      $region89: #{attention_org_forward.1} parent=83 // pred_check
        %p3822 = pneg %p332
      $region90: #{attention_org_forward.1} parent=83 // pred_check_branch
        %3824 = sbr.rel (%p3822) target = $region92
      $region91: #{attention_org_forward.1} parent=83 // pred_region
        %p3825 = scmp.lt.s32.totalorder %s27, 1
        %s3826 = scalar_select %p3825, %s27, 1
        %s3827 = smul.addr %s3826, 2
        %s3828 = smul.addr %s3827, 8
        %s3829 = scalar_lea.vmem %s12, %s3828
      $region92: #{attention_org_forward.1} parent=83 // pred_fallthru
        _
      // Predicated region
      $region93: #{attention_org_forward.1} parent=83 // pred_check
        %p3830 = pneg %p358
      $region94: #{attention_org_forward.1} parent=83 // pred_check_branch
        %3832 = sbr.rel (%p3830) target = $region96
      $region95: #{attention_org_forward.1} parent=83 // pred_region
        %p3833 = scmp.lt.s32.totalorder %s27, 1
        %s3834 = scalar_select %p3833, %s27, 1
        %s3835 = smul.addr %s3834, 4
        %s3836 = smul.addr %s3835, 8
        %s3837 = scalar_lea.vmem %s13, %s3836
      $region96: #{attention_org_forward.1} parent=83 // pred_fallthru
        _
      // Predicated region
      $region97: #{attention_org_forward.1} parent=83 // pred_check
        %p3838 = pneg %p384
      $region98: #{attention_org_forward.1} parent=83 // pred_check_branch
        %3840 = sbr.rel (%p3838) target = $region100
      $region99: #{attention_org_forward.1} parent=83 // pred_region
        %p3841 = scmp.lt.s32.totalorder %s27, 1
        %s3842 = scalar_select %p3841, %s27, 1
        %s3843 = smul.addr %s3842, 4
        %s3844 = smul.addr %s3843, 8
        %s3845 = scalar_lea.vmem %s14, %s3844
      $region100: #{attention_org_forward.1} parent=83 // pred_fallthru
        _
    $region84: #{attention_org_forward.1} parent=5 // pred_fallthru
      _
  $region6: #{attention_org_forward.1} parent=0 // loop_footer
    %s25 = sadd.s32 1, %s21
  $region7: #{attention_org_forward.1} parent=0 // loop_footer_branch
    %20 = sbr.rel target = $region3
  $region8: #{attention_org_forward.1} parent=0 // loop_exit
    _

</llo_original>
